<compile_context>
chip_gen: v7x
topology: tpu7x:2x2x1
jax: 0.10.0
libtpu: 0.0.40
codegen_flags: <defaults>
</compile_context>

<pallas_src>
import numpy as np

import jax
import jax.numpy as jnp
from jax.experimental import pallas as pl
from jax.experimental.pallas import tpu as pltpu


# ----------------------------------------------------------------------------
# Host-side builders for the constant 0/1 gather matrices (per batch element).
# ----------------------------------------------------------------------------
def _conv_taps(hin, win, stride, pad, k=3):
    """S[t, m_out, m_in] = 1 iff input pixel (ih,iw) feeds output (oh,ow) at tap t."""
    ho = (hin + 2 * pad - k) // stride + 1
    wo = (win + 2 * pad - k) // stride + 1
    S = np.zeros((k * k, ho * wo, hin * win), np.float32)
    for oh in range(ho):
        for ow in range(wo):
            for ki in range(k):
                for kj in range(k):
                    ih = oh * stride - pad + ki
                    iw = ow * stride - pad + kj
                    if 0 <= ih < hin and 0 <= iw < win:
                        S[ki * k + kj, oh * wo + ow, ih * win + iw] = 1.0
    return S, ho, wo


def _convT_taps(hin, win, stride, pad, opad, k=3):
    """T[t, m_out, m_in] = 1 iff input (ih,iw) contributes to output (oh,ow) via tap t."""
    ho = (hin - 1) * stride - 2 * pad + k + opad
    wo = (win - 1) * stride - 2 * pad + k + opad
    T = np.zeros((k * k, ho * wo, hin * win), np.float32)
    for ih in range(hin):
        for iw in range(win):
            for ki in range(k):
                for kj in range(k):
                    oh = ih * stride - pad + ki
                    ow = iw * stride - pad + kj
                    if 0 <= oh < ho and 0 <= ow < wo:
                        T[ki * k + kj, oh * wo + ow, ih * win + iw] = 1.0
    return T, ho, wo


def _phase_shift_taps(h, w):
    """U[s=(dr*2+dc), (r,c), (r+dr,c+dc)] = 1 (zero rows past the boundary)."""
    U = np.zeros((4, h * w, h * w), np.float32)
    for dr in (0, 1):
        for dc in (0, 1):
            s = dr * 2 + dc
            for r in range(h):
                for c in range(w):
                    if r + dr < h and c + dc < w:
                        U[s, r * w + c, (r + dr) * w + (c + dc)] = 1.0
    return U


def _pack_phase_weights(w):
    """ConvTranspose2d (s=2,p=1,op=1,k=3) weight (Cin,Cout,3,3) -> phase form (4,Cin,4*Cout).

    Output phase (a,b) at shift (dr,dc) uses kernel tap (ki,kj)=(a+1-2dr, b+1-2dc) when valid.
    """
    cin, cout = w.shape[0], w.shape[1]
    V = jnp.zeros((4, cin, 4 * cout), w.dtype)
    for dr in (0, 1):
        for dc in (0, 1):
            s = dr * 2 + dc
            for a in (0, 1):
                for b in (0, 1):
                    ki, kj = a + 1 - 2 * dr, b + 1 - 2 * dc
                    if 0 <= ki < 3 and 0 <= kj < 3:
                        p = a * 2 + b
                        V = V.at[s, :, p * cout:(p + 1) * cout].set(w[:, :, ki, kj])
    return V


def _im2col_nhwc(x, k, stride, pad):
    """x: (N,H,W,C) -> cols (N*Ho*Wo, k*k*C), tap-major / channel-fastest ordering."""
    N, H, W, C = x.shape
    xp = jnp.pad(x, ((0, 0), (pad, pad), (pad, pad), (0, 0)))
    Ho = (H + 2 * pad - k) // stride + 1
    Wo = (W + 2 * pad - k) // stride + 1
    taps = []
    for ki in range(k):
        for kj in range(k):
            taps.append(xp[:, ki:ki + stride * Ho:stride, kj:kj + stride * Wo:stride, :])
    cols = jnp.concatenate(taps, axis=-1)
    return cols.reshape(N * Ho * Wo, k * k * C), Ho, Wo


# ----------------------------------------------------------------------------
# The fused Pallas kernel: one batch element per grid step, everything in VMEM.
# ----------------------------------------------------------------------------
def _fused_ae_kernel(cols0_ref, w1_ref, b1_ref,
                     s2_ref, w2_ref, b2_ref,
                     t3_ref, w3_ref, b3_ref,
                     u4_ref, v4_ref, b4_ref,
                     z_ref, o_ref):
    f32, bf16 = jnp.float32, jnp.bfloat16

    # enc1: 3x3 s2 conv as a single im2col matmul (cols precomputed outside, K padded to 128).
    h = jnp.dot(cols0_ref[...], w1_ref[...], preferred_element_type=f32)
    h = jnp.maximum(h + b1_ref[...], 0.0).astype(bf16)               # (64, 16)

    # enc2: 3x3 s2 conv = sum over 9 taps of (row-gather @ h) @ W_tap.
    acc = jnp.zeros((s2_ref.shape[1], w2_ref.shape[2]), f32)
    for t in range(s2_ref.shape[0]):
        g = jnp.dot(s2_ref[t], h, preferred_element_type=f32).astype(bf16)
        acc = acc + jnp.dot(g, w2_ref[t], preferred_element_type=f32)
    z = jnp.maximum(acc + b2_ref[...], 0.0)                          # (16, 8)
    z_ref[...] = z.astype(z_ref.dtype)
    z16 = z.astype(bf16)

    # dec1: 3x3 s2 convT as per-tap scatter (no dilated / zero-stuffed input).
    acc = jnp.zeros((t3_ref.shape[1], w3_ref.shape[2]), f32)
    for t in range(t3_ref.shape[0]):
        g = jnp.dot(t3_ref[t], z16, preferred_element_type=f32).astype(bf16)
        acc = acc + jnp.dot(g, w3_ref[t], preferred_element_type=f32)
    d = jnp.maximum(acc + b3_ref[...], 0.0).astype(bf16)             # (64, 16)

    # dec2: 3x3 s2 convT in subpixel (phase) form: 4 shifted gathers, phase-packed channels.
    acc = jnp.zeros((u4_ref.shape[1], v4_ref.shape[2]), f32)
    for s in range(u4_ref.shape[0]):
        g = jnp.dot(u4_ref[s], d, preferred_element_type=f32).astype(bf16)
        acc = acc + jnp.dot(g, v4_ref[s], preferred_element_type=f32)
    acc = acc + b4_ref[...]
    # sigmoid(x) == 0.5*(tanh(x/2)+1): transcendental on the EUP, no VPU divide, stays in [0,1].
    o_ref[...] = (0.5 * (jnp.tanh(0.5 * acc) + 1.0)).astype(o_ref.dtype)


# ----------------------------------------------------------------------------
# Parameters (deterministic, PyTorch-default-like uniform init)
# ----------------------------------------------------------------------------
def _init_conv(key, cout, cin, k):
    kw_key, b_key = jax.random.split(key)
    bound = 1.0 / jnp.sqrt(cin * k * k)
    w = jax.random.uniform(kw_key, (cout, cin, k, k), jnp.float32, -bound, bound)
    b = jax.random.uniform(b_key, (cout,), jnp.float32, -bound, bound)
    return w, b


def _init_convT(key, cin, cout, k):
    kw_key, b_key = jax.random.split(key)
    bound = 1.0 / jnp.sqrt(cout * k * k)     # PyTorch fan_in for ConvTranspose2d weight
    w = jax.random.uniform(kw_key, (cin, cout, k, k), jnp.float32, -bound, bound)
    b = jax.random.uniform(b_key, (cout,), jnp.float32, -bound, bound)
    return w, b


def init_params(colour, key):
    k1, k2, k3, k4 = jax.random.split(key, 4)
    return {
        "enc1": _init_conv(k1, 16, colour, 3),
        "enc2": _init_conv(k2, 8, 16, 3),
        "dec1": _init_convT(k3, 8, 16, 3),
        "dec2": _init_convT(k4, 16, colour, 3),
    }


# ----------------------------------------------------------------------------
# Forward pass:  (z[:, :3], o)
# ----------------------------------------------------------------------------
def static_autoencoder_forward(params, x):
    w1, b1 = params["enc1"]
    w2, b2 = params["enc2"]
    w3, b3 = params["dec1"]
    w4, b4 = params["dec2"]

    N, Cin, H, W = x.shape
    Cout = w4.shape[1]                      # == colour
    C1, C2, C3 = w1.shape[0], w2.shape[0], w3.shape[1]   # 16, 8, 16
    assert H % 4 == 0 and W % 4 == 0

    # Boundary layout change (once): NCHW -> NHWC rows.
    x_nhwc = jnp.transpose(x, (0, 2, 3, 1))

    # enc1 im2col in plain JAX (input-side glue only); K zero-padded to a lane multiple.
    cols0, H1, W1s = _im2col_nhwc(x_nhwc, 3, 2, 1)               # (N*H1*W1, 9*Cin)
    K1 = cols0.shape[1]
    K1P = ((K1 + 127) // 128) * 128
    cols0 = jnp.pad(cols0, ((0, 0), (0, K1P - K1))).astype(jnp.bfloat16)
    w1m = jnp.transpose(w1, (2, 3, 1, 0)).reshape(K1, C1)
    w1m = jnp.pad(w1m, ((0, K1P - K1), (0, 0))).astype(jnp.bfloat16)

    # Constant 0/1 gather matrices (host-built, per batch element, exact in bf16).
    S2, H2, W2s = _conv_taps(H1, W1s, 2, 1)                      # enc2 windows
    T3, H3, W3s = _convT_taps(H2, W2s, 2, 1, 1)                  # dec1 scatter
    U4 = _phase_shift_taps(H3, W3s)                              # dec2 phase shifts
    s2 = jnp.asarray(S2, jnp.bfloat16)
    t3 = jnp.asarray(T3, jnp.bfloat16)
    u4 = jnp.asarray(U4, jnp.bfloat16)

    # Weights in tap-major matmul form (bf16 MXU inputs).
    w2m = jnp.transpose(w2, (2, 3, 1, 0)).reshape(9, C1, C2).astype(jnp.bfloat16)
    w3m = jnp.transpose(w3, (2, 3, 0, 1)).reshape(9, C2, C3).astype(jnp.bfloat16)
    v4 = _pack_phase_weights(w4).astype(jnp.bfloat16)            # (4, C3, 4*Cout)

    b1r = b1.reshape(1, -1).astype(jnp.float32)
    b2r = b2.reshape(1, -1).astype(jnp.float32)
    b3r = b3.reshape(1, -1).astype(jnp.float32)
    b4r = jnp.tile(b4, 4).reshape(1, -1).astype(jnp.float32)     # phase-tiled bias

    M1, M2, M3 = H1 * W1s, H2 * W2s, H3 * W3s                    # rows / element / stage

    z_rows, o_phase = pl.pallas_call(
        _fused_ae_kernel,
        out_shape=(jax.ShapeDtypeStruct((N * M2, C2), jnp.float32),
                   jax.ShapeDtypeStruct((N * M3, 4 * Cout), jnp.float32)),
        grid=(N,),
        in_specs=[
            pl.BlockSpec((M1, K1P), lambda n: (n, 0)),           # cols0 (per element)
            pl.BlockSpec(w1m.shape, lambda n: (0, 0)),           # W1
            pl.BlockSpec(b1r.shape, lambda n: (0, 0)),           # b1
            pl.BlockSpec(s2.shape, lambda n: (0, 0, 0)),         # enc2 gathers
            pl.BlockSpec(w2m.shape, lambda n: (0, 0, 0)),        # W2
            pl.BlockSpec(b2r.shape, lambda n: (0, 0)),           # b2
            pl.BlockSpec(t3.shape, lambda n: (0, 0, 0)),         # dec1 scatters
            pl.BlockSpec(w3m.shape, lambda n: (0, 0, 0)),        # W3
            pl.BlockSpec(b3r.shape, lambda n: (0, 0)),           # b3
            pl.BlockSpec(u4.shape, lambda n: (0, 0, 0)),         # dec2 phase shifts
            pl.BlockSpec(v4.shape, lambda n: (0, 0, 0)),         # W4 (phase-packed)
            pl.BlockSpec(b4r.shape, lambda n: (0, 0)),           # b4 (phase-tiled)
        ],
        out_specs=(pl.BlockSpec((M2, C2), lambda n: (n, 0)),
                   pl.BlockSpec((M3, 4 * Cout), lambda n: (n, 0))),
        compiler_params=pltpu.CompilerParams(
            dimension_semantics=("parallel",)),
    )(cols0, w1m, b1r, s2, w2m, b2r, t3, w3m, b3r, u4, v4, b4r)

    # Boundary glue: rows -> NCHW; depth-to-space for the phase-packed decoder output.
    z = z_rows.reshape(N, H2, W2s, C2).transpose(0, 3, 1, 2)
    o = (o_phase.reshape(N, H3, W3s, 2, 2, Cout)
                .transpose(0, 1, 3, 2, 4, 5)
                .reshape(N, 2 * H3, 2 * W3s, Cout)
                .transpose(0, 3, 1, 2))
    return z[:, :3], o


# ----------------------------------------------------------------------------
# Plain NumPy reference (PyTorch semantics) for a loose numerical cross-check.
# ----------------------------------------------------------------------------
def _conv2d_ref(x, w, b, stride, pad):
    N, C, H, W = x.shape
    Co, _, k, _ = w.shape
    Ho = (H + 2 * pad - k) // stride + 1
    Wo = (W + 2 * pad - k) // stride + 1
    xp = np.pad(x, ((0, 0), (0, 0), (pad, pad), (pad, pad)))
    out = np.zeros((N, Co, Ho, Wo), np.float32)
    for oh in range(Ho):
        for ow in range(Wo):
            patch = xp[:, :, oh * stride:oh * stride + k, ow * stride:ow * stride + k]
            out[:, :, oh, ow] = np.einsum('ncij,ocij->no', patch, w)
    return out + b[None, :, None, None]


def _convT2d_ref(x, w, b, stride, pad, opad):
    N, Ci, H, W = x.shape
    _, Co, k, _ = w.shape
    Ho = (H - 1) * stride - 2 * pad + k + opad
    Wo = (W - 1) * stride - 2 * pad + k + opad
    out = np.zeros((N, Co, Ho, Wo), np.float32)
    for ih in range(H):
        for iw in range(W):
            for ki in range(k):
                for kj in range(k):
                    oh, ow = ih * stride - pad + ki, iw * stride - pad + kj
                    if 0 <= oh < Ho and 0 <= ow < Wo:
                        out[:, :, oh, ow] += np.einsum('nc,co->no',
                                                       x[:, :, ih, iw], w[:, :, ki, kj])
    return out + b[None, :, None, None]


def _reference_forward_np(params, x):
    x = np.asarray(x, np.float32)
    w1, b1 = [np.asarray(a, np.float32) for a in params["enc1"]]
    w2, b2 = [np.asarray(a, np.float32) for a in params["enc2"]]
    w3, b3 = [np.asarray(a, np.float32) for a in params["dec1"]]
    w4, b4 = [np.asarray(a, np.float32) for a in params["dec2"]]
    h = np.maximum(_conv2d_ref(x, w1, b1, 2, 1), 0.0)
    z = np.maximum(_conv2d_ref(h, w2, b2, 2, 1), 0.0)
    d = np.maximum(_convT2d_ref(z, w3, b3, 2, 1, 1), 0.0)
    o = 1.0 / (1.0 + np.exp(-_convT2d_ref(d, w4, b4, 2, 1, 1)))
    return z[:, :3], o


if __name__ == "__main__":
    colour = 4
    key = jax.random.PRNGKey(0)
    pkey, xkey = jax.random.split(key)

    params = init_params(colour, pkey)
    x = jax.random.normal(xkey, (2, colour, 16, 16), jnp.float32)   # NCHW

    fwd = jax.jit(static_autoencoder_forward)
    z3, o = fwd(params, x)
    jax.block_until_ready((z3, o))

    assert z3.shape == (2, 3, 4, 4), z3.shape
    assert o.shape == (2, colour, 16, 16), o.shape
    assert bool(jnp.all(jnp.isfinite(z3))) and bool(jnp.all(jnp.isfinite(o)))
    assert bool(jnp.all(o >= 0.0)) and bool(jnp.all(o <= 1.0))

    # Loose numerical cross-check against a straightforward NumPy reference (bf16 MXU inputs).
    z3_ref, o_ref = _reference_forward_np(params, x)
    assert np.allclose(np.asarray(z3), z3_ref, atol=3e-2, rtol=5e-2), "encoder mismatch"
    assert np.allclose(np.asarray(o), o_ref, atol=3e-2, rtol=5e-2), "decoder mismatch"

    print("KERNEL_OK")
</pallas_src>

<mosaic_0001>
module attributes {stable_mosaic.version = 11 : i64} {
  func.func @_fused_ae_kernel(%arg0: i32, %arg1: memref<64x128xbf16, #tpu.memory_space<vmem>>, %arg2: memref<128x16xbf16, #tpu.memory_space<vmem>>, %arg3: memref<1x16xf32, #tpu.memory_space<vmem>>, %arg4: memref<9x16x64xbf16, #tpu.memory_space<vmem>>, %arg5: memref<9x16x8xbf16, #tpu.memory_space<vmem>>, %arg6: memref<1x8xf32, #tpu.memory_space<vmem>>, %arg7: memref<9x64x16xbf16, #tpu.memory_space<vmem>>, %arg8: memref<9x8x16xbf16, #tpu.memory_space<vmem>>, %arg9: memref<1x16xf32, #tpu.memory_space<vmem>>, %arg10: memref<4x64x64xbf16, #tpu.memory_space<vmem>>, %arg11: memref<4x16x16xbf16, #tpu.memory_space<vmem>>, %arg12: memref<1x16xf32, #tpu.memory_space<vmem>>, %arg13: memref<16x8xf32, #tpu.memory_space<vmem>>, %arg14: memref<64x16xf32, #tpu.memory_space<vmem>>) attributes {dimension_semantics = [#tpu.dimension_semantics<parallel>], iteration_bounds = array<i64: 2>, scalar_prefetch = 0 : i64, scratch_operands = 0 : i64, tpu.core_type = #tpu.core_type<tc>, window_params = [{transform_indices = @transform_0, window_bounds = array<i64: 64, 128>}, {pipeline_mode = #tpu.pipeline_mode<synchronous>, transform_indices = @transform_1, window_bounds = array<i64: 128, 16>}, {pipeline_mode = #tpu.pipeline_mode<synchronous>, transform_indices = @transform_2, window_bounds = array<i64: 1, 16>}, {pipeline_mode = #tpu.pipeline_mode<synchronous>, transform_indices = @transform_3, window_bounds = array<i64: 9, 16, 64>}, {pipeline_mode = #tpu.pipeline_mode<synchronous>, transform_indices = @transform_4, window_bounds = array<i64: 9, 16, 8>}, {pipeline_mode = #tpu.pipeline_mode<synchronous>, transform_indices = @transform_5, window_bounds = array<i64: 1, 8>}, {pipeline_mode = #tpu.pipeline_mode<synchronous>, transform_indices = @transform_6, window_bounds = array<i64: 9, 64, 16>}, {pipeline_mode = #tpu.pipeline_mode<synchronous>, transform_indices = @transform_7, window_bounds = array<i64: 9, 8, 16>}, {pipeline_mode = #tpu.pipeline_mode<synchronous>, transform_indices = @transform_8, window_bounds = array<i64: 1, 16>}, {pipeline_mode = #tpu.pipeline_mode<synchronous>, transform_indices = @transform_9, window_bounds = array<i64: 4, 64, 64>}, {pipeline_mode = #tpu.pipeline_mode<synchronous>, transform_indices = @transform_10, window_bounds = array<i64: 4, 16, 16>}, {pipeline_mode = #tpu.pipeline_mode<synchronous>, transform_indices = @transform_11, window_bounds = array<i64: 1, 16>}, {transform_indices = @transform_12, window_bounds = array<i64: 16, 8>}, {transform_indices = @transform_13, window_bounds = array<i64: 64, 16>}]} {
    %c0 = arith.constant 0 : index
    %c0_0 = arith.constant 0 : index
    %0 = vector.load %arg1[%c0, %c0_0] : memref<64x128xbf16, #tpu.memory_space<vmem>>, vector<64x128xbf16>
    %c0_1 = arith.constant 0 : index
    %c0_2 = arith.constant 0 : index
    %1 = vector.load %arg2[%c0_1, %c0_2] : memref<128x16xbf16, #tpu.memory_space<vmem>>, vector<128x16xbf16>
    %cst = arith.constant dense<0.000000e+00> : vector<64x16xf32>
    %2 = tpu.matmul %0, %1, %cst {dimension_numbers = #tpu.dot_dimension_numbers<[1], [0], [0], [1], [0, 0, 1, 1], [], []>} : vector<64x128xbf16>, vector<128x16xbf16>, vector<64x16xf32> -> vector<64x16xf32>
    %c0_3 = arith.constant 0 : index
    %c0_4 = arith.constant 0 : index
    %3 = vector.load %arg3[%c0_3, %c0_4] : memref<1x16xf32, #tpu.memory_space<vmem>>, vector<1x16xf32>
    %4 = vector.broadcast %3 : vector<1x16xf32> to vector<64x16xf32>
    %5 = arith.addf %2, %4 : vector<64x16xf32>
    %cst_5 = arith.constant 0.000000e+00 : f32
    %6 = vector.broadcast %cst_5 : f32 to vector<64x16xf32>
    %7 = arith.maximumf %5, %6 : vector<64x16xf32>
    %8 = arith.truncf %7 : vector<64x16xf32> to vector<64x16xbf16>
    %cst_6 = arith.constant 0.000000e+00 : f32
    %9 = vector.broadcast %cst_6 : f32 to vector<16x8xf32>
    %c0_7 = arith.constant 0 : index
    %c0_8 = arith.constant 0 : index
    %c0_9 = arith.constant 0 : index
    %10 = vector.load %arg4[%c0_7, %c0_8, %c0_9] : memref<9x16x64xbf16, #tpu.memory_space<vmem>>, vector<1x16x64xbf16>
    %11 = vector.shape_cast %10 : vector<1x16x64xbf16> to vector<16x64xbf16>
    %cst_10 = arith.constant dense<0.000000e+00> : vector<16x16xf32>
    %12 = tpu.matmul %11, %8, %cst_10 {dimension_numbers = #tpu.dot_dimension_numbers<[1], [0], [0], [1], [0, 0, 1, 1], [], []>} : vector<16x64xbf16>, vector<64x16xbf16>, vector<16x16xf32> -> vector<16x16xf32>
    %13 = arith.truncf %12 : vector<16x16xf32> to vector<16x16xbf16>
    %c0_11 = arith.constant 0 : index
    %c0_12 = arith.constant 0 : index
    %c0_13 = arith.constant 0 : index
    %14 = vector.load %arg5[%c0_11, %c0_12, %c0_13] : memref<9x16x8xbf16, #tpu.memory_space<vmem>>, vector<1x16x8xbf16>
    %15 = vector.shape_cast %14 : vector<1x16x8xbf16> to vector<16x8xbf16>
    %cst_14 = arith.constant dense<0.000000e+00> : vector<16x8xf32>
    %16 = tpu.matmul %13, %15, %cst_14 {dimension_numbers = #tpu.dot_dimension_numbers<[1], [0], [0], [1], [0, 0, 1, 1], [], []>} : vector<16x16xbf16>, vector<16x8xbf16>, vector<16x8xf32> -> vector<16x8xf32>
    %17 = arith.addf %9, %16 : vector<16x8xf32>
    %c1 = arith.constant 1 : index
    %c0_15 = arith.constant 0 : index
    %c0_16 = arith.constant 0 : index
    %18 = vector.load %arg4[%c1, %c0_15, %c0_16] : memref<9x16x64xbf16, #tpu.memory_space<vmem>>, vector<1x16x64xbf16>
    %19 = vector.shape_cast %18 : vector<1x16x64xbf16> to vector<16x64xbf16>
    %cst_17 = arith.constant dense<0.000000e+00> : vector<16x16xf32>
    %20 = tpu.matmul %19, %8, %cst_17 {dimension_numbers = #tpu.dot_dimension_numbers<[1], [0], [0], [1], [0, 0, 1, 1], [], []>} : vector<16x64xbf16>, vector<64x16xbf16>, vector<16x16xf32> -> vector<16x16xf32>
    %21 = arith.truncf %20 : vector<16x16xf32> to vector<16x16xbf16>
    %c1_18 = arith.constant 1 : index
    %c0_19 = arith.constant 0 : index
    %c0_20 = arith.constant 0 : index
    %22 = vector.load %arg5[%c1_18, %c0_19, %c0_20] : memref<9x16x8xbf16, #tpu.memory_space<vmem>>, vector<1x16x8xbf16>
    %23 = vector.shape_cast %22 : vector<1x16x8xbf16> to vector<16x8xbf16>
    %cst_21 = arith.constant dense<0.000000e+00> : vector<16x8xf32>
    %24 = tpu.matmul %21, %23, %cst_21 {dimension_numbers = #tpu.dot_dimension_numbers<[1], [0], [0], [1], [0, 0, 1, 1], [], []>} : vector<16x16xbf16>, vector<16x8xbf16>, vector<16x8xf32> -> vector<16x8xf32>
    %25 = arith.addf %17, %24 : vector<16x8xf32>
    %c2 = arith.constant 2 : index
    %c0_22 = arith.constant 0 : index
    %c0_23 = arith.constant 0 : index
    %26 = vector.load %arg4[%c2, %c0_22, %c0_23] : memref<9x16x64xbf16, #tpu.memory_space<vmem>>, vector<1x16x64xbf16>
    %27 = vector.shape_cast %26 : vector<1x16x64xbf16> to vector<16x64xbf16>
    %cst_24 = arith.constant dense<0.000000e+00> : vector<16x16xf32>
    %28 = tpu.matmul %27, %8, %cst_24 {dimension_numbers = #tpu.dot_dimension_numbers<[1], [0], [0], [1], [0, 0, 1, 1], [], []>} : vector<16x64xbf16>, vector<64x16xbf16>, vector<16x16xf32> -> vector<16x16xf32>
    %29 = arith.truncf %28 : vector<16x16xf32> to vector<16x16xbf16>
    %c2_25 = arith.constant 2 : index
    %c0_26 = arith.constant 0 : index
    %c0_27 = arith.constant 0 : index
    %30 = vector.load %arg5[%c2_25, %c0_26, %c0_27] : memref<9x16x8xbf16, #tpu.memory_space<vmem>>, vector<1x16x8xbf16>
    %31 = vector.shape_cast %30 : vector<1x16x8xbf16> to vector<16x8xbf16>
    %cst_28 = arith.constant dense<0.000000e+00> : vector<16x8xf32>
    %32 = tpu.matmul %29, %31, %cst_28 {dimension_numbers = #tpu.dot_dimension_numbers<[1], [0], [0], [1], [0, 0, 1, 1], [], []>} : vector<16x16xbf16>, vector<16x8xbf16>, vector<16x8xf32> -> vector<16x8xf32>
    %33 = arith.addf %25, %32 : vector<16x8xf32>
    %c3 = arith.constant 3 : index
    %c0_29 = arith.constant 0 : index
    %c0_30 = arith.constant 0 : index
    %34 = vector.load %arg4[%c3, %c0_29, %c0_30] : memref<9x16x64xbf16, #tpu.memory_space<vmem>>, vector<1x16x64xbf16>
    %35 = vector.shape_cast %34 : vector<1x16x64xbf16> to vector<16x64xbf16>
    %cst_31 = arith.constant dense<0.000000e+00> : vector<16x16xf32>
    %36 = tpu.matmul %35, %8, %cst_31 {dimension_numbers = #tpu.dot_dimension_numbers<[1], [0], [0], [1], [0, 0, 1, 1], [], []>} : vector<16x64xbf16>, vector<64x16xbf16>, vector<16x16xf32> -> vector<16x16xf32>
    %37 = arith.truncf %36 : vector<16x16xf32> to vector<16x16xbf16>
    %c3_32 = arith.constant 3 : index
    %c0_33 = arith.constant 0 : index
    %c0_34 = arith.constant 0 : index
    %38 = vector.load %arg5[%c3_32, %c0_33, %c0_34] : memref<9x16x8xbf16, #tpu.memory_space<vmem>>, vector<1x16x8xbf16>
    %39 = vector.shape_cast %38 : vector<1x16x8xbf16> to vector<16x8xbf16>
    %cst_35 = arith.constant dense<0.000000e+00> : vector<16x8xf32>
    %40 = tpu.matmul %37, %39, %cst_35 {dimension_numbers = #tpu.dot_dimension_numbers<[1], [0], [0], [1], [0, 0, 1, 1], [], []>} : vector<16x16xbf16>, vector<16x8xbf16>, vector<16x8xf32> -> vector<16x8xf32>
    %41 = arith.addf %33, %40 : vector<16x8xf32>
    %c4 = arith.constant 4 : index
    %c0_36 = arith.constant 0 : index
    %c0_37 = arith.constant 0 : index
    %42 = vector.load %arg4[%c4, %c0_36, %c0_37] : memref<9x16x64xbf16, #tpu.memory_space<vmem>>, vector<1x16x64xbf16>
    %43 = vector.shape_cast %42 : vector<1x16x64xbf16> to vector<16x64xbf16>
    %cst_38 = arith.constant dense<0.000000e+00> : vector<16x16xf32>
    %44 = tpu.matmul %43, %8, %cst_38 {dimension_numbers = #tpu.dot_dimension_numbers<[1], [0], [0], [1], [0, 0, 1, 1], [], []>} : vector<16x64xbf16>, vector<64x16xbf16>, vector<16x16xf32> -> vector<16x16xf32>
    %45 = arith.truncf %44 : vector<16x16xf32> to vector<16x16xbf16>
    %c4_39 = arith.constant 4 : index
    %c0_40 = arith.constant 0 : index
    %c0_41 = arith.constant 0 : index
    %46 = vector.load %arg5[%c4_39, %c0_40, %c0_41] : memref<9x16x8xbf16, #tpu.memory_space<vmem>>, vector<1x16x8xbf16>
    %47 = vector.shape_cast %46 : vector<1x16x8xbf16> to vector<16x8xbf16>
    %cst_42 = arith.constant dense<0.000000e+00> : vector<16x8xf32>
    %48 = tpu.matmul %45, %47, %cst_42 {dimension_numbers = #tpu.dot_dimension_numbers<[1], [0], [0], [1], [0, 0, 1, 1], [], []>} : vector<16x16xbf16>, vector<16x8xbf16>, vector<16x8xf32> -> vector<16x8xf32>
    %49 = arith.addf %41, %48 : vector<16x8xf32>
    %c5 = arith.constant 5 : index
    %c0_43 = arith.constant 0 : index
    %c0_44 = arith.constant 0 : index
    %50 = vector.load %arg4[%c5, %c0_43, %c0_44] : memref<9x16x64xbf16, #tpu.memory_space<vmem>>, vector<1x16x64xbf16>
    %51 = vector.shape_cast %50 : vector<1x16x64xbf16> to vector<16x64xbf16>
    %cst_45 = arith.constant dense<0.000000e+00> : vector<16x16xf32>
    %52 = tpu.matmul %51, %8, %cst_45 {dimension_numbers = #tpu.dot_dimension_numbers<[1], [0], [0], [1], [0, 0, 1, 1], [], []>} : vector<16x64xbf16>, vector<64x16xbf16>, vector<16x16xf32> -> vector<16x16xf32>
    %53 = arith.truncf %52 : vector<16x16xf32> to vector<16x16xbf16>
    %c5_46 = arith.constant 5 : index
    %c0_47 = arith.constant 0 : index
    %c0_48 = arith.constant 0 : index
    %54 = vector.load %arg5[%c5_46, %c0_47, %c0_48] : memref<9x16x8xbf16, #tpu.memory_space<vmem>>, vector<1x16x8xbf16>
    %55 = vector.shape_cast %54 : vector<1x16x8xbf16> to vector<16x8xbf16>
    %cst_49 = arith.constant dense<0.000000e+00> : vector<16x8xf32>
    %56 = tpu.matmul %53, %55, %cst_49 {dimension_numbers = #tpu.dot_dimension_numbers<[1], [0], [0], [1], [0, 0, 1, 1], [], []>} : vector<16x16xbf16>, vector<16x8xbf16>, vector<16x8xf32> -> vector<16x8xf32>
    %57 = arith.addf %49, %56 : vector<16x8xf32>
    %c6 = arith.constant 6 : index
    %c0_50 = arith.constant 0 : index
    %c0_51 = arith.constant 0 : index
    %58 = vector.load %arg4[%c6, %c0_50, %c0_51] : memref<9x16x64xbf16, #tpu.memory_space<vmem>>, vector<1x16x64xbf16>
    %59 = vector.shape_cast %58 : vector<1x16x64xbf16> to vector<16x64xbf16>
    %cst_52 = arith.constant dense<0.000000e+00> : vector<16x16xf32>
    %60 = tpu.matmul %59, %8, %cst_52 {dimension_numbers = #tpu.dot_dimension_numbers<[1], [0], [0], [1], [0, 0, 1, 1], [], []>} : vector<16x64xbf16>, vector<64x16xbf16>, vector<16x16xf32> -> vector<16x16xf32>
    %61 = arith.truncf %60 : vector<16x16xf32> to vector<16x16xbf16>
    %c6_53 = arith.constant 6 : index
    %c0_54 = arith.constant 0 : index
    %c0_55 = arith.constant 0 : index
    %62 = vector.load %arg5[%c6_53, %c0_54, %c0_55] : memref<9x16x8xbf16, #tpu.memory_space<vmem>>, vector<1x16x8xbf16>
    %63 = vector.shape_cast %62 : vector<1x16x8xbf16> to vector<16x8xbf16>
    %cst_56 = arith.constant dense<0.000000e+00> : vector<16x8xf32>
    %64 = tpu.matmul %61, %63, %cst_56 {dimension_numbers = #tpu.dot_dimension_numbers<[1], [0], [0], [1], [0, 0, 1, 1], [], []>} : vector<16x16xbf16>, vector<16x8xbf16>, vector<16x8xf32> -> vector<16x8xf32>
    %65 = arith.addf %57, %64 : vector<16x8xf32>
    %c7 = arith.constant 7 : index
    %c0_57 = arith.constant 0 : index
    %c0_58 = arith.constant 0 : index
    %66 = vector.load %arg4[%c7, %c0_57, %c0_58] : memref<9x16x64xbf16, #tpu.memory_space<vmem>>, vector<1x16x64xbf16>
    %67 = vector.shape_cast %66 : vector<1x16x64xbf16> to vector<16x64xbf16>
    %cst_59 = arith.constant dense<0.000000e+00> : vector<16x16xf32>
    %68 = tpu.matmul %67, %8, %cst_59 {dimension_numbers = #tpu.dot_dimension_numbers<[1], [0], [0], [1], [0, 0, 1, 1], [], []>} : vector<16x64xbf16>, vector<64x16xbf16>, vector<16x16xf32> -> vector<16x16xf32>
    %69 = arith.truncf %68 : vector<16x16xf32> to vector<16x16xbf16>
    %c7_60 = arith.constant 7 : index
    %c0_61 = arith.constant 0 : index
    %c0_62 = arith.constant 0 : index
    %70 = vector.load %arg5[%c7_60, %c0_61, %c0_62] : memref<9x16x8xbf16, #tpu.memory_space<vmem>>, vector<1x16x8xbf16>
    %71 = vector.shape_cast %70 : vector<1x16x8xbf16> to vector<16x8xbf16>
    %cst_63 = arith.constant dense<0.000000e+00> : vector<16x8xf32>
    %72 = tpu.matmul %69, %71, %cst_63 {dimension_numbers = #tpu.dot_dimension_numbers<[1], [0], [0], [1], [0, 0, 1, 1], [], []>} : vector<16x16xbf16>, vector<16x8xbf16>, vector<16x8xf32> -> vector<16x8xf32>
    %73 = arith.addf %65, %72 : vector<16x8xf32>
    %c8 = arith.constant 8 : index
    %c0_64 = arith.constant 0 : index
    %c0_65 = arith.constant 0 : index
    %74 = vector.load %arg4[%c8, %c0_64, %c0_65] : memref<9x16x64xbf16, #tpu.memory_space<vmem>>, vector<1x16x64xbf16>
    %75 = vector.shape_cast %74 : vector<1x16x64xbf16> to vector<16x64xbf16>
    %cst_66 = arith.constant dense<0.000000e+00> : vector<16x16xf32>
    %76 = tpu.matmul %75, %8, %cst_66 {dimension_numbers = #tpu.dot_dimension_numbers<[1], [0], [0], [1], [0, 0, 1, 1], [], []>} : vector<16x64xbf16>, vector<64x16xbf16>, vector<16x16xf32> -> vector<16x16xf32>
    %77 = arith.truncf %76 : vector<16x16xf32> to vector<16x16xbf16>
    %c8_67 = arith.constant 8 : index
    %c0_68 = arith.constant 0 : index
    %c0_69 = arith.constant 0 : index
    %78 = vector.load %arg5[%c8_67, %c0_68, %c0_69] : memref<9x16x8xbf16, #tpu.memory_space<vmem>>, vector<1x16x8xbf16>
    %79 = vector.shape_cast %78 : vector<1x16x8xbf16> to vector<16x8xbf16>
    %cst_70 = arith.constant dense<0.000000e+00> : vector<16x8xf32>
    %80 = tpu.matmul %77, %79, %cst_70 {dimension_numbers = #tpu.dot_dimension_numbers<[1], [0], [0], [1], [0, 0, 1, 1], [], []>} : vector<16x16xbf16>, vector<16x8xbf16>, vector<16x8xf32> -> vector<16x8xf32>
    %81 = arith.addf %73, %80 : vector<16x8xf32>
    %c0_71 = arith.constant 0 : index
    %c0_72 = arith.constant 0 : index
    %82 = vector.load %arg6[%c0_71, %c0_72] : memref<1x8xf32, #tpu.memory_space<vmem>>, vector<1x8xf32>
    %83 = vector.broadcast %82 : vector<1x8xf32> to vector<16x8xf32>
    %84 = arith.addf %81, %83 : vector<16x8xf32>
    %cst_73 = arith.constant 0.000000e+00 : f32
    %85 = vector.broadcast %cst_73 : f32 to vector<16x8xf32>
    %86 = arith.maximumf %84, %85 : vector<16x8xf32>
    %c0_74 = arith.constant 0 : index
    %c0_75 = arith.constant 0 : index
    %87 = vector.load %arg13[%c0_74, %c0_75] : memref<16x8xf32, #tpu.memory_space<vmem>>, vector<16x8xf32>
    tpu.vector_store %arg13[%c0_74, %c0_75], %86 {strides = array<i32>} : memref<16x8xf32, #tpu.memory_space<vmem>>, vector<16x8xf32>,
    %88 = arith.truncf %86 : vector<16x8xf32> to vector<16x8xbf16>
    %cst_76 = arith.constant 0.000000e+00 : f32
    %89 = vector.broadcast %cst_76 : f32 to vector<64x16xf32>
    %c0_77 = arith.constant 0 : index
    %c0_78 = arith.constant 0 : index
    %c0_79 = arith.constant 0 : index
    %90 = vector.load %arg7[%c0_77, %c0_78, %c0_79] : memref<9x64x16xbf16, #tpu.memory_space<vmem>>, vector<1x64x16xbf16>
    %91 = vector.shape_cast %90 : vector<1x64x16xbf16> to vector<64x16xbf16>
    %cst_80 = arith.constant dense<0.000000e+00> : vector<64x8xf32>
    %92 = tpu.matmul %91, %88, %cst_80 {dimension_numbers = #tpu.dot_dimension_numbers<[1], [0], [0], [1], [0, 0, 1, 1], [], []>} : vector<64x16xbf16>, vector<16x8xbf16>, vector<64x8xf32> -> vector<64x8xf32>
    %93 = arith.truncf %92 : vector<64x8xf32> to vector<64x8xbf16>
    %c0_81 = arith.constant 0 : index
    %c0_82 = arith.constant 0 : index
    %c0_83 = arith.constant 0 : index
    %94 = vector.load %arg8[%c0_81, %c0_82, %c0_83] : memref<9x8x16xbf16, #tpu.memory_space<vmem>>, vector<1x8x16xbf16>
    %95 = vector.shape_cast %94 : vector<1x8x16xbf16> to vector<8x16xbf16>
    %cst_84 = arith.constant dense<0.000000e+00> : vector<64x16xf32>
    %96 = tpu.matmul %93, %95, %cst_84 {dimension_numbers = #tpu.dot_dimension_numbers<[1], [0], [0], [1], [0, 0, 1, 1], [], []>} : vector<64x8xbf16>, vector<8x16xbf16>, vector<64x16xf32> -> vector<64x16xf32>
    %97 = arith.addf %89, %96 : vector<64x16xf32>
    %c1_85 = arith.constant 1 : index
    %c0_86 = arith.constant 0 : index
    %c0_87 = arith.constant 0 : index
    %98 = vector.load %arg7[%c1_85, %c0_86, %c0_87] : memref<9x64x16xbf16, #tpu.memory_space<vmem>>, vector<1x64x16xbf16>
    %99 = vector.shape_cast %98 : vector<1x64x16xbf16> to vector<64x16xbf16>
    %cst_88 = arith.constant dense<0.000000e+00> : vector<64x8xf32>
    %100 = tpu.matmul %99, %88, %cst_88 {dimension_numbers = #tpu.dot_dimension_numbers<[1], [0], [0], [1], [0, 0, 1, 1], [], []>} : vector<64x16xbf16>, vector<16x8xbf16>, vector<64x8xf32> -> vector<64x8xf32>
    %101 = arith.truncf %100 : vector<64x8xf32> to vector<64x8xbf16>
    %c1_89 = arith.constant 1 : index
    %c0_90 = arith.constant 0 : index
    %c0_91 = arith.constant 0 : index
    %102 = vector.load %arg8[%c1_89, %c0_90, %c0_91] : memref<9x8x16xbf16, #tpu.memory_space<vmem>>, vector<1x8x16xbf16>
    %103 = vector.shape_cast %102 : vector<1x8x16xbf16> to vector<8x16xbf16>
    %cst_92 = arith.constant dense<0.000000e+00> : vector<64x16xf32>
    %104 = tpu.matmul %101, %103, %cst_92 {dimension_numbers = #tpu.dot_dimension_numbers<[1], [0], [0], [1], [0, 0, 1, 1], [], []>} : vector<64x8xbf16>, vector<8x16xbf16>, vector<64x16xf32> -> vector<64x16xf32>
    %105 = arith.addf %97, %104 : vector<64x16xf32>
    %c2_93 = arith.constant 2 : index
    %c0_94 = arith.constant 0 : index
    %c0_95 = arith.constant 0 : index
    %106 = vector.load %arg7[%c2_93, %c0_94, %c0_95] : memref<9x64x16xbf16, #tpu.memory_space<vmem>>, vector<1x64x16xbf16>
    %107 = vector.shape_cast %106 : vector<1x64x16xbf16> to vector<64x16xbf16>
    %cst_96 = arith.constant dense<0.000000e+00> : vector<64x8xf32>
    %108 = tpu.matmul %107, %88, %cst_96 {dimension_numbers = #tpu.dot_dimension_numbers<[1], [0], [0], [1], [0, 0, 1, 1], [], []>} : vector<64x16xbf16>, vector<16x8xbf16>, vector<64x8xf32> -> vector<64x8xf32>
    %109 = arith.truncf %108 : vector<64x8xf32> to vector<64x8xbf16>
    %c2_97 = arith.constant 2 : index
    %c0_98 = arith.constant 0 : index
    %c0_99 = arith.constant 0 : index
    %110 = vector.load %arg8[%c2_97, %c0_98, %c0_99] : memref<9x8x16xbf16, #tpu.memory_space<vmem>>, vector<1x8x16xbf16>
    %111 = vector.shape_cast %110 : vector<1x8x16xbf16> to vector<8x16xbf16>
    %cst_100 = arith.constant dense<0.000000e+00> : vector<64x16xf32>
    %112 = tpu.matmul %109, %111, %cst_100 {dimension_numbers = #tpu.dot_dimension_numbers<[1], [0], [0], [1], [0, 0, 1, 1], [], []>} : vector<64x8xbf16>, vector<8x16xbf16>, vector<64x16xf32> -> vector<64x16xf32>
    %113 = arith.addf %105, %112 : vector<64x16xf32>
    %c3_101 = arith.constant 3 : index
    %c0_102 = arith.constant 0 : index
    %c0_103 = arith.constant 0 : index
    %114 = vector.load %arg7[%c3_101, %c0_102, %c0_103] : memref<9x64x16xbf16, #tpu.memory_space<vmem>>, vector<1x64x16xbf16>
    %115 = vector.shape_cast %114 : vector<1x64x16xbf16> to vector<64x16xbf16>
    %cst_104 = arith.constant dense<0.000000e+00> : vector<64x8xf32>
    %116 = tpu.matmul %115, %88, %cst_104 {dimension_numbers = #tpu.dot_dimension_numbers<[1], [0], [0], [1], [0, 0, 1, 1], [], []>} : vector<64x16xbf16>, vector<16x8xbf16>, vector<64x8xf32> -> vector<64x8xf32>
    %117 = arith.truncf %116 : vector<64x8xf32> to vector<64x8xbf16>
    %c3_105 = arith.constant 3 : index
    %c0_106 = arith.constant 0 : index
    %c0_107 = arith.constant 0 : index
    %118 = vector.load %arg8[%c3_105, %c0_106, %c0_107] : memref<9x8x16xbf16, #tpu.memory_space<vmem>>, vector<1x8x16xbf16>
    %119 = vector.shape_cast %118 : vector<1x8x16xbf16> to vector<8x16xbf16>
    %cst_108 = arith.constant dense<0.000000e+00> : vector<64x16xf32>
    %120 = tpu.matmul %117, %119, %cst_108 {dimension_numbers = #tpu.dot_dimension_numbers<[1], [0], [0], [1], [0, 0, 1, 1], [], []>} : vector<64x8xbf16>, vector<8x16xbf16>, vector<64x16xf32> -> vector<64x16xf32>
    %121 = arith.addf %113, %120 : vector<64x16xf32>
    %c4_109 = arith.constant 4 : index
    %c0_110 = arith.constant 0 : index
    %c0_111 = arith.constant 0 : index
    %122 = vector.load %arg7[%c4_109, %c0_110, %c0_111] : memref<9x64x16xbf16, #tpu.memory_space<vmem>>, vector<1x64x16xbf16>
    %123 = vector.shape_cast %122 : vector<1x64x16xbf16> to vector<64x16xbf16>
    %cst_112 = arith.constant dense<0.000000e+00> : vector<64x8xf32>
    %124 = tpu.matmul %123, %88, %cst_112 {dimension_numbers = #tpu.dot_dimension_numbers<[1], [0], [0], [1], [0, 0, 1, 1], [], []>} : vector<64x16xbf16>, vector<16x8xbf16>, vector<64x8xf32> -> vector<64x8xf32>
    %125 = arith.truncf %124 : vector<64x8xf32> to vector<64x8xbf16>
    %c4_113 = arith.constant 4 : index
    %c0_114 = arith.constant 0 : index
    %c0_115 = arith.constant 0 : index
    %126 = vector.load %arg8[%c4_113, %c0_114, %c0_115] : memref<9x8x16xbf16, #tpu.memory_space<vmem>>, vector<1x8x16xbf16>
    %127 = vector.shape_cast %126 : vector<1x8x16xbf16> to vector<8x16xbf16>
    %cst_116 = arith.constant dense<0.000000e+00> : vector<64x16xf32>
    %128 = tpu.matmul %125, %127, %cst_116 {dimension_numbers = #tpu.dot_dimension_numbers<[1], [0], [0], [1], [0, 0, 1, 1], [], []>} : vector<64x8xbf16>, vector<8x16xbf16>, vector<64x16xf32> -> vector<64x16xf32>
    %129 = arith.addf %121, %128 : vector<64x16xf32>
    %c5_117 = arith.constant 5 : index
    %c0_118 = arith.constant 0 : index
    %c0_119 = arith.constant 0 : index
    %130 = vector.load %arg7[%c5_117, %c0_118, %c0_119] : memref<9x64x16xbf16, #tpu.memory_space<vmem>>, vector<1x64x16xbf16>
    %131 = vector.shape_cast %130 : vector<1x64x16xbf16> to vector<64x16xbf16>
    %cst_120 = arith.constant dense<0.000000e+00> : vector<64x8xf32>
    %132 = tpu.matmul %131, %88, %cst_120 {dimension_numbers = #tpu.dot_dimension_numbers<[1], [0], [0], [1], [0, 0, 1, 1], [], []>} : vector<64x16xbf16>, vector<16x8xbf16>, vector<64x8xf32> -> vector<64x8xf32>
    %133 = arith.truncf %132 : vector<64x8xf32> to vector<64x8xbf16>
    %c5_121 = arith.constant 5 : index
    %c0_122 = arith.constant 0 : index
    %c0_123 = arith.constant 0 : index
    %134 = vector.load %arg8[%c5_121, %c0_122, %c0_123] : memref<9x8x16xbf16, #tpu.memory_space<vmem>>, vector<1x8x16xbf16>
    %135 = vector.shape_cast %134 : vector<1x8x16xbf16> to vector<8x16xbf16>
    %cst_124 = arith.constant dense<0.000000e+00> : vector<64x16xf32>
    %136 = tpu.matmul %133, %135, %cst_124 {dimension_numbers = #tpu.dot_dimension_numbers<[1], [0], [0], [1], [0, 0, 1, 1], [], []>} : vector<64x8xbf16>, vector<8x16xbf16>, vector<64x16xf32> -> vector<64x16xf32>
    %137 = arith.addf %129, %136 : vector<64x16xf32>
    %c6_125 = arith.constant 6 : index
    %c0_126 = arith.constant 0 : index
    %c0_127 = arith.constant 0 : index
    %138 = vector.load %arg7[%c6_125, %c0_126, %c0_127] : memref<9x64x16xbf16, #tpu.memory_space<vmem>>, vector<1x64x16xbf16>
    %139 = vector.shape_cast %138 : vector<1x64x16xbf16> to vector<64x16xbf16>
    %cst_128 = arith.constant dense<0.000000e+00> : vector<64x8xf32>
    %140 = tpu.matmul %139, %88, %cst_128 {dimension_numbers = #tpu.dot_dimension_numbers<[1], [0], [0], [1], [0, 0, 1, 1], [], []>} : vector<64x16xbf16>, vector<16x8xbf16>, vector<64x8xf32> -> vector<64x8xf32>
    %141 = arith.truncf %140 : vector<64x8xf32> to vector<64x8xbf16>
    %c6_129 = arith.constant 6 : index
    %c0_130 = arith.constant 0 : index
    %c0_131 = arith.constant 0 : index
    %142 = vector.load %arg8[%c6_129, %c0_130, %c0_131] : memref<9x8x16xbf16, #tpu.memory_space<vmem>>, vector<1x8x16xbf16>
    %143 = vector.shape_cast %142 : vector<1x8x16xbf16> to vector<8x16xbf16>
    %cst_132 = arith.constant dense<0.000000e+00> : vector<64x16xf32>
    %144 = tpu.matmul %141, %143, %cst_132 {dimension_numbers = #tpu.dot_dimension_numbers<[1], [0], [0], [1], [0, 0, 1, 1], [], []>} : vector<64x8xbf16>, vector<8x16xbf16>, vector<64x16xf32> -> vector<64x16xf32>
    %145 = arith.addf %137, %144 : vector<64x16xf32>
    %c7_133 = arith.constant 7 : index
    %c0_134 = arith.constant 0 : index
    %c0_135 = arith.constant 0 : index
    %146 = vector.load %arg7[%c7_133, %c0_134, %c0_135] : memref<9x64x16xbf16, #tpu.memory_space<vmem>>, vector<1x64x16xbf16>
    %147 = vector.shape_cast %146 : vector<1x64x16xbf16> to vector<64x16xbf16>
    %cst_136 = arith.constant dense<0.000000e+00> : vector<64x8xf32>
    %148 = tpu.matmul %147, %88, %cst_136 {dimension_numbers = #tpu.dot_dimension_numbers<[1], [0], [0], [1], [0, 0, 1, 1], [], []>} : vector<64x16xbf16>, vector<16x8xbf16>, vector<64x8xf32> -> vector<64x8xf32>
    %149 = arith.truncf %148 : vector<64x8xf32> to vector<64x8xbf16>
    %c7_137 = arith.constant 7 : index
    %c0_138 = arith.constant 0 : index
    %c0_139 = arith.constant 0 : index
    %150 = vector.load %arg8[%c7_137, %c0_138, %c0_139] : memref<9x8x16xbf16, #tpu.memory_space<vmem>>, vector<1x8x16xbf16>
    %151 = vector.shape_cast %150 : vector<1x8x16xbf16> to vector<8x16xbf16>
    %cst_140 = arith.constant dense<0.000000e+00> : vector<64x16xf32>
    %152 = tpu.matmul %149, %151, %cst_140 {dimension_numbers = #tpu.dot_dimension_numbers<[1], [0], [0], [1], [0, 0, 1, 1], [], []>} : vector<64x8xbf16>, vector<8x16xbf16>, vector<64x16xf32> -> vector<64x16xf32>
    %153 = arith.addf %145, %152 : vector<64x16xf32>
    %c8_141 = arith.constant 8 : index
    %c0_142 = arith.constant 0 : index
    %c0_143 = arith.constant 0 : index
    %154 = vector.load %arg7[%c8_141, %c0_142, %c0_143] : memref<9x64x16xbf16, #tpu.memory_space<vmem>>, vector<1x64x16xbf16>
    %155 = vector.shape_cast %154 : vector<1x64x16xbf16> to vector<64x16xbf16>
    %cst_144 = arith.constant dense<0.000000e+00> : vector<64x8xf32>
    %156 = tpu.matmul %155, %88, %cst_144 {dimension_numbers = #tpu.dot_dimension_numbers<[1], [0], [0], [1], [0, 0, 1, 1], [], []>} : vector<64x16xbf16>, vector<16x8xbf16>, vector<64x8xf32> -> vector<64x8xf32>
    %157 = arith.truncf %156 : vector<64x8xf32> to vector<64x8xbf16>
    %c8_145 = arith.constant 8 : index
    %c0_146 = arith.constant 0 : index
    %c0_147 = arith.constant 0 : index
    %158 = vector.load %arg8[%c8_145, %c0_146, %c0_147] : memref<9x8x16xbf16, #tpu.memory_space<vmem>>, vector<1x8x16xbf16>
    %159 = vector.shape_cast %158 : vector<1x8x16xbf16> to vector<8x16xbf16>
    %cst_148 = arith.constant dense<0.000000e+00> : vector<64x16xf32>
    %160 = tpu.matmul %157, %159, %cst_148 {dimension_numbers = #tpu.dot_dimension_numbers<[1], [0], [0], [1], [0, 0, 1, 1], [], []>} : vector<64x8xbf16>, vector<8x16xbf16>, vector<64x16xf32> -> vector<64x16xf32>
    %161 = arith.addf %153, %160 : vector<64x16xf32>
    %c0_149 = arith.constant 0 : index
    %c0_150 = arith.constant 0 : index
    %162 = vector.load %arg9[%c0_149, %c0_150] : memref<1x16xf32, #tpu.memory_space<vmem>>, vector<1x16xf32>
    %163 = vector.broadcast %162 : vector<1x16xf32> to vector<64x16xf32>
    %164 = arith.addf %161, %163 : vector<64x16xf32>
    %cst_151 = arith.constant 0.000000e+00 : f32
    %165 = vector.broadcast %cst_151 : f32 to vector<64x16xf32>
    %166 = arith.maximumf %164, %165 : vector<64x16xf32>
    %167 = arith.truncf %166 : vector<64x16xf32> to vector<64x16xbf16>
    %cst_152 = arith.constant 0.000000e+00 : f32
    %168 = vector.broadcast %cst_152 : f32 to vector<64x16xf32>
    %c0_153 = arith.constant 0 : index
    %c0_154 = arith.constant 0 : index
    %c0_155 = arith.constant 0 : index
    %169 = vector.load %arg10[%c0_153, %c0_154, %c0_155] : memref<4x64x64xbf16, #tpu.memory_space<vmem>>, vector<1x64x64xbf16>
    %170 = vector.shape_cast %169 : vector<1x64x64xbf16> to vector<64x64xbf16>
    %cst_156 = arith.constant dense<0.000000e+00> : vector<64x16xf32>
    %171 = tpu.matmul %170, %167, %cst_156 {dimension_numbers = #tpu.dot_dimension_numbers<[1], [0], [0], [1], [0, 0, 1, 1], [], []>} : vector<64x64xbf16>, vector<64x16xbf16>, vector<64x16xf32> -> vector<64x16xf32>
    %172 = arith.truncf %171 : vector<64x16xf32> to vector<64x16xbf16>
    %c0_157 = arith.constant 0 : index
    %c0_158 = arith.constant 0 : index
    %c0_159 = arith.constant 0 : index
    %173 = vector.load %arg11[%c0_157, %c0_158, %c0_159] : memref<4x16x16xbf16, #tpu.memory_space<vmem>>, vector<1x16x16xbf16>
    %174 = vector.shape_cast %173 : vector<1x16x16xbf16> to vector<16x16xbf16>
    %cst_160 = arith.constant dense<0.000000e+00> : vector<64x16xf32>
    %175 = tpu.matmul %172, %174, %cst_160 {dimension_numbers = #tpu.dot_dimension_numbers<[1], [0], [0], [1], [0, 0, 1, 1], [], []>} : vector<64x16xbf16>, vector<16x16xbf16>, vector<64x16xf32> -> vector<64x16xf32>
    %176 = arith.addf %168, %175 : vector<64x16xf32>
    %c1_161 = arith.constant 1 : index
    %c0_162 = arith.constant 0 : index
    %c0_163 = arith.constant 0 : index
    %177 = vector.load %arg10[%c1_161, %c0_162, %c0_163] : memref<4x64x64xbf16, #tpu.memory_space<vmem>>, vector<1x64x64xbf16>
    %178 = vector.shape_cast %177 : vector<1x64x64xbf16> to vector<64x64xbf16>
    %cst_164 = arith.constant dense<0.000000e+00> : vector<64x16xf32>
    %179 = tpu.matmul %178, %167, %cst_164 {dimension_numbers = #tpu.dot_dimension_numbers<[1], [0], [0], [1], [0, 0, 1, 1], [], []>} : vector<64x64xbf16>, vector<64x16xbf16>, vector<64x16xf32> -> vector<64x16xf32>
    %180 = arith.truncf %179 : vector<64x16xf32> to vector<64x16xbf16>
    %c1_165 = arith.constant 1 : index
    %c0_166 = arith.constant 0 : index
    %c0_167 = arith.constant 0 : index
    %181 = vector.load %arg11[%c1_165, %c0_166, %c0_167] : memref<4x16x16xbf16, #tpu.memory_space<vmem>>, vector<1x16x16xbf16>
    %182 = vector.shape_cast %181 : vector<1x16x16xbf16> to vector<16x16xbf16>
    %cst_168 = arith.constant dense<0.000000e+00> : vector<64x16xf32>
    %183 = tpu.matmul %180, %182, %cst_168 {dimension_numbers = #tpu.dot_dimension_numbers<[1], [0], [0], [1], [0, 0, 1, 1], [], []>} : vector<64x16xbf16>, vector<16x16xbf16>, vector<64x16xf32> -> vector<64x16xf32>
    %184 = arith.addf %176, %183 : vector<64x16xf32>
    %c2_169 = arith.constant 2 : index
    %c0_170 = arith.constant 0 : index
    %c0_171 = arith.constant 0 : index
    %185 = vector.load %arg10[%c2_169, %c0_170, %c0_171] : memref<4x64x64xbf16, #tpu.memory_space<vmem>>, vector<1x64x64xbf16>
    %186 = vector.shape_cast %185 : vector<1x64x64xbf16> to vector<64x64xbf16>
    %cst_172 = arith.constant dense<0.000000e+00> : vector<64x16xf32>
    %187 = tpu.matmul %186, %167, %cst_172 {dimension_numbers = #tpu.dot_dimension_numbers<[1], [0], [0], [1], [0, 0, 1, 1], [], []>} : vector<64x64xbf16>, vector<64x16xbf16>, vector<64x16xf32> -> vector<64x16xf32>
    %188 = arith.truncf %187 : vector<64x16xf32> to vector<64x16xbf16>
    %c2_173 = arith.constant 2 : index
    %c0_174 = arith.constant 0 : index
    %c0_175 = arith.constant 0 : index
    %189 = vector.load %arg11[%c2_173, %c0_174, %c0_175] : memref<4x16x16xbf16, #tpu.memory_space<vmem>>, vector<1x16x16xbf16>
    %190 = vector.shape_cast %189 : vector<1x16x16xbf16> to vector<16x16xbf16>
    %cst_176 = arith.constant dense<0.000000e+00> : vector<64x16xf32>
    %191 = tpu.matmul %188, %190, %cst_176 {dimension_numbers = #tpu.dot_dimension_numbers<[1], [0], [0], [1], [0, 0, 1, 1], [], []>} : vector<64x16xbf16>, vector<16x16xbf16>, vector<64x16xf32> -> vector<64x16xf32>
    %192 = arith.addf %184, %191 : vector<64x16xf32>
    %c3_177 = arith.constant 3 : index
    %c0_178 = arith.constant 0 : index
    %c0_179 = arith.constant 0 : index
    %193 = vector.load %arg10[%c3_177, %c0_178, %c0_179] : memref<4x64x64xbf16, #tpu.memory_space<vmem>>, vector<1x64x64xbf16>
    %194 = vector.shape_cast %193 : vector<1x64x64xbf16> to vector<64x64xbf16>
    %cst_180 = arith.constant dense<0.000000e+00> : vector<64x16xf32>
    %195 = tpu.matmul %194, %167, %cst_180 {dimension_numbers = #tpu.dot_dimension_numbers<[1], [0], [0], [1], [0, 0, 1, 1], [], []>} : vector<64x64xbf16>, vector<64x16xbf16>, vector<64x16xf32> -> vector<64x16xf32>
    %196 = arith.truncf %195 : vector<64x16xf32> to vector<64x16xbf16>
    %c3_181 = arith.constant 3 : index
    %c0_182 = arith.constant 0 : index
    %c0_183 = arith.constant 0 : index
    %197 = vector.load %arg11[%c3_181, %c0_182, %c0_183] : memref<4x16x16xbf16, #tpu.memory_space<vmem>>, vector<1x16x16xbf16>
    %198 = vector.shape_cast %197 : vector<1x16x16xbf16> to vector<16x16xbf16>
    %cst_184 = arith.constant dense<0.000000e+00> : vector<64x16xf32>
    %199 = tpu.matmul %196, %198, %cst_184 {dimension_numbers = #tpu.dot_dimension_numbers<[1], [0], [0], [1], [0, 0, 1, 1], [], []>} : vector<64x16xbf16>, vector<16x16xbf16>, vector<64x16xf32> -> vector<64x16xf32>
    %200 = arith.addf %192, %199 : vector<64x16xf32>
    %c0_185 = arith.constant 0 : index
    %c0_186 = arith.constant 0 : index
    %201 = vector.load %arg12[%c0_185, %c0_186] : memref<1x16xf32, #tpu.memory_space<vmem>>, vector<1x16xf32>
    %202 = vector.broadcast %201 : vector<1x16xf32> to vector<64x16xf32>
    %203 = arith.addf %200, %202 : vector<64x16xf32>
    %cst_187 = arith.constant 5.000000e-01 : f32
    %204 = vector.broadcast %cst_187 : f32 to vector<64x16xf32>
    %205 = arith.mulf %204, %203 : vector<64x16xf32>
    %206 = math.tanh %205 : vector<64x16xf32>
    %cst_188 = arith.constant 1.000000e+00 : f32
    %207 = vector.broadcast %cst_188 : f32 to vector<64x16xf32>
    %208 = arith.addf %206, %207 : vector<64x16xf32>
    %cst_189 = arith.constant 5.000000e-01 : f32
    %209 = vector.broadcast %cst_189 : f32 to vector<64x16xf32>
    %210 = arith.mulf %209, %208 : vector<64x16xf32>
    %c0_190 = arith.constant 0 : index
    %c0_191 = arith.constant 0 : index
    %211 = vector.load %arg14[%c0_190, %c0_191] : memref<64x16xf32, #tpu.memory_space<vmem>>, vector<64x16xf32>
    tpu.vector_store %arg14[%c0_190, %c0_191], %210 {strides = array<i32>} : memref<64x16xf32, #tpu.memory_space<vmem>>, vector<64x16xf32>,
    return
  }
  func.func @transform_0(%arg0: i32) -> (i32, i32) {
    %c0_i32 = arith.constant 0 : i32
    %c0_i32_0 = arith.constant 0 : i32
    return %arg0, %c0_i32 : i32, i32
  }
  func.func @transform_1(%arg0: i32) -> (i32, i32) {
    %c0_i32 = arith.constant 0 : i32
    %c0_i32_0 = arith.constant 0 : i32
    %c0_i32_1 = arith.constant 0 : i32
    return %c0_i32, %c0_i32_0 : i32, i32
  }
  func.func @transform_2(%arg0: i32) -> (i32, i32) {
    %c0_i32 = arith.constant 0 : i32
    %c0_i32_0 = arith.constant 0 : i32
    %c0_i32_1 = arith.constant 0 : i32
    return %c0_i32, %c0_i32_0 : i32, i32
  }
  func.func @transform_3(%arg0: i32) -> (i32, i32, i32) {
    %c0_i32 = arith.constant 0 : i32
    %c0_i32_0 = arith.constant 0 : i32
    %c0_i32_1 = arith.constant 0 : i32
    %c0_i32_2 = arith.constant 0 : i32
    return %c0_i32, %c0_i32_0, %c0_i32_1 : i32, i32, i32
  }
  func.func @transform_4(%arg0: i32) -> (i32, i32, i32) {
    %c0_i32 = arith.constant 0 : i32
    %c0_i32_0 = arith.constant 0 : i32
    %c0_i32_1 = arith.constant 0 : i32
    %c0_i32_2 = arith.constant 0 : i32
    return %c0_i32, %c0_i32_0, %c0_i32_1 : i32, i32, i32
  }
  func.func @transform_5(%arg0: i32) -> (i32, i32) {
    %c0_i32 = arith.constant 0 : i32
    %c0_i32_0 = arith.constant 0 : i32
    %c0_i32_1 = arith.constant 0 : i32
    return %c0_i32, %c0_i32_0 : i32, i32
  }
  func.func @transform_6(%arg0: i32) -> (i32, i32, i32) {
    %c0_i32 = arith.constant 0 : i32
    %c0_i32_0 = arith.constant 0 : i32
    %c0_i32_1 = arith.constant 0 : i32
    %c0_i32_2 = arith.constant 0 : i32
    return %c0_i32, %c0_i32_0, %c0_i32_1 : i32, i32, i32
  }
  func.func @transform_7(%arg0: i32) -> (i32, i32, i32) {
    %c0_i32 = arith.constant 0 : i32
    %c0_i32_0 = arith.constant 0 : i32
    %c0_i32_1 = arith.constant 0 : i32
    %c0_i32_2 = arith.constant 0 : i32
    return %c0_i32, %c0_i32_0, %c0_i32_1 : i32, i32, i32
  }
  func.func @transform_8(%arg0: i32) -> (i32, i32) {
    %c0_i32 = arith.constant 0 : i32
    %c0_i32_0 = arith.constant 0 : i32
    %c0_i32_1 = arith.constant 0 : i32
    return %c0_i32, %c0_i32_0 : i32, i32
  }
  func.func @transform_9(%arg0: i32) -> (i32, i32, i32) {
    %c0_i32 = arith.constant 0 : i32
    %c0_i32_0 = arith.constant 0 : i32
    %c0_i32_1 = arith.constant 0 : i32
    %c0_i32_2 = arith.constant 0 : i32
    return %c0_i32, %c0_i32_0, %c0_i32_1 : i32, i32, i32
  }
  func.func @transform_10(%arg0: i32) -> (i32, i32, i32) {
    %c0_i32 = arith.constant 0 : i32
    %c0_i32_0 = arith.constant 0 : i32
    %c0_i32_1 = arith.constant 0 : i32
    %c0_i32_2 = arith.constant 0 : i32
    return %c0_i32, %c0_i32_0, %c0_i32_1 : i32, i32, i32
  }
  func.func @transform_11(%arg0: i32) -> (i32, i32) {
    %c0_i32 = arith.constant 0 : i32
    %c0_i32_0 = arith.constant 0 : i32
    %c0_i32_1 = arith.constant 0 : i32
    return %c0_i32, %c0_i32_0 : i32, i32
  }
  func.func @transform_12(%arg0: i32) -> (i32, i32) {
    %c0_i32 = arith.constant 0 : i32
    %c0_i32_0 = arith.constant 0 : i32
    return %arg0, %c0_i32 : i32, i32
  }
  func.func @transform_13(%arg0: i32) -> (i32, i32) {
    %c0_i32 = arith.constant 0 : i32
    %c0_i32_0 = arith.constant 0 : i32
    return %arg0, %c0_i32 : i32, i32
  }
}

</mosaic_0001>

<llo_original>
// kernel: tile.8
$region0: #{tile.8}
  #allocation0 [shape = 's32[1]{0}', space=sflag, size = 0x4, scoped, tag = 'scoped memory for tile.8']
  %s0 = inlined_call_operand.vmem [shape: f32[4], index: 0, kind: input, shape index: {}]
  %s1 = inlined_call_operand.vmem [shape: f32[4,4], index: 1, kind: output, shape index: {}]
  // Predicated region
  $region2: #{tile.8} parent=0 // pred_check
    _
  $region3: #{tile.8} parent=0 // pred_check_branch
    %3 = sbr.rel (0) target = $region5
  $region4: #{tile.8} parent=0 // pred_region
    _
  $region5: #{tile.8} parent=0 // pred_fallthru
    _
  %v4 = vld [vmem:[%s0] ss:$0 sm:$0xff]
  %5 = vst [vmem:[%s1] sm:$0xf] %v4

// kernel: tile.9
$region0: #{tile.9}
  %s0 = inlined_call_operand.vmem [shape: f32[4,4], index: 0, kind: input, shape index: {}]
  %s1 = inlined_call_operand.vmem [shape: f32[1,16], index: 1, kind: output, shape index: {}]
  $region1: #{tile.9} parent=0
    #allocation0 [shape = 'u8[4096]{0}', space=vmem, size = 0x1000, scoped, tag = 'scoped mem for output reshape']
    #allocation1 [shape = 'u8[4096]{0}', space=vmem, size = 0x1000, scoped, tag = 'scoped mem for input reshape']
    %s3 = sshllo.u32 0, 4
    %v4 = vld [vmem:[%s0] sm:%s3]
    %5 = vst [vmem:[#allocation1] sm:%s3] %v4
    %v6 = vld [vmem:[#allocation1] sm:$0x1]
    %vm7 = vcmask 31744
    %8 = vst.msk [vmem:[#allocation0] sm:$0x1] %vm7, %v6
    %s9 = scalar_lea.vmem [#allocation1], 3
    %v10 = vld [vmem:[%s9] sm:$0x1]
    %11 = vrot.lane.b32.xlu0 %v10, 12
    %v12 = vpop.permute.xlu0 %11
    %vm13 = vcmask 130144
    %14 = vst.msk [vmem:[#allocation0] sm:$0x1] %vm13, %v12
    %s15 = scalar_lea.vmem [#allocation1], 2
    %v16 = vld [vmem:[%s15] sm:$0x1]
    %17 = vrot.lane.b32.xlu0 %v16, 8
    %v18 = vpop.permute.xlu0 %17
    %vm19 = vcmask 97344
    %20 = vst.msk [vmem:[#allocation0] sm:$0x1] %vm19, %v18
    %s21 = scalar_lea.vmem [#allocation1], 1
    %v22 = vld [vmem:[%s21] sm:$0x1]
    %23 = vrot.lane.b32.xlu0 %v22, 4
    %v24 = vpop.permute.xlu0 %23
    %vm25 = vcmask 64544
    %26 = vst.msk [vmem:[#allocation0] sm:$0x1] %vm25, %v24
    %s28 = sshllo.u32 0, 1
    %v30 = vld [vmem:[#allocation0] sm:%s28]
    %s31 = sshllo.u32 0, 1
    %32 = vst [vmem:[%s1] sm:%s31] %v30

// kernel: static_autoencoder_forward.1
$region0: #{static_autoencoder_forward.1}
  #allocation0 [shape = 'u32[]', space=smem, size = 0x4, offset = 0x4, fixed_abs, tag = 'smem constant byte address 0x4 - core index']
  #allocation1 [shape = 'u32[144,128]{1,0:T(1,128)}', space=vmem, size = 0x12000, scoped, tag = 'internal scratch']
  %s0 = inlined_call_operand.vmem [shape: bf16[128,128], index: 0, kind: input, shape index: {}]
  %s1 = inlined_call_operand.vmem [shape: bf16[128,16], index: 1, kind: input, shape index: {}]
  %s2 = inlined_call_operand.vmem [shape: f32[1,16], index: 2, kind: input, shape index: {}]
  %s3 = inlined_call_operand.vmem [shape: bf16[9,16,64], index: 3, kind: input, shape index: {}]
  %s4 = inlined_call_operand.vmem [shape: bf16[9,16,8], index: 4, kind: input, shape index: {}]
  %s5 = inlined_call_operand.vmem [shape: f32[1,8], index: 5, kind: input, shape index: {}]
  %s6 = inlined_call_operand.vmem [shape: bf16[9,64,16], index: 6, kind: input, shape index: {}]
  %s7 = inlined_call_operand.vmem [shape: bf16[9,8,16], index: 7, kind: input, shape index: {}]
  %s8 = inlined_call_operand.vmem [shape: f32[1,16], index: 8, kind: input, shape index: {}]
  %s9 = inlined_call_operand.vmem [shape: bf16[4,64,64], index: 9, kind: input, shape index: {}]
  %s10 = inlined_call_operand.vmem [shape: bf16[4,16,16], index: 10, kind: input, shape index: {}]
  %s11 = inlined_call_operand.vmem [shape: f32[1,16], index: 11, kind: input, shape index: {}]
  %s12 = inlined_call_operand.vmem [shape: f32[32,8], index: 12, kind: output, shape index: {0}]
  %s13 = inlined_call_operand.vmem [shape: f32[128,16], index: 13, kind: output, shape index: {1}]
  %14 = xla_tuple %s12, %s13
  %s15 = sld [smem:[#allocation0]]
  $region89: #{static_autoencoder_forward.1} parent=0
    _
  %s17 = ssub.s32 1, %s15
  %s18 = scalar_select 0, %s17, %s15
  loop: start=0, step=1, limit=4
  $region2: #{static_autoencoder_forward.1} parent=0 // loop_pre_header
    _
  $region3: #{static_autoencoder_forward.1} parent=0 // loop_header
    %s20 = sphi 0, %s24
    %p21 = scmp.ge.s32.totalorder %s20, 4
    %s30 = sphi 0, %s32
    %s33 = sphi 0, %s30
    %s34 = sphi 0, %s33
    %s50 = sphi 0, %s34
    %s54 = sphi 0, %s54
    %s56 = sphi 0, %s54
    %s57 = sphi 0, %s56
    %s71 = sphi 0, %s57
    %s75 = sphi 0, %s75
    %s77 = sphi 0, %s75
    %s78 = sphi 0, %s77
    %s92 = sphi 0, %s78
    %s96 = sphi 0, %s96
    %s98 = sphi 0, %s96
    %s99 = sphi 0, %s98
    %s113 = sphi 0, %s99
    %s117 = sphi 0, %s117
    %s119 = sphi 0, %s117
    %s120 = sphi 0, %s119
    %s134 = sphi 0, %s120
    %s138 = sphi 0, %s138
    %s140 = sphi 0, %s138
    %s141 = sphi 0, %s140
    %s155 = sphi 0, %s141
    %s159 = sphi 0, %s159
    %s161 = sphi 0, %s159
    %s162 = sphi 0, %s161
    %s176 = sphi 0, %s162
    %s180 = sphi 0, %s180
    %s182 = sphi 0, %s180
    %s183 = sphi 0, %s182
    %s197 = sphi 0, %s183
    %s201 = sphi 0, %s201
    %s203 = sphi 0, %s201
    %s204 = sphi 0, %s203
    %s218 = sphi 0, %s204
    %s222 = sphi 0, %s222
    %s224 = sphi 0, %s222
    %s225 = sphi 0, %s224
    %s239 = sphi 0, %s225
    %s243 = sphi 0, %s243
    %s245 = sphi 0, %s243
    %s246 = sphi 0, %s245
    %s260 = sphi 0, %s246
    %s264 = sphi 0, %s264
    %s266 = sphi 0, %s264
    %s267 = sphi 0, %s266
    %s281 = sphi 0, %s267
    %s287 = sphi 0, %s289
    %s290 = sphi 0, %s287
    %s291 = sphi 0, %s290
    %s307 = sphi 0, %s291
    %s313 = sphi 0, %s315
    %s316 = sphi 0, %s313
    %s317 = sphi 0, %s316
    %s333 = sphi 0, %s317
  $region4: #{static_autoencoder_forward.1} parent=0 // loop_header_branch
    %23 = sbr.rel (%p21) target = $region8
  $region5: #{static_autoencoder_forward.1} parent=0 // loop_body
    %s25 = ssub.s32 %s20, 1
    %s26 = ssub.s32 %s20, 2
    %s27 = sadd.s32 %s20, 1
    %s28 = ssub.s32 %s20, %s27
    %p29 = scmp.eq.s32.totalorder %s28, 0
    %s31 = sadd.s32 %s30, 1
    %s32 = scalar_select %p29, %s30, %s31
    %p35 = pneg %p29
    %p36 = scmp.eq.s32.totalorder %s20, 1
    %p37 = por %p35, %p36
    %p38 = scmp.ne.s32.totalorder %s30, %s33
    %p39 = scmp.eq.s32.totalorder %s20, 0
    %p40 = por %p38, %p39
    %p41 = scmp.ne.s32.totalorder %s30, %s33
    %p42 = scmp.eq.s32.totalorder %s25, 1
    %p43 = por %p41, %p42
    %p44 = scmp.ne.s32.totalorder %s33, %s34
    %p45 = scmp.eq.s32.totalorder %s25, 0
    %p46 = por %p44, %p45
    %p47 = scmp.ne.s32.totalorder %s33, %s34
    %p48 = scmp.eq.s32.totalorder %s26, 1
    %p49 = por %p47, %p48
    %p51 = scmp.ne.s32.totalorder %s34, %s50
    %p52 = scmp.eq.s32.totalorder %s26, 0
    %p53 = por %p51, %p52
    %s55 = sadd.s32 %s54, 1
    %p58 = scmp.eq.s32.totalorder %s20, 1
    %p59 = scmp.ne.s32.totalorder %s54, %s56
    %p60 = scmp.eq.s32.totalorder %s20, 0
    %p61 = por %p59, %p60
    %p62 = scmp.ne.s32.totalorder %s54, %s56
    %p63 = scmp.eq.s32.totalorder %s25, 1
    %p64 = por %p62, %p63
    %p65 = scmp.ne.s32.totalorder %s56, %s57
    %p66 = scmp.eq.s32.totalorder %s25, 0
    %p67 = por %p65, %p66
    %p68 = scmp.ne.s32.totalorder %s56, %s57
    %p69 = scmp.eq.s32.totalorder %s26, 1
    %p70 = por %p68, %p69
    %p72 = scmp.ne.s32.totalorder %s57, %s71
    %p73 = scmp.eq.s32.totalorder %s26, 0
    %p74 = por %p72, %p73
    %s76 = sadd.s32 %s75, 1
    %p79 = scmp.eq.s32.totalorder %s20, 1
    %p80 = scmp.ne.s32.totalorder %s75, %s77
    %p81 = scmp.eq.s32.totalorder %s20, 0
    %p82 = por %p80, %p81
    %p83 = scmp.ne.s32.totalorder %s75, %s77
    %p84 = scmp.eq.s32.totalorder %s25, 1
    %p85 = por %p83, %p84
    %p86 = scmp.ne.s32.totalorder %s77, %s78
    %p87 = scmp.eq.s32.totalorder %s25, 0
    %p88 = por %p86, %p87
    %p89 = scmp.ne.s32.totalorder %s77, %s78
    %p90 = scmp.eq.s32.totalorder %s26, 1
    %p91 = por %p89, %p90
    %p93 = scmp.ne.s32.totalorder %s78, %s92
    %p94 = scmp.eq.s32.totalorder %s26, 0
    %p95 = por %p93, %p94
    %s97 = sadd.s32 %s96, 1
    %p100 = scmp.eq.s32.totalorder %s20, 1
    %p101 = scmp.ne.s32.totalorder %s96, %s98
    %p102 = scmp.eq.s32.totalorder %s20, 0
    %p103 = por %p101, %p102
    %p104 = scmp.ne.s32.totalorder %s96, %s98
    %p105 = scmp.eq.s32.totalorder %s25, 1
    %p106 = por %p104, %p105
    %p107 = scmp.ne.s32.totalorder %s98, %s99
    %p108 = scmp.eq.s32.totalorder %s25, 0
    %p109 = por %p107, %p108
    %p110 = scmp.ne.s32.totalorder %s98, %s99
    %p111 = scmp.eq.s32.totalorder %s26, 1
    %p112 = por %p110, %p111
    %p114 = scmp.ne.s32.totalorder %s99, %s113
    %p115 = scmp.eq.s32.totalorder %s26, 0
    %p116 = por %p114, %p115
    %s118 = sadd.s32 %s117, 1
    %p121 = scmp.eq.s32.totalorder %s20, 1
    %p122 = scmp.ne.s32.totalorder %s117, %s119
    %p123 = scmp.eq.s32.totalorder %s20, 0
    %p124 = por %p122, %p123
    %p125 = scmp.ne.s32.totalorder %s117, %s119
    %p126 = scmp.eq.s32.totalorder %s25, 1
    %p127 = por %p125, %p126
    %p128 = scmp.ne.s32.totalorder %s119, %s120
    %p129 = scmp.eq.s32.totalorder %s25, 0
    %p130 = por %p128, %p129
    %p131 = scmp.ne.s32.totalorder %s119, %s120
    %p132 = scmp.eq.s32.totalorder %s26, 1
    %p133 = por %p131, %p132
    %p135 = scmp.ne.s32.totalorder %s120, %s134
    %p136 = scmp.eq.s32.totalorder %s26, 0
    %p137 = por %p135, %p136
    %s139 = sadd.s32 %s138, 1
    %p142 = scmp.eq.s32.totalorder %s20, 1
    %p143 = scmp.ne.s32.totalorder %s138, %s140
    %p144 = scmp.eq.s32.totalorder %s20, 0
    %p145 = por %p143, %p144
    %p146 = scmp.ne.s32.totalorder %s138, %s140
    %p147 = scmp.eq.s32.totalorder %s25, 1
    %p148 = por %p146, %p147
    %p149 = scmp.ne.s32.totalorder %s140, %s141
    %p150 = scmp.eq.s32.totalorder %s25, 0
    %p151 = por %p149, %p150
    %p152 = scmp.ne.s32.totalorder %s140, %s141
    %p153 = scmp.eq.s32.totalorder %s26, 1
    %p154 = por %p152, %p153
    %p156 = scmp.ne.s32.totalorder %s141, %s155
    %p157 = scmp.eq.s32.totalorder %s26, 0
    %p158 = por %p156, %p157
    %s160 = sadd.s32 %s159, 1
    %p163 = scmp.eq.s32.totalorder %s20, 1
    %p164 = scmp.ne.s32.totalorder %s159, %s161
    %p165 = scmp.eq.s32.totalorder %s20, 0
    %p166 = por %p164, %p165
    %p167 = scmp.ne.s32.totalorder %s159, %s161
    %p168 = scmp.eq.s32.totalorder %s25, 1
    %p169 = por %p167, %p168
    %p170 = scmp.ne.s32.totalorder %s161, %s162
    %p171 = scmp.eq.s32.totalorder %s25, 0
    %p172 = por %p170, %p171
    %p173 = scmp.ne.s32.totalorder %s161, %s162
    %p174 = scmp.eq.s32.totalorder %s26, 1
    %p175 = por %p173, %p174
    %p177 = scmp.ne.s32.totalorder %s162, %s176
    %p178 = scmp.eq.s32.totalorder %s26, 0
    %p179 = por %p177, %p178
    %s181 = sadd.s32 %s180, 1
    %p184 = scmp.eq.s32.totalorder %s20, 1
    %p185 = scmp.ne.s32.totalorder %s180, %s182
    %p186 = scmp.eq.s32.totalorder %s20, 0
    %p187 = por %p185, %p186
    %p188 = scmp.ne.s32.totalorder %s180, %s182
    %p189 = scmp.eq.s32.totalorder %s25, 1
    %p190 = por %p188, %p189
    %p191 = scmp.ne.s32.totalorder %s182, %s183
    %p192 = scmp.eq.s32.totalorder %s25, 0
    %p193 = por %p191, %p192
    %p194 = scmp.ne.s32.totalorder %s182, %s183
    %p195 = scmp.eq.s32.totalorder %s26, 1
    %p196 = por %p194, %p195
    %p198 = scmp.ne.s32.totalorder %s183, %s197
    %p199 = scmp.eq.s32.totalorder %s26, 0
    %p200 = por %p198, %p199
    %s202 = sadd.s32 %s201, 1
    %p205 = scmp.eq.s32.totalorder %s20, 1
    %p206 = scmp.ne.s32.totalorder %s201, %s203
    %p207 = scmp.eq.s32.totalorder %s20, 0
    %p208 = por %p206, %p207
    %p209 = scmp.ne.s32.totalorder %s201, %s203
    %p210 = scmp.eq.s32.totalorder %s25, 1
    %p211 = por %p209, %p210
    %p212 = scmp.ne.s32.totalorder %s203, %s204
    %p213 = scmp.eq.s32.totalorder %s25, 0
    %p214 = por %p212, %p213
    %p215 = scmp.ne.s32.totalorder %s203, %s204
    %p216 = scmp.eq.s32.totalorder %s26, 1
    %p217 = por %p215, %p216
    %p219 = scmp.ne.s32.totalorder %s204, %s218
    %p220 = scmp.eq.s32.totalorder %s26, 0
    %p221 = por %p219, %p220
    %s223 = sadd.s32 %s222, 1
    %p226 = scmp.eq.s32.totalorder %s20, 1
    %p227 = scmp.ne.s32.totalorder %s222, %s224
    %p228 = scmp.eq.s32.totalorder %s20, 0
    %p229 = por %p227, %p228
    %p230 = scmp.ne.s32.totalorder %s222, %s224
    %p231 = scmp.eq.s32.totalorder %s25, 1
    %p232 = por %p230, %p231
    %p233 = scmp.ne.s32.totalorder %s224, %s225
    %p234 = scmp.eq.s32.totalorder %s25, 0
    %p235 = por %p233, %p234
    %p236 = scmp.ne.s32.totalorder %s224, %s225
    %p237 = scmp.eq.s32.totalorder %s26, 1
    %p238 = por %p236, %p237
    %p240 = scmp.ne.s32.totalorder %s225, %s239
    %p241 = scmp.eq.s32.totalorder %s26, 0
    %p242 = por %p240, %p241
    %s244 = sadd.s32 %s243, 1
    %p247 = scmp.eq.s32.totalorder %s20, 1
    %p248 = scmp.ne.s32.totalorder %s243, %s245
    %p249 = scmp.eq.s32.totalorder %s20, 0
    %p250 = por %p248, %p249
    %p251 = scmp.ne.s32.totalorder %s243, %s245
    %p252 = scmp.eq.s32.totalorder %s25, 1
    %p253 = por %p251, %p252
    %p254 = scmp.ne.s32.totalorder %s245, %s246
    %p255 = scmp.eq.s32.totalorder %s25, 0
    %p256 = por %p254, %p255
    %p257 = scmp.ne.s32.totalorder %s245, %s246
    %p258 = scmp.eq.s32.totalorder %s26, 1
    %p259 = por %p257, %p258
    %p261 = scmp.ne.s32.totalorder %s246, %s260
    %p262 = scmp.eq.s32.totalorder %s26, 0
    %p263 = por %p261, %p262
    %s265 = sadd.s32 %s264, 1
    %p268 = scmp.eq.s32.totalorder %s20, 1
    %p269 = scmp.ne.s32.totalorder %s264, %s266
    %p270 = scmp.eq.s32.totalorder %s20, 0
    %p271 = por %p269, %p270
    %p272 = scmp.ne.s32.totalorder %s264, %s266
    %p273 = scmp.eq.s32.totalorder %s25, 1
    %p274 = por %p272, %p273
    %p275 = scmp.ne.s32.totalorder %s266, %s267
    %p276 = scmp.eq.s32.totalorder %s25, 0
    %p277 = por %p275, %p276
    %p278 = scmp.ne.s32.totalorder %s266, %s267
    %p279 = scmp.eq.s32.totalorder %s26, 1
    %p280 = por %p278, %p279
    %p282 = scmp.ne.s32.totalorder %s267, %s281
    %p283 = scmp.eq.s32.totalorder %s26, 0
    %p284 = por %p282, %p283
    %s285 = ssub.s32 %s20, %s27
    %p286 = scmp.eq.s32.totalorder %s285, 0
    %s288 = sadd.s32 %s287, 1
    %s289 = scalar_select %p286, %s287, %s288
    %p292 = pneg %p286
    %p293 = scmp.eq.s32.totalorder %s20, 1
    %p294 = por %p292, %p293
    %p295 = scmp.ne.s32.totalorder %s287, %s290
    %p296 = scmp.eq.s32.totalorder %s20, 0
    %p297 = por %p295, %p296
    %p298 = scmp.ne.s32.totalorder %s287, %s290
    %p299 = scmp.eq.s32.totalorder %s25, 1
    %p300 = por %p298, %p299
    %p301 = scmp.ne.s32.totalorder %s290, %s291
    %p302 = scmp.eq.s32.totalorder %s25, 0
    %p303 = por %p301, %p302
    %p304 = scmp.ne.s32.totalorder %s290, %s291
    %p305 = scmp.eq.s32.totalorder %s26, 1
    %p306 = por %p304, %p305
    %p308 = scmp.ne.s32.totalorder %s291, %s307
    %p309 = scmp.eq.s32.totalorder %s26, 0
    %p310 = por %p308, %p309
    %s311 = ssub.s32 %s20, %s27
    %p312 = scmp.eq.s32.totalorder %s311, 0
    %s314 = sadd.s32 %s313, 1
    %s315 = scalar_select %p312, %s313, %s314
    %p318 = pneg %p312
    %p319 = scmp.eq.s32.totalorder %s20, 1
    %p320 = por %p318, %p319
    %p321 = scmp.ne.s32.totalorder %s313, %s316
    %p322 = scmp.eq.s32.totalorder %s20, 0
    %p323 = por %p321, %p322
    %p324 = scmp.ne.s32.totalorder %s313, %s316
    %p325 = scmp.eq.s32.totalorder %s25, 1
    %p326 = por %p324, %p325
    %p327 = scmp.ne.s32.totalorder %s316, %s317
    %p328 = scmp.eq.s32.totalorder %s25, 0
    %p329 = por %p327, %p328
    %p330 = scmp.ne.s32.totalorder %s316, %s317
    %p331 = scmp.eq.s32.totalorder %s26, 1
    %p332 = por %p330, %p331
    %p334 = scmp.ne.s32.totalorder %s317, %s333
    %p335 = scmp.eq.s32.totalorder %s26, 0
    %p336 = por %p334, %p335
    %p337 = scmp.le.s32.totalorder 1, %s20
    %p338 = scmp.lt.s32.totalorder %s20, 3
    %p339 = pnand %p337, %p338
    %p340 = pneg %p339
    // Predicated region
    $region9: #{static_autoencoder_forward.1} parent=5 // pred_check
      _
    $region10: #{static_autoencoder_forward.1} parent=5 // pred_check_branch
      %342 = sbr.rel (%p339) target = $region12
    $region11: #{static_autoencoder_forward.1} parent=5 // pred_region
      %s343 = ssub.s32 %s20, 1
      // Predicated region
      $region13: #{static_autoencoder_forward.1} parent=11 // pred_check
        %p344 = pneg %p67
      $region14: #{static_autoencoder_forward.1} parent=11 // pred_check_branch
        %346 = sbr.rel (%p344) target = $region16
      $region15: #{static_autoencoder_forward.1} parent=11 // pred_region
        _
      $region16: #{static_autoencoder_forward.1} parent=11 // pred_fallthru
        _
      // Predicated region
      $region17: #{static_autoencoder_forward.1} parent=11 // pred_check
        %p347 = pneg %p88
      $region18: #{static_autoencoder_forward.1} parent=11 // pred_check_branch
        %349 = sbr.rel (%p347) target = $region20
      $region19: #{static_autoencoder_forward.1} parent=11 // pred_region
        _
      $region20: #{static_autoencoder_forward.1} parent=11 // pred_fallthru
        _
      // Predicated region
      $region21: #{static_autoencoder_forward.1} parent=11 // pred_check
        %p350 = pneg %p109
      $region22: #{static_autoencoder_forward.1} parent=11 // pred_check_branch
        %352 = sbr.rel (%p350) target = $region24
      $region23: #{static_autoencoder_forward.1} parent=11 // pred_region
        _
      $region24: #{static_autoencoder_forward.1} parent=11 // pred_fallthru
        _
      // Predicated region
      $region25: #{static_autoencoder_forward.1} parent=11 // pred_check
        %p353 = pneg %p130
      $region26: #{static_autoencoder_forward.1} parent=11 // pred_check_branch
        %355 = sbr.rel (%p353) target = $region28
      $region27: #{static_autoencoder_forward.1} parent=11 // pred_region
        _
      $region28: #{static_autoencoder_forward.1} parent=11 // pred_fallthru
        _
      // Predicated region
      $region29: #{static_autoencoder_forward.1} parent=11 // pred_check
        %p356 = pneg %p151
      $region30: #{static_autoencoder_forward.1} parent=11 // pred_check_branch
        %358 = sbr.rel (%p356) target = $region32
      $region31: #{static_autoencoder_forward.1} parent=11 // pred_region
        _
      $region32: #{static_autoencoder_forward.1} parent=11 // pred_fallthru
        _
      // Predicated region
      $region33: #{static_autoencoder_forward.1} parent=11 // pred_check
        %p359 = pneg %p172
      $region34: #{static_autoencoder_forward.1} parent=11 // pred_check_branch
        %361 = sbr.rel (%p359) target = $region36
      $region35: #{static_autoencoder_forward.1} parent=11 // pred_region
        _
      $region36: #{static_autoencoder_forward.1} parent=11 // pred_fallthru
        _
      // Predicated region
      $region37: #{static_autoencoder_forward.1} parent=11 // pred_check
        %p362 = pneg %p193
      $region38: #{static_autoencoder_forward.1} parent=11 // pred_check_branch
        %364 = sbr.rel (%p362) target = $region40
      $region39: #{static_autoencoder_forward.1} parent=11 // pred_region
        _
      $region40: #{static_autoencoder_forward.1} parent=11 // pred_fallthru
        _
      // Predicated region
      $region41: #{static_autoencoder_forward.1} parent=11 // pred_check
        %p365 = pneg %p214
      $region42: #{static_autoencoder_forward.1} parent=11 // pred_check_branch
        %367 = sbr.rel (%p365) target = $region44
      $region43: #{static_autoencoder_forward.1} parent=11 // pred_region
        _
      $region44: #{static_autoencoder_forward.1} parent=11 // pred_fallthru
        _
      // Predicated region
      $region45: #{static_autoencoder_forward.1} parent=11 // pred_check
        %p368 = pneg %p235
      $region46: #{static_autoencoder_forward.1} parent=11 // pred_check_branch
        %370 = sbr.rel (%p368) target = $region48
      $region47: #{static_autoencoder_forward.1} parent=11 // pred_region
        _
      $region48: #{static_autoencoder_forward.1} parent=11 // pred_fallthru
        _
      // Predicated region
      $region49: #{static_autoencoder_forward.1} parent=11 // pred_check
        %p371 = pneg %p256
      $region50: #{static_autoencoder_forward.1} parent=11 // pred_check_branch
        %373 = sbr.rel (%p371) target = $region52
      $region51: #{static_autoencoder_forward.1} parent=11 // pred_region
        _
      $region52: #{static_autoencoder_forward.1} parent=11 // pred_fallthru
        _
      // Predicated region
      $region53: #{static_autoencoder_forward.1} parent=11 // pred_check
        %p374 = pneg %p277
      $region54: #{static_autoencoder_forward.1} parent=11 // pred_check_branch
        %376 = sbr.rel (%p374) target = $region56
      $region55: #{static_autoencoder_forward.1} parent=11 // pred_region
        _
      $region56: #{static_autoencoder_forward.1} parent=11 // pred_fallthru
        _
    $region12: #{static_autoencoder_forward.1} parent=5 // pred_fallthru
      _
    %p377 = scmp.lt.s32.totalorder %s20, 2
    // Predicated region
    $region57: #{static_autoencoder_forward.1} parent=5 // pred_check
      %p378 = pneg %p377
    $region58: #{static_autoencoder_forward.1} parent=5 // pred_check_branch
      %380 = sbr.rel (%p378) target = $region60
    $region59: #{static_autoencoder_forward.1} parent=5 // pred_region
      // Predicated region
      $region61: #{static_autoencoder_forward.1} parent=59 // pred_check
        %p381 = pneg %p40
      $region62: #{static_autoencoder_forward.1} parent=59 // pred_check_branch
        %383 = sbr.rel (%p381) target = $region64
      $region63: #{static_autoencoder_forward.1} parent=59 // pred_region
        %s384 = smul.u32 8, %s20
        %p385 = scmp.lt.s32.totalorder %s384, 15
        %s386 = scalar_select %p385, %s384, 15
        %s387 = smul.addr %s386, 4
        %s388 = scalar_lea.vmem %s0, %s387
        %s389 = smul.u32 8, %s20
      $region64: #{static_autoencoder_forward.1} parent=59 // pred_fallthru
        _
    $region60: #{static_autoencoder_forward.1} parent=5 // pred_fallthru
      _
    %p390 = scmp.le.s32.totalorder 1, %s20
    %p391 = scmp.lt.s32.totalorder %s20, 3
    %p392 = pnand %p390, %p391
    %p393 = pneg %p392
    // Predicated region
    $region65: #{static_autoencoder_forward.1} parent=5 // pred_check
      _
    $region66: #{static_autoencoder_forward.1} parent=5 // pred_check_branch
      %395 = sbr.rel (%p392) target = $region68
    $region67: #{static_autoencoder_forward.1} parent=5 // pred_region
      %s396 = ssub.s32 %s20, 1
      %s397 = smul.u32 8, %s25
      %p398 = scmp.lt.s32.totalorder %s397, 15
      %s399 = scalar_select %p398, %s397, 15
      %s400 = smul.addr %s399, 4
      %s401 = scalar_lea.vmem %s0, %s400
      %p402 = pneg %p46
      %p403 = pneg %p43
      %p404 = pneg %p67
      %p405 = pneg %p64
      %p406 = pneg %p88
      %p407 = pneg %p85
      %p408 = pneg %p109
      %p409 = pneg %p106
      %p410 = pneg %p130
      %p411 = pneg %p127
      %p412 = pneg %p151
      %p413 = pneg %p148
      %p414 = pneg %p172
      %p415 = pneg %p169
      %p416 = pneg %p193
      %p417 = pneg %p190
      %p418 = pneg %p214
      %p419 = pneg %p211
      %p420 = pneg %p235
      %p421 = pneg %p232
      %p422 = pneg %p256
      %p423 = pneg %p253
      %p424 = pneg %p277
      %p425 = pneg %p274
      %p426 = pneg %p303
      %p427 = pneg %p300
      %s428 = smul.u32 2, %s25
      %p429 = scmp.lt.s32.totalorder %s428, 3
      %s430 = scalar_select %p429, %s428, 3
      %s431 = smul.addr %s430, 8
      %s432 = scalar_lea.vmem %s12, %s431
      %p433 = pneg %p329
      %p434 = pneg %p326
      %s435 = smul.u32 8, %s25
      %p436 = scmp.lt.s32.totalorder %s435, 15
      %s437 = scalar_select %p436, %s435, 15
      %s438 = smul.addr %s437, 8
      %s439 = scalar_lea.vmem %s13, %s438
      %s440 = smul.u32 8, %s25
      %p441 = scmp.lt.s32.totalorder %s440, 15
      %s442 = scalar_select %p441, %s440, 15
      %s443 = smul.addr %s442, 4
      %s444 = scalar_lea.vmem %s0, %s443
      %s445 = smul.u32 8, %s25
      %s446 = smul.u32 2, %s25
      %p447 = scmp.lt.s32.totalorder %s446, 3
      %s448 = scalar_select %p447, %s446, 3
      %s449 = smul.addr %s448, 8
      %s450 = scalar_lea.vmem %s12, %s449
      %s451 = smul.u32 2, %s25
      %s452 = smul.u32 8, %s25
      %p453 = scmp.lt.s32.totalorder %s452, 15
      %s454 = scalar_select %p453, %s452, 15
      %s455 = smul.addr %s454, 8
      %s456 = scalar_lea.vmem %s13, %s455
      %s457 = smul.u32 8, %s25
      %v459 = vld [vmem:[%s444] sm:$0xf]
      %v460 = vld [vmem:[%s444 + $0x4] sm:$0xf]
      %v461 = vld [vmem:[%s444 + $0x8] sm:$0xf]
      %v462 = vld [vmem:[%s444 + $0xc] sm:$0xf]
      %v463 = vld [vmem:[%s444 + $0x10] sm:$0xf]
      %v464 = vld [vmem:[%s444 + $0x14] sm:$0xf]
      %v465 = vld [vmem:[%s444 + $0x18] sm:$0xf]
      %v466 = vld [vmem:[%s444 + $0x1c] sm:$0xf]
      %v467 = vld [vmem:[%s1] sm:$0xf]
      %v468 = vld [vmem:[%s1 + $0x4] sm:$0xf]
      %v469 = vld [vmem:[%s1 + $0x8] sm:$0xf]
      %v470 = vld [vmem:[%s1 + $0xc] sm:$0xf]
      %v471 = vld [vmem:[%s1 + $0x10] sm:$0xf]
      %v472 = vld [vmem:[%s1 + $0x14] sm:$0xf]
      %v473 = vld [vmem:[%s1 + $0x18] sm:$0xf]
      %v474 = vld [vmem:[%s1 + $0x1c] sm:$0xf]
      %v475 = vld [vmem:[%s1 + $0x20] sm:$0xf]
      %v476 = vld [vmem:[%s1 + $0x24] sm:$0xf]
      %v477 = vld [vmem:[%s1 + $0x28] sm:$0xf]
      %v478 = vld [vmem:[%s1 + $0x2c] sm:$0xf]
      %v479 = vld [vmem:[%s1 + $0x30] sm:$0xf]
      %v480 = vld [vmem:[%s1 + $0x34] sm:$0xf]
      %v481 = vld [vmem:[%s1 + $0x38] sm:$0xf]
      %v482 = vld [vmem:[%s1 + $0x3c] sm:$0xf]
      %v483 = vld [vmem:[%s2] sm:$0x1]
      %v485 = vlaneseq
      %v486 = vshrl.u32 %v485, 7
      %v487 = vsub.s32 0, %v486
      %v488 = vrot.slane %v483, %v487
      %v498 = vunpack.c.l.b16 %v459
      %v499 = vunpack.c.l.b16 %v460
      %v500 = vunpack.c.l.b16 %v461
      %v501 = vunpack.c.l.b16 %v462
      %v502 = vunpack.c.l.b16 %v463
      %v503 = vunpack.c.l.b16 %v464
      %v504 = vunpack.c.l.b16 %v465
      %v505 = vunpack.c.l.b16 %v466
      %v506 = vpack.c.b16 %v499, %v498
      %v507 = vpack.c.b16 %v501, %v500
      %v508 = vpack.c.b16 %v503, %v502
      %v509 = vpack.c.b16 %v505, %v504
      %v530 = vunpack.c.l.b16 %v467
      %v531 = vunpack.c.l.b16 %v468
      %v532 = vunpack.c.l.b16 %v469
      %v533 = vunpack.c.l.b16 %v470
      %v534 = vunpack.c.l.b16 %v471
      %v535 = vunpack.c.l.b16 %v472
      %v536 = vunpack.c.l.b16 %v473
      %v537 = vunpack.c.l.b16 %v474
      %v538 = vunpack.c.l.b16 %v475
      %v539 = vunpack.c.l.b16 %v476
      %v540 = vunpack.c.l.b16 %v477
      %v541 = vunpack.c.l.b16 %v478
      %v542 = vunpack.c.l.b16 %v479
      %v543 = vunpack.c.l.b16 %v480
      %v544 = vunpack.c.l.b16 %v481
      %v545 = vunpack.c.l.b16 %v482
      %v546 = vpack.c.b16 %v531, %v530
      %v547 = vpack.c.b16 %v533, %v532
      %v548 = vpack.c.b16 %v535, %v534
      %v549 = vpack.c.b16 %v537, %v536
      %v550 = vpack.c.b16 %v539, %v538
      %v551 = vpack.c.b16 %v541, %v540
      %v552 = vpack.c.b16 %v543, %v542
      %v553 = vpack.c.b16 %v545, %v544
      %562 = vmatprep.subr.bf16.mxu0 0
      %563 = vmatpush1.bf16.msra.mxu0 %v546
      %564 = vmatprep.subr.bf16.mxu0 0
      %565 = vmatpush1.bf16.msra.mxu0 %v547
      %566 = vmatprep.subr.bf16.mxu0 0
      %567 = vmatpush1.bf16.msra.mxu0 %v548
      %568 = vmatprep.subr.bf16.mxu0 0
      %569 = vmatpush1.bf16.msra.mxu0 %v549
      %570 = vmatprep.subr.bf16.mxu0 0
      %571 = vmatpush1.bf16.msra.mxu0 %v550
      %572 = vmatprep.subr.bf16.mxu0 0
      %573 = vmatpush1.bf16.msra.mxu0 %v551
      %574 = vmatprep.subr.bf16.mxu0 0
      %575 = vmatpush1.bf16.msra.mxu0 %v552
      %576 = vmatprep.subr.bf16.mxu0 0
      %577 = vmatpush1.bf16.msra.mxu0 %v553
      %578 = vmatprep.subr.bf16.mxu0 0
      %579 = vmatpush1.bf16.msra.mxu0 0
      %580 = vmatprep.subr.bf16.mxu0 0
      %581 = vmatpush1.bf16.msra.mxu0 0
      %582 = vmatprep.subr.bf16.mxu0 0
      %583 = vmatpush1.bf16.msra.mxu0 0
      %584 = vmatprep.subr.bf16.mxu0 0
      %585 = vmatpush1.bf16.msra.mxu0 0
      %586 = vmatprep.subr.bf16.mxu0 0
      %587 = vmatpush1.bf16.msra.mxu0 0
      %588 = vmatprep.subr.bf16.mxu0 0
      %589 = vmatpush1.bf16.msra.mxu0 0
      %590 = vmatprep.subr.bf16.mxu0 0
      %591 = vmatpush1.bf16.msra.mxu0 0
      %592 = vmatprep.subr.bf16.mxu0 0
      %593 = vmatpush1.bf16.msra.mxu0 0
      %594 = vmatprep.mubr.bf16.mxu0 0
      %595 = vmatmul.mubr.bf16.gmra.mrb[0].mxu0 %v506
      %v596 = vpop.f32.mrb[0].mxu0
      %v597 = vadd.f32 %v488, %v596
      %v598 = vpop.f32.mrb[0].mxu0
      %v599 = vpop.f32.mrb[0].mxu0
      %v600 = vadd.f32 %v488, %v599
      %v601 = vpop.f32.mrb[0].mxu0
      %602 = vmatprep.mubr.bf16.mxu0 0
      %603 = vmatmul.mubr.bf16.gmra.mrb[0].mxu0 %v507
      %v604 = vpop.f32.mrb[0].mxu0
      %v605 = vadd.f32 %v488, %v604
      %v606 = vpop.f32.mrb[0].mxu0
      %v607 = vpop.f32.mrb[0].mxu0
      %v608 = vadd.f32 %v488, %v607
      %v609 = vpop.f32.mrb[0].mxu0
      %610 = vmatprep.mubr.bf16.mxu0 0
      %611 = vmatmul.mubr.bf16.gmra.mrb[0].mxu0 %v508
      %v612 = vpop.f32.mrb[0].mxu0
      %v613 = vadd.f32 %v488, %v612
      %v614 = vpop.f32.mrb[0].mxu0
      %v615 = vpop.f32.mrb[0].mxu0
      %v616 = vadd.f32 %v488, %v615
      %v617 = vpop.f32.mrb[0].mxu0
      %618 = vmatprep.mubr.bf16.mxu0 0
      %619 = vmatmul.mubr.bf16.gmra.mrb[0].mxu0 %v509
      %v620 = vpop.f32.mrb[0].mxu0
      %v621 = vadd.f32 %v488, %v620
      %v622 = vpop.f32.mrb[0].mxu0
      %v623 = vpop.f32.mrb[0].mxu0
      %v624 = vadd.f32 %v488, %v623
      %v625 = vpop.f32.mrb[0].mxu0
      %626 = vdwg.mxu0
      %v627 = vmax.f32 %v597, 0.0
      %v628 = vmax.f32 %v600, 0.0
      %v629 = vmax.f32 %v605, 0.0
      %v630 = vmax.f32 %v608, 0.0
      %v631 = vmax.f32 %v613, 0.0
      %v632 = vmax.f32 %v616, 0.0
      %v633 = vmax.f32 %v621, 0.0
      %v634 = vmax.f32 %v624, 0.0
      %v635 = vpack.c.bf16 %v628, %v627
      %v636 = vpack.c.bf16 %v630, %v629
      %v637 = vpack.c.bf16 %v632, %v631
      %v638 = vpack.c.bf16 %v634, %v633
      %v639 = vld [vmem:[%s3] sm:$0xf]
      %v640 = vld [vmem:[%s3 + $0x4] sm:$0xf]
      %v643 = vunpack.c.l.b16 %v639
      %v644 = vunpack.c.l.b16 %v640
      %v645 = vpack.c.b16 %v644, %v643
      %vm646 = vcmask 523264
      %v648 = vsel %vm646, %v645, 0
      %650 = vmatprep.subr.bf16.mxu0 0
      %651 = vmatpush1.bf16.msra.mxu0 %v635
      %652 = vmatprep.subr.bf16.mxu0 0
      %653 = vmatpush1.bf16.msra.mxu0 %v636
      %654 = vmatprep.subr.bf16.mxu0 0
      %655 = vmatpush1.bf16.msra.mxu0 %v637
      %656 = vmatprep.subr.bf16.mxu0 0
      %657 = vmatpush1.bf16.msra.mxu0 %v638
      %658 = vmatprep.subr.bf16.mxu0 0
      %659 = vmatpush1.bf16.msra.mxu0 0
      %660 = vmatprep.subr.bf16.mxu0 0
      %661 = vmatpush1.bf16.msra.mxu0 0
      %662 = vmatprep.subr.bf16.mxu0 0
      %663 = vmatpush1.bf16.msra.mxu0 0
      %664 = vmatprep.subr.bf16.mxu0 0
      %665 = vmatpush1.bf16.msra.mxu0 0
      %666 = vmatprep.subr.bf16.mxu0 0
      %667 = vmatpush1.bf16.msra.mxu0 0
      %668 = vmatprep.subr.bf16.mxu0 0
      %669 = vmatpush1.bf16.msra.mxu0 0
      %670 = vmatprep.subr.bf16.mxu0 0
      %671 = vmatpush1.bf16.msra.mxu0 0
      %672 = vmatprep.subr.bf16.mxu0 0
      %673 = vmatpush1.bf16.msra.mxu0 0
      %674 = vmatprep.subr.bf16.mxu0 0
      %675 = vmatpush1.bf16.msra.mxu0 0
      %676 = vmatprep.subr.bf16.mxu0 0
      %677 = vmatpush1.bf16.msra.mxu0 0
      %678 = vmatprep.subr.bf16.mxu0 0
      %679 = vmatpush1.bf16.msra.mxu0 0
      %680 = vmatprep.subr.bf16.mxu0 0
      %681 = vmatpush1.bf16.msra.mxu0 0
      %682 = vmatprep.mubr.bf16.mxu0 0
      %683 = vmatmul.mubr.bf16.gmra.mrb[0].mxu0 %v648
      %v684 = vpop.f32.mrb[0].mxu0
      %v685 = vadd.f32 0.0, %v684
      %v686 = vpop.f32.mrb[0].mxu0
      %v687 = vpop.f32.mrb[0].mxu0
      %v688 = vadd.f32 0.0, %v687
      %v689 = vpop.f32.mrb[0].mxu0
      %690 = vdwg.mxu0
      %v691 = vpack.c.bf16 %v688, %v685
      %v692 = vld [vmem:[%s4] sm:$0xf]
      %v693 = vld [vmem:[%s4 + $0x4] sm:$0xf]
      %s694 = scalar_lea.vmem %s3, 8
      %v695 = vld [vmem:[%s694] sm:$0xf]
      %v696 = vld [vmem:[%s694 + $0x4] sm:$0xf]
      %v699 = vunpack.c.l.b16 %v695
      %v700 = vunpack.c.l.b16 %v696
      %v701 = vpack.c.b16 %v700, %v699
      %v703 = vsel %vm646, %v701, 0
      %705 = vmatprep.subr.bf16.mxu0 0
      %706 = vmatpush1.bf16.msra.mxu0 %v635
      %707 = vmatprep.subr.bf16.mxu0 0
      %708 = vmatpush1.bf16.msra.mxu0 %v636
      %709 = vmatprep.subr.bf16.mxu0 0
      %710 = vmatpush1.bf16.msra.mxu0 %v637
      %711 = vmatprep.subr.bf16.mxu0 0
      %712 = vmatpush1.bf16.msra.mxu0 %v638
      %713 = vmatprep.subr.bf16.mxu0 0
      %714 = vmatpush1.bf16.msra.mxu0 0
      %715 = vmatprep.subr.bf16.mxu0 0
      %716 = vmatpush1.bf16.msra.mxu0 0
      %717 = vmatprep.subr.bf16.mxu0 0
      %718 = vmatpush1.bf16.msra.mxu0 0
      %719 = vmatprep.subr.bf16.mxu0 0
      %720 = vmatpush1.bf16.msra.mxu0 0
      %721 = vmatprep.subr.bf16.mxu0 0
      %722 = vmatpush1.bf16.msra.mxu0 0
      %723 = vmatprep.subr.bf16.mxu0 0
      %724 = vmatpush1.bf16.msra.mxu0 0
      %725 = vmatprep.subr.bf16.mxu0 0
      %726 = vmatpush1.bf16.msra.mxu0 0
      %727 = vmatprep.subr.bf16.mxu0 0
      %728 = vmatpush1.bf16.msra.mxu0 0
      %729 = vmatprep.subr.bf16.mxu0 0
      %730 = vmatpush1.bf16.msra.mxu0 0
      %731 = vmatprep.subr.bf16.mxu0 0
      %732 = vmatpush1.bf16.msra.mxu0 0
      %733 = vmatprep.subr.bf16.mxu0 0
      %734 = vmatpush1.bf16.msra.mxu0 0
      %735 = vmatprep.subr.bf16.mxu0 0
      %736 = vmatpush1.bf16.msra.mxu0 0
      %737 = vmatprep.mubr.bf16.mxu0 0
      %738 = vmatmul.mubr.bf16.gmra.mrb[0].mxu0 %v703
      %v739 = vpop.f32.mrb[0].mxu0
      %v740 = vadd.f32 0.0, %v739
      %v741 = vpop.f32.mrb[0].mxu0
      %v742 = vpop.f32.mrb[0].mxu0
      %v743 = vadd.f32 0.0, %v742
      %v744 = vpop.f32.mrb[0].mxu0
      %745 = vdwg.mxu0
      %v746 = vpack.c.bf16 %v743, %v740
      %s747 = scalar_lea.vmem %s4, 8
      %v748 = vld [vmem:[%s747] sm:$0xf]
      %v749 = vld [vmem:[%s747 + $0x4] sm:$0xf]
      %v752 = vunpack.c.l.b16 %v748
      %v753 = vunpack.c.l.b16 %v749
      %v754 = vpack.c.b16 %v753, %v752
      %vm756 = vcmask 130048
      %v758 = vsel %vm756, %v746, 0
      %760 = vmatprep.subr.bf16.mxu0 0
      %761 = vmatpush1.bf16.msra.mxu0 %v754
      %762 = vmatprep.subr.bf16.mxu0 0
      %763 = vmatpush1.bf16.msra.mxu0 0
      %764 = vmatprep.subr.bf16.mxu0 0
      %765 = vmatpush1.bf16.msra.mxu0 0
      %766 = vmatprep.subr.bf16.mxu0 0
      %767 = vmatpush1.bf16.msra.mxu0 0
      %768 = vmatprep.subr.bf16.mxu0 0
      %769 = vmatpush1.bf16.msra.mxu0 0
      %770 = vmatprep.subr.bf16.mxu0 0
      %771 = vmatpush1.bf16.msra.mxu0 0
      %772 = vmatprep.subr.bf16.mxu0 0
      %773 = vmatpush1.bf16.msra.mxu0 0
      %774 = vmatprep.subr.bf16.mxu0 0
      %775 = vmatpush1.bf16.msra.mxu0 0
      %776 = vmatprep.subr.bf16.mxu0 0
      %777 = vmatpush1.bf16.msra.mxu0 0
      %778 = vmatprep.subr.bf16.mxu0 0
      %779 = vmatpush1.bf16.msra.mxu0 0
      %780 = vmatprep.subr.bf16.mxu0 0
      %781 = vmatpush1.bf16.msra.mxu0 0
      %782 = vmatprep.subr.bf16.mxu0 0
      %783 = vmatpush1.bf16.msra.mxu0 0
      %784 = vmatprep.subr.bf16.mxu0 0
      %785 = vmatpush1.bf16.msra.mxu0 0
      %786 = vmatprep.subr.bf16.mxu0 0
      %787 = vmatpush1.bf16.msra.mxu0 0
      %788 = vmatprep.subr.bf16.mxu0 0
      %789 = vmatpush1.bf16.msra.mxu0 0
      %790 = vmatprep.subr.bf16.mxu0 0
      %791 = vmatpush1.bf16.msra.mxu0 0
      %792 = vmatprep.mubr.bf16.mxu0 0
      %793 = vmatmul.mubr.bf16.gmra.mrb[0].mxu0 %v758
      %v794 = vpop.f32.mrb[0].mxu0
      %v795 = vadd.f32 0.0, %v794
      %v796 = vpop.f32.mrb[0].mxu0
      %v797 = vpop.f32.mrb[0].mxu0
      %v798 = vadd.f32 0.0, %v797
      %v799 = vpop.f32.mrb[0].mxu0
      %800 = vdwg.mxu0
      %v803 = vunpack.c.l.b16 %v692
      %v804 = vunpack.c.l.b16 %v693
      %v805 = vpack.c.b16 %v804, %v803
      %v808 = vsel %vm756, %v691, 0
      %810 = vmatprep.subr.bf16.mxu0 0
      %811 = vmatpush1.bf16.msra.mxu0 %v805
      %812 = vmatprep.subr.bf16.mxu0 0
      %813 = vmatpush1.bf16.msra.mxu0 0
      %814 = vmatprep.subr.bf16.mxu0 0
      %815 = vmatpush1.bf16.msra.mxu0 0
      %816 = vmatprep.subr.bf16.mxu0 0
      %817 = vmatpush1.bf16.msra.mxu0 0
      %818 = vmatprep.subr.bf16.mxu0 0
      %819 = vmatpush1.bf16.msra.mxu0 0
      %820 = vmatprep.subr.bf16.mxu0 0
      %821 = vmatpush1.bf16.msra.mxu0 0
      %822 = vmatprep.subr.bf16.mxu0 0
      %823 = vmatpush1.bf16.msra.mxu0 0
      %824 = vmatprep.subr.bf16.mxu0 0
      %825 = vmatpush1.bf16.msra.mxu0 0
      %826 = vmatprep.subr.bf16.mxu0 0
      %827 = vmatpush1.bf16.msra.mxu0 0
      %828 = vmatprep.subr.bf16.mxu0 0
      %829 = vmatpush1.bf16.msra.mxu0 0
      %830 = vmatprep.subr.bf16.mxu0 0
      %831 = vmatpush1.bf16.msra.mxu0 0
      %832 = vmatprep.subr.bf16.mxu0 0
      %833 = vmatpush1.bf16.msra.mxu0 0
      %834 = vmatprep.subr.bf16.mxu0 0
      %835 = vmatpush1.bf16.msra.mxu0 0
      %836 = vmatprep.subr.bf16.mxu0 0
      %837 = vmatpush1.bf16.msra.mxu0 0
      %838 = vmatprep.subr.bf16.mxu0 0
      %839 = vmatpush1.bf16.msra.mxu0 0
      %840 = vmatprep.subr.bf16.mxu0 0
      %841 = vmatpush1.bf16.msra.mxu0 0
      %842 = vmatprep.mubr.bf16.mxu0 0
      %843 = vmatmul.mubr.bf16.gmra.mrb[0].mxu0 %v808
      %v844 = vpop.f32.mrb[0].mxu0
      %v845 = vadd.f32 %v795, %v844
      %v846 = vpop.f32.mrb[0].mxu0
      %v847 = vpop.f32.mrb[0].mxu0
      %v848 = vadd.f32 %v798, %v847
      %v849 = vpop.f32.mrb[0].mxu0
      %850 = vdwg.mxu0
      %s851 = scalar_lea.vmem %s3, 16
      %v852 = vld [vmem:[%s851] sm:$0xf]
      %v853 = vld [vmem:[%s851 + $0x4] sm:$0xf]
      %v856 = vunpack.c.l.b16 %v852
      %v857 = vunpack.c.l.b16 %v853
      %v858 = vpack.c.b16 %v857, %v856
      %v860 = vsel %vm646, %v858, 0
      %862 = vmatprep.subr.bf16.mxu0 0
      %863 = vmatpush1.bf16.msra.mxu0 %v635
      %864 = vmatprep.subr.bf16.mxu0 0
      %865 = vmatpush1.bf16.msra.mxu0 %v636
      %866 = vmatprep.subr.bf16.mxu0 0
      %867 = vmatpush1.bf16.msra.mxu0 %v637
      %868 = vmatprep.subr.bf16.mxu0 0
      %869 = vmatpush1.bf16.msra.mxu0 %v638
      %870 = vmatprep.subr.bf16.mxu0 0
      %871 = vmatpush1.bf16.msra.mxu0 0
      %872 = vmatprep.subr.bf16.mxu0 0
      %873 = vmatpush1.bf16.msra.mxu0 0
      %874 = vmatprep.subr.bf16.mxu0 0
      %875 = vmatpush1.bf16.msra.mxu0 0
      %876 = vmatprep.subr.bf16.mxu0 0
      %877 = vmatpush1.bf16.msra.mxu0 0
      %878 = vmatprep.subr.bf16.mxu0 0
      %879 = vmatpush1.bf16.msra.mxu0 0
      %880 = vmatprep.subr.bf16.mxu0 0
      %881 = vmatpush1.bf16.msra.mxu0 0
      %882 = vmatprep.subr.bf16.mxu0 0
      %883 = vmatpush1.bf16.msra.mxu0 0
      %884 = vmatprep.subr.bf16.mxu0 0
      %885 = vmatpush1.bf16.msra.mxu0 0
      %886 = vmatprep.subr.bf16.mxu0 0
      %887 = vmatpush1.bf16.msra.mxu0 0
      %888 = vmatprep.subr.bf16.mxu0 0
      %889 = vmatpush1.bf16.msra.mxu0 0
      %890 = vmatprep.subr.bf16.mxu0 0
      %891 = vmatpush1.bf16.msra.mxu0 0
      %892 = vmatprep.subr.bf16.mxu0 0
      %893 = vmatpush1.bf16.msra.mxu0 0
      %894 = vmatprep.mubr.bf16.mxu0 0
      %895 = vmatmul.mubr.bf16.gmra.mrb[0].mxu0 %v860
      %v896 = vpop.f32.mrb[0].mxu0
      %v897 = vadd.f32 0.0, %v896
      %v898 = vpop.f32.mrb[0].mxu0
      %v899 = vpop.f32.mrb[0].mxu0
      %v900 = vadd.f32 0.0, %v899
      %v901 = vpop.f32.mrb[0].mxu0
      %902 = vdwg.mxu0
      %v903 = vpack.c.bf16 %v900, %v897
      %s904 = scalar_lea.vmem %s4, 16
      %v905 = vld [vmem:[%s904] sm:$0xf]
      %v906 = vld [vmem:[%s904 + $0x4] sm:$0xf]
      %v909 = vunpack.c.l.b16 %v905
      %v910 = vunpack.c.l.b16 %v906
      %v911 = vpack.c.b16 %v910, %v909
      %v914 = vsel %vm756, %v903, 0
      %916 = vmatprep.subr.bf16.mxu0 0
      %917 = vmatpush1.bf16.msra.mxu0 %v911
      %918 = vmatprep.subr.bf16.mxu0 0
      %919 = vmatpush1.bf16.msra.mxu0 0
      %920 = vmatprep.subr.bf16.mxu0 0
      %921 = vmatpush1.bf16.msra.mxu0 0
      %922 = vmatprep.subr.bf16.mxu0 0
      %923 = vmatpush1.bf16.msra.mxu0 0
      %924 = vmatprep.subr.bf16.mxu0 0
      %925 = vmatpush1.bf16.msra.mxu0 0
      %926 = vmatprep.subr.bf16.mxu0 0
      %927 = vmatpush1.bf16.msra.mxu0 0
      %928 = vmatprep.subr.bf16.mxu0 0
      %929 = vmatpush1.bf16.msra.mxu0 0
      %930 = vmatprep.subr.bf16.mxu0 0
      %931 = vmatpush1.bf16.msra.mxu0 0
      %932 = vmatprep.subr.bf16.mxu0 0
      %933 = vmatpush1.bf16.msra.mxu0 0
      %934 = vmatprep.subr.bf16.mxu0 0
      %935 = vmatpush1.bf16.msra.mxu0 0
      %936 = vmatprep.subr.bf16.mxu0 0
      %937 = vmatpush1.bf16.msra.mxu0 0
      %938 = vmatprep.subr.bf16.mxu0 0
      %939 = vmatpush1.bf16.msra.mxu0 0
      %940 = vmatprep.subr.bf16.mxu0 0
      %941 = vmatpush1.bf16.msra.mxu0 0
      %942 = vmatprep.subr.bf16.mxu0 0
      %943 = vmatpush1.bf16.msra.mxu0 0
      %944 = vmatprep.subr.bf16.mxu0 0
      %945 = vmatpush1.bf16.msra.mxu0 0
      %946 = vmatprep.subr.bf16.mxu0 0
      %947 = vmatpush1.bf16.msra.mxu0 0
      %948 = vmatprep.mubr.bf16.mxu0 0
      %949 = vmatmul.mubr.bf16.gmra.mrb[0].mxu0 %v914
      %v950 = vpop.f32.mrb[0].mxu0
      %v951 = vadd.f32 0.0, %v950
      %v952 = vpop.f32.mrb[0].mxu0
      %v953 = vpop.f32.mrb[0].mxu0
      %v954 = vadd.f32 0.0, %v953
      %v955 = vpop.f32.mrb[0].mxu0
      %956 = vdwg.mxu0
      %v957 = vadd.f32 %v845, %v951
      %v958 = vadd.f32 %v848, %v954
      %s959 = scalar_lea.vmem %s3, 24
      %v960 = vld [vmem:[%s959] sm:$0xf]
      %v961 = vld [vmem:[%s959 + $0x4] sm:$0xf]
      %v964 = vunpack.c.l.b16 %v960
      %v965 = vunpack.c.l.b16 %v961
      %v966 = vpack.c.b16 %v965, %v964
      %v968 = vsel %vm646, %v966, 0
      %970 = vmatprep.subr.bf16.mxu0 0
      %971 = vmatpush1.bf16.msra.mxu0 %v635
      %972 = vmatprep.subr.bf16.mxu0 0
      %973 = vmatpush1.bf16.msra.mxu0 %v636
      %974 = vmatprep.subr.bf16.mxu0 0
      %975 = vmatpush1.bf16.msra.mxu0 %v637
      %976 = vmatprep.subr.bf16.mxu0 0
      %977 = vmatpush1.bf16.msra.mxu0 %v638
      %978 = vmatprep.subr.bf16.mxu0 0
      %979 = vmatpush1.bf16.msra.mxu0 0
      %980 = vmatprep.subr.bf16.mxu0 0
      %981 = vmatpush1.bf16.msra.mxu0 0
      %982 = vmatprep.subr.bf16.mxu0 0
      %983 = vmatpush1.bf16.msra.mxu0 0
      %984 = vmatprep.subr.bf16.mxu0 0
      %985 = vmatpush1.bf16.msra.mxu0 0
      %986 = vmatprep.subr.bf16.mxu0 0
      %987 = vmatpush1.bf16.msra.mxu0 0
      %988 = vmatprep.subr.bf16.mxu0 0
      %989 = vmatpush1.bf16.msra.mxu0 0
      %990 = vmatprep.subr.bf16.mxu0 0
      %991 = vmatpush1.bf16.msra.mxu0 0
      %992 = vmatprep.subr.bf16.mxu0 0
      %993 = vmatpush1.bf16.msra.mxu0 0
      %994 = vmatprep.subr.bf16.mxu0 0
      %995 = vmatpush1.bf16.msra.mxu0 0
      %996 = vmatprep.subr.bf16.mxu0 0
      %997 = vmatpush1.bf16.msra.mxu0 0
      %998 = vmatprep.subr.bf16.mxu0 0
      %999 = vmatpush1.bf16.msra.mxu0 0
      %1000 = vmatprep.subr.bf16.mxu0 0
      %1001 = vmatpush1.bf16.msra.mxu0 0
      %1002 = vmatprep.mubr.bf16.mxu0 0
      %1003 = vmatmul.mubr.bf16.gmra.mrb[0].mxu0 %v968
      %v1004 = vpop.f32.mrb[0].mxu0
      %v1005 = vadd.f32 0.0, %v1004
      %v1006 = vpop.f32.mrb[0].mxu0
      %v1007 = vpop.f32.mrb[0].mxu0
      %v1008 = vadd.f32 0.0, %v1007
      %v1009 = vpop.f32.mrb[0].mxu0
      %1010 = vdwg.mxu0
      %v1011 = vpack.c.bf16 %v1008, %v1005
      %s1012 = scalar_lea.vmem %s4, 24
      %v1013 = vld [vmem:[%s1012] sm:$0xf]
      %v1014 = vld [vmem:[%s1012 + $0x4] sm:$0xf]
      %v1017 = vunpack.c.l.b16 %v1013
      %v1018 = vunpack.c.l.b16 %v1014
      %v1019 = vpack.c.b16 %v1018, %v1017
      %v1022 = vsel %vm756, %v1011, 0
      %1024 = vmatprep.subr.bf16.mxu0 0
      %1025 = vmatpush1.bf16.msra.mxu0 %v1019
      %1026 = vmatprep.subr.bf16.mxu0 0
      %1027 = vmatpush1.bf16.msra.mxu0 0
      %1028 = vmatprep.subr.bf16.mxu0 0
      %1029 = vmatpush1.bf16.msra.mxu0 0
      %1030 = vmatprep.subr.bf16.mxu0 0
      %1031 = vmatpush1.bf16.msra.mxu0 0
      %1032 = vmatprep.subr.bf16.mxu0 0
      %1033 = vmatpush1.bf16.msra.mxu0 0
      %1034 = vmatprep.subr.bf16.mxu0 0
      %1035 = vmatpush1.bf16.msra.mxu0 0
      %1036 = vmatprep.subr.bf16.mxu0 0
      %1037 = vmatpush1.bf16.msra.mxu0 0
      %1038 = vmatprep.subr.bf16.mxu0 0
      %1039 = vmatpush1.bf16.msra.mxu0 0
      %1040 = vmatprep.subr.bf16.mxu0 0
      %1041 = vmatpush1.bf16.msra.mxu0 0
      %1042 = vmatprep.subr.bf16.mxu0 0
      %1043 = vmatpush1.bf16.msra.mxu0 0
      %1044 = vmatprep.subr.bf16.mxu0 0
      %1045 = vmatpush1.bf16.msra.mxu0 0
      %1046 = vmatprep.subr.bf16.mxu0 0
      %1047 = vmatpush1.bf16.msra.mxu0 0
      %1048 = vmatprep.subr.bf16.mxu0 0
      %1049 = vmatpush1.bf16.msra.mxu0 0
      %1050 = vmatprep.subr.bf16.mxu0 0
      %1051 = vmatpush1.bf16.msra.mxu0 0
      %1052 = vmatprep.subr.bf16.mxu0 0
      %1053 = vmatpush1.bf16.msra.mxu0 0
      %1054 = vmatprep.subr.bf16.mxu0 0
      %1055 = vmatpush1.bf16.msra.mxu0 0
      %1056 = vmatprep.mubr.bf16.mxu0 0
      %1057 = vmatmul.mubr.bf16.gmra.mrb[0].mxu0 %v1022
      %v1058 = vpop.f32.mrb[0].mxu0
      %v1059 = vadd.f32 0.0, %v1058
      %v1060 = vpop.f32.mrb[0].mxu0
      %v1061 = vpop.f32.mrb[0].mxu0
      %v1062 = vadd.f32 0.0, %v1061
      %v1063 = vpop.f32.mrb[0].mxu0
      %1064 = vdwg.mxu0
      %v1065 = vadd.f32 %v957, %v1059
      %v1066 = vadd.f32 %v958, %v1062
      %s1067 = scalar_lea.vmem %s3, 32
      %v1068 = vld [vmem:[%s1067] sm:$0xf]
      %v1069 = vld [vmem:[%s1067 + $0x4] sm:$0xf]
      %v1072 = vunpack.c.l.b16 %v1068
      %v1073 = vunpack.c.l.b16 %v1069
      %v1074 = vpack.c.b16 %v1073, %v1072
      %v1076 = vsel %vm646, %v1074, 0
      %1078 = vmatprep.subr.bf16.mxu0 0
      %1079 = vmatpush1.bf16.msra.mxu0 %v635
      %1080 = vmatprep.subr.bf16.mxu0 0
      %1081 = vmatpush1.bf16.msra.mxu0 %v636
      %1082 = vmatprep.subr.bf16.mxu0 0
      %1083 = vmatpush1.bf16.msra.mxu0 %v637
      %1084 = vmatprep.subr.bf16.mxu0 0
      %1085 = vmatpush1.bf16.msra.mxu0 %v638
      %1086 = vmatprep.subr.bf16.mxu0 0
      %1087 = vmatpush1.bf16.msra.mxu0 0
      %1088 = vmatprep.subr.bf16.mxu0 0
      %1089 = vmatpush1.bf16.msra.mxu0 0
      %1090 = vmatprep.subr.bf16.mxu0 0
      %1091 = vmatpush1.bf16.msra.mxu0 0
      %1092 = vmatprep.subr.bf16.mxu0 0
      %1093 = vmatpush1.bf16.msra.mxu0 0
      %1094 = vmatprep.subr.bf16.mxu0 0
      %1095 = vmatpush1.bf16.msra.mxu0 0
      %1096 = vmatprep.subr.bf16.mxu0 0
      %1097 = vmatpush1.bf16.msra.mxu0 0
      %1098 = vmatprep.subr.bf16.mxu0 0
      %1099 = vmatpush1.bf16.msra.mxu0 0
      %1100 = vmatprep.subr.bf16.mxu0 0
      %1101 = vmatpush1.bf16.msra.mxu0 0
      %1102 = vmatprep.subr.bf16.mxu0 0
      %1103 = vmatpush1.bf16.msra.mxu0 0
      %1104 = vmatprep.subr.bf16.mxu0 0
      %1105 = vmatpush1.bf16.msra.mxu0 0
      %1106 = vmatprep.subr.bf16.mxu0 0
      %1107 = vmatpush1.bf16.msra.mxu0 0
      %1108 = vmatprep.subr.bf16.mxu0 0
      %1109 = vmatpush1.bf16.msra.mxu0 0
      %1110 = vmatprep.mubr.bf16.mxu0 0
      %1111 = vmatmul.mubr.bf16.gmra.mrb[0].mxu0 %v1076
      %v1112 = vpop.f32.mrb[0].mxu0
      %v1113 = vadd.f32 0.0, %v1112
      %v1114 = vpop.f32.mrb[0].mxu0
      %v1115 = vpop.f32.mrb[0].mxu0
      %v1116 = vadd.f32 0.0, %v1115
      %v1117 = vpop.f32.mrb[0].mxu0
      %1118 = vdwg.mxu0
      %v1119 = vpack.c.bf16 %v1116, %v1113
      %s1120 = scalar_lea.vmem %s4, 32
      %v1121 = vld [vmem:[%s1120] sm:$0xf]
      %v1122 = vld [vmem:[%s1120 + $0x4] sm:$0xf]
      %v1125 = vunpack.c.l.b16 %v1121
      %v1126 = vunpack.c.l.b16 %v1122
      %v1127 = vpack.c.b16 %v1126, %v1125
      %v1130 = vsel %vm756, %v1119, 0
      %1132 = vmatprep.subr.bf16.mxu0 0
      %1133 = vmatpush1.bf16.msra.mxu0 %v1127
      %1134 = vmatprep.subr.bf16.mxu0 0
      %1135 = vmatpush1.bf16.msra.mxu0 0
      %1136 = vmatprep.subr.bf16.mxu0 0
      %1137 = vmatpush1.bf16.msra.mxu0 0
      %1138 = vmatprep.subr.bf16.mxu0 0
      %1139 = vmatpush1.bf16.msra.mxu0 0
      %1140 = vmatprep.subr.bf16.mxu0 0
      %1141 = vmatpush1.bf16.msra.mxu0 0
      %1142 = vmatprep.subr.bf16.mxu0 0
      %1143 = vmatpush1.bf16.msra.mxu0 0
      %1144 = vmatprep.subr.bf16.mxu0 0
      %1145 = vmatpush1.bf16.msra.mxu0 0
      %1146 = vmatprep.subr.bf16.mxu0 0
      %1147 = vmatpush1.bf16.msra.mxu0 0
      %1148 = vmatprep.subr.bf16.mxu0 0
      %1149 = vmatpush1.bf16.msra.mxu0 0
      %1150 = vmatprep.subr.bf16.mxu0 0
      %1151 = vmatpush1.bf16.msra.mxu0 0
      %1152 = vmatprep.subr.bf16.mxu0 0
      %1153 = vmatpush1.bf16.msra.mxu0 0
      %1154 = vmatprep.subr.bf16.mxu0 0
      %1155 = vmatpush1.bf16.msra.mxu0 0
      %1156 = vmatprep.subr.bf16.mxu0 0
      %1157 = vmatpush1.bf16.msra.mxu0 0
      %1158 = vmatprep.subr.bf16.mxu0 0
      %1159 = vmatpush1.bf16.msra.mxu0 0
      %1160 = vmatprep.subr.bf16.mxu0 0
      %1161 = vmatpush1.bf16.msra.mxu0 0
      %1162 = vmatprep.subr.bf16.mxu0 0
      %1163 = vmatpush1.bf16.msra.mxu0 0
      %1164 = vmatprep.mubr.bf16.mxu0 0
      %1165 = vmatmul.mubr.bf16.gmra.mrb[0].mxu0 %v1130
      %v1166 = vpop.f32.mrb[0].mxu0
      %v1167 = vadd.f32 0.0, %v1166
      %v1168 = vpop.f32.mrb[0].mxu0
      %v1169 = vpop.f32.mrb[0].mxu0
      %v1170 = vadd.f32 0.0, %v1169
      %v1171 = vpop.f32.mrb[0].mxu0
      %1172 = vdwg.mxu0
      %v1173 = vadd.f32 %v1065, %v1167
      %v1174 = vadd.f32 %v1066, %v1170
      %s1175 = scalar_lea.vmem %s3, 40
      %v1176 = vld [vmem:[%s1175] sm:$0xf]
      %v1177 = vld [vmem:[%s1175 + $0x4] sm:$0xf]
      %v1180 = vunpack.c.l.b16 %v1176
      %v1181 = vunpack.c.l.b16 %v1177
      %v1182 = vpack.c.b16 %v1181, %v1180
      %v1184 = vsel %vm646, %v1182, 0
      %1186 = vmatprep.subr.bf16.mxu0 0
      %1187 = vmatpush1.bf16.msra.mxu0 %v635
      %1188 = vmatprep.subr.bf16.mxu0 0
      %1189 = vmatpush1.bf16.msra.mxu0 %v636
      %1190 = vmatprep.subr.bf16.mxu0 0
      %1191 = vmatpush1.bf16.msra.mxu0 %v637
      %1192 = vmatprep.subr.bf16.mxu0 0
      %1193 = vmatpush1.bf16.msra.mxu0 %v638
      %1194 = vmatprep.subr.bf16.mxu0 0
      %1195 = vmatpush1.bf16.msra.mxu0 0
      %1196 = vmatprep.subr.bf16.mxu0 0
      %1197 = vmatpush1.bf16.msra.mxu0 0
      %1198 = vmatprep.subr.bf16.mxu0 0
      %1199 = vmatpush1.bf16.msra.mxu0 0
      %1200 = vmatprep.subr.bf16.mxu0 0
      %1201 = vmatpush1.bf16.msra.mxu0 0
      %1202 = vmatprep.subr.bf16.mxu0 0
      %1203 = vmatpush1.bf16.msra.mxu0 0
      %1204 = vmatprep.subr.bf16.mxu0 0
      %1205 = vmatpush1.bf16.msra.mxu0 0
      %1206 = vmatprep.subr.bf16.mxu0 0
      %1207 = vmatpush1.bf16.msra.mxu0 0
      %1208 = vmatprep.subr.bf16.mxu0 0
      %1209 = vmatpush1.bf16.msra.mxu0 0
      %1210 = vmatprep.subr.bf16.mxu0 0
      %1211 = vmatpush1.bf16.msra.mxu0 0
      %1212 = vmatprep.subr.bf16.mxu0 0
      %1213 = vmatpush1.bf16.msra.mxu0 0
      %1214 = vmatprep.subr.bf16.mxu0 0
      %1215 = vmatpush1.bf16.msra.mxu0 0
      %1216 = vmatprep.subr.bf16.mxu0 0
      %1217 = vmatpush1.bf16.msra.mxu0 0
      %1218 = vmatprep.mubr.bf16.mxu0 0
      %1219 = vmatmul.mubr.bf16.gmra.mrb[0].mxu0 %v1184
      %v1220 = vpop.f32.mrb[0].mxu0
      %v1221 = vadd.f32 0.0, %v1220
      %v1222 = vpop.f32.mrb[0].mxu0
      %v1223 = vpop.f32.mrb[0].mxu0
      %v1224 = vadd.f32 0.0, %v1223
      %v1225 = vpop.f32.mrb[0].mxu0
      %1226 = vdwg.mxu0
      %v1227 = vpack.c.bf16 %v1224, %v1221
      %s1228 = scalar_lea.vmem %s4, 40
      %v1229 = vld [vmem:[%s1228] sm:$0xf]
      %v1230 = vld [vmem:[%s1228 + $0x4] sm:$0xf]
      %v1233 = vunpack.c.l.b16 %v1229
      %v1234 = vunpack.c.l.b16 %v1230
      %v1235 = vpack.c.b16 %v1234, %v1233
      %v1238 = vsel %vm756, %v1227, 0
      %1240 = vmatprep.subr.bf16.mxu0 0
      %1241 = vmatpush1.bf16.msra.mxu0 %v1235
      %1242 = vmatprep.subr.bf16.mxu0 0
      %1243 = vmatpush1.bf16.msra.mxu0 0
      %1244 = vmatprep.subr.bf16.mxu0 0
      %1245 = vmatpush1.bf16.msra.mxu0 0
      %1246 = vmatprep.subr.bf16.mxu0 0
      %1247 = vmatpush1.bf16.msra.mxu0 0
      %1248 = vmatprep.subr.bf16.mxu0 0
      %1249 = vmatpush1.bf16.msra.mxu0 0
      %1250 = vmatprep.subr.bf16.mxu0 0
      %1251 = vmatpush1.bf16.msra.mxu0 0
      %1252 = vmatprep.subr.bf16.mxu0 0
      %1253 = vmatpush1.bf16.msra.mxu0 0
      %1254 = vmatprep.subr.bf16.mxu0 0
      %1255 = vmatpush1.bf16.msra.mxu0 0
      %1256 = vmatprep.subr.bf16.mxu0 0
      %1257 = vmatpush1.bf16.msra.mxu0 0
      %1258 = vmatprep.subr.bf16.mxu0 0
      %1259 = vmatpush1.bf16.msra.mxu0 0
      %1260 = vmatprep.subr.bf16.mxu0 0
      %1261 = vmatpush1.bf16.msra.mxu0 0
      %1262 = vmatprep.subr.bf16.mxu0 0
      %1263 = vmatpush1.bf16.msra.mxu0 0
      %1264 = vmatprep.subr.bf16.mxu0 0
      %1265 = vmatpush1.bf16.msra.mxu0 0
      %1266 = vmatprep.subr.bf16.mxu0 0
      %1267 = vmatpush1.bf16.msra.mxu0 0
      %1268 = vmatprep.subr.bf16.mxu0 0
      %1269 = vmatpush1.bf16.msra.mxu0 0
      %1270 = vmatprep.subr.bf16.mxu0 0
      %1271 = vmatpush1.bf16.msra.mxu0 0
      %1272 = vmatprep.mubr.bf16.mxu0 0
      %1273 = vmatmul.mubr.bf16.gmra.mrb[0].mxu0 %v1238
      %v1274 = vpop.f32.mrb[0].mxu0
      %v1275 = vadd.f32 0.0, %v1274
      %v1276 = vpop.f32.mrb[0].mxu0
      %v1277 = vpop.f32.mrb[0].mxu0
      %v1278 = vadd.f32 0.0, %v1277
      %v1279 = vpop.f32.mrb[0].mxu0
      %1280 = vdwg.mxu0
      %v1281 = vadd.f32 %v1173, %v1275
      %v1282 = vadd.f32 %v1174, %v1278
      %s1283 = scalar_lea.vmem %s3, 48
      %v1284 = vld [vmem:[%s1283] sm:$0xf]
      %v1285 = vld [vmem:[%s1283 + $0x4] sm:$0xf]
      %v1288 = vunpack.c.l.b16 %v1284
      %v1289 = vunpack.c.l.b16 %v1285
      %v1290 = vpack.c.b16 %v1289, %v1288
      %v1292 = vsel %vm646, %v1290, 0
      %1294 = vmatprep.subr.bf16.mxu0 0
      %1295 = vmatpush1.bf16.msra.mxu0 %v635
      %1296 = vmatprep.subr.bf16.mxu0 0
      %1297 = vmatpush1.bf16.msra.mxu0 %v636
      %1298 = vmatprep.subr.bf16.mxu0 0
      %1299 = vmatpush1.bf16.msra.mxu0 %v637
      %1300 = vmatprep.subr.bf16.mxu0 0
      %1301 = vmatpush1.bf16.msra.mxu0 %v638
      %1302 = vmatprep.subr.bf16.mxu0 0
      %1303 = vmatpush1.bf16.msra.mxu0 0
      %1304 = vmatprep.subr.bf16.mxu0 0
      %1305 = vmatpush1.bf16.msra.mxu0 0
      %1306 = vmatprep.subr.bf16.mxu0 0
      %1307 = vmatpush1.bf16.msra.mxu0 0
      %1308 = vmatprep.subr.bf16.mxu0 0
      %1309 = vmatpush1.bf16.msra.mxu0 0
      %1310 = vmatprep.subr.bf16.mxu0 0
      %1311 = vmatpush1.bf16.msra.mxu0 0
      %1312 = vmatprep.subr.bf16.mxu0 0
      %1313 = vmatpush1.bf16.msra.mxu0 0
      %1314 = vmatprep.subr.bf16.mxu0 0
      %1315 = vmatpush1.bf16.msra.mxu0 0
      %1316 = vmatprep.subr.bf16.mxu0 0
      %1317 = vmatpush1.bf16.msra.mxu0 0
      %1318 = vmatprep.subr.bf16.mxu0 0
      %1319 = vmatpush1.bf16.msra.mxu0 0
      %1320 = vmatprep.subr.bf16.mxu0 0
      %1321 = vmatpush1.bf16.msra.mxu0 0
      %1322 = vmatprep.subr.bf16.mxu0 0
      %1323 = vmatpush1.bf16.msra.mxu0 0
      %1324 = vmatprep.subr.bf16.mxu0 0
      %1325 = vmatpush1.bf16.msra.mxu0 0
      %1326 = vmatprep.mubr.bf16.mxu0 0
      %1327 = vmatmul.mubr.bf16.gmra.mrb[0].mxu0 %v1292
      %v1328 = vpop.f32.mrb[0].mxu0
      %v1329 = vadd.f32 0.0, %v1328
      %v1330 = vpop.f32.mrb[0].mxu0
      %v1331 = vpop.f32.mrb[0].mxu0
      %v1332 = vadd.f32 0.0, %v1331
      %v1333 = vpop.f32.mrb[0].mxu0
      %1334 = vdwg.mxu0
      %v1335 = vpack.c.bf16 %v1332, %v1329
      %s1336 = scalar_lea.vmem %s4, 48
      %v1337 = vld [vmem:[%s1336] sm:$0xf]
      %v1338 = vld [vmem:[%s1336 + $0x4] sm:$0xf]
      %v1341 = vunpack.c.l.b16 %v1337
      %v1342 = vunpack.c.l.b16 %v1338
      %v1343 = vpack.c.b16 %v1342, %v1341
      %v1346 = vsel %vm756, %v1335, 0
      %1348 = vmatprep.subr.bf16.mxu0 0
      %1349 = vmatpush1.bf16.msra.mxu0 %v1343
      %1350 = vmatprep.subr.bf16.mxu0 0
      %1351 = vmatpush1.bf16.msra.mxu0 0
      %1352 = vmatprep.subr.bf16.mxu0 0
      %1353 = vmatpush1.bf16.msra.mxu0 0
      %1354 = vmatprep.subr.bf16.mxu0 0
      %1355 = vmatpush1.bf16.msra.mxu0 0
      %1356 = vmatprep.subr.bf16.mxu0 0
      %1357 = vmatpush1.bf16.msra.mxu0 0
      %1358 = vmatprep.subr.bf16.mxu0 0
      %1359 = vmatpush1.bf16.msra.mxu0 0
      %1360 = vmatprep.subr.bf16.mxu0 0
      %1361 = vmatpush1.bf16.msra.mxu0 0
      %1362 = vmatprep.subr.bf16.mxu0 0
      %1363 = vmatpush1.bf16.msra.mxu0 0
      %1364 = vmatprep.subr.bf16.mxu0 0
      %1365 = vmatpush1.bf16.msra.mxu0 0
      %1366 = vmatprep.subr.bf16.mxu0 0
      %1367 = vmatpush1.bf16.msra.mxu0 0
      %1368 = vmatprep.subr.bf16.mxu0 0
      %1369 = vmatpush1.bf16.msra.mxu0 0
      %1370 = vmatprep.subr.bf16.mxu0 0
      %1371 = vmatpush1.bf16.msra.mxu0 0
      %1372 = vmatprep.subr.bf16.mxu0 0
      %1373 = vmatpush1.bf16.msra.mxu0 0
      %1374 = vmatprep.subr.bf16.mxu0 0
      %1375 = vmatpush1.bf16.msra.mxu0 0
      %1376 = vmatprep.subr.bf16.mxu0 0
      %1377 = vmatpush1.bf16.msra.mxu0 0
      %1378 = vmatprep.subr.bf16.mxu0 0
      %1379 = vmatpush1.bf16.msra.mxu0 0
      %1380 = vmatprep.mubr.bf16.mxu0 0
      %1381 = vmatmul.mubr.bf16.gmra.mrb[0].mxu0 %v1346
      %v1382 = vpop.f32.mrb[0].mxu0
      %v1383 = vadd.f32 0.0, %v1382
      %v1384 = vpop.f32.mrb[0].mxu0
      %v1385 = vpop.f32.mrb[0].mxu0
      %v1386 = vadd.f32 0.0, %v1385
      %v1387 = vpop.f32.mrb[0].mxu0
      %1388 = vdwg.mxu0
      %v1389 = vadd.f32 %v1281, %v1383
      %v1390 = vadd.f32 %v1282, %v1386
      %s1391 = scalar_lea.vmem %s3, 56
      %v1392 = vld [vmem:[%s1391] sm:$0xf]
      %v1393 = vld [vmem:[%s1391 + $0x4] sm:$0xf]
      %v1396 = vunpack.c.l.b16 %v1392
      %v1397 = vunpack.c.l.b16 %v1393
      %v1398 = vpack.c.b16 %v1397, %v1396
      %v1400 = vsel %vm646, %v1398, 0
      %1402 = vmatprep.subr.bf16.mxu0 0
      %1403 = vmatpush1.bf16.msra.mxu0 %v635
      %1404 = vmatprep.subr.bf16.mxu0 0
      %1405 = vmatpush1.bf16.msra.mxu0 %v636
      %1406 = vmatprep.subr.bf16.mxu0 0
      %1407 = vmatpush1.bf16.msra.mxu0 %v637
      %1408 = vmatprep.subr.bf16.mxu0 0
      %1409 = vmatpush1.bf16.msra.mxu0 %v638
      %1410 = vmatprep.subr.bf16.mxu0 0
      %1411 = vmatpush1.bf16.msra.mxu0 0
      %1412 = vmatprep.subr.bf16.mxu0 0
      %1413 = vmatpush1.bf16.msra.mxu0 0
      %1414 = vmatprep.subr.bf16.mxu0 0
      %1415 = vmatpush1.bf16.msra.mxu0 0
      %1416 = vmatprep.subr.bf16.mxu0 0
      %1417 = vmatpush1.bf16.msra.mxu0 0
      %1418 = vmatprep.subr.bf16.mxu0 0
      %1419 = vmatpush1.bf16.msra.mxu0 0
      %1420 = vmatprep.subr.bf16.mxu0 0
      %1421 = vmatpush1.bf16.msra.mxu0 0
      %1422 = vmatprep.subr.bf16.mxu0 0
      %1423 = vmatpush1.bf16.msra.mxu0 0
      %1424 = vmatprep.subr.bf16.mxu0 0
      %1425 = vmatpush1.bf16.msra.mxu0 0
      %1426 = vmatprep.subr.bf16.mxu0 0
      %1427 = vmatpush1.bf16.msra.mxu0 0
      %1428 = vmatprep.subr.bf16.mxu0 0
      %1429 = vmatpush1.bf16.msra.mxu0 0
      %1430 = vmatprep.subr.bf16.mxu0 0
      %1431 = vmatpush1.bf16.msra.mxu0 0
      %1432 = vmatprep.subr.bf16.mxu0 0
      %1433 = vmatpush1.bf16.msra.mxu0 0
      %1434 = vmatprep.mubr.bf16.mxu0 0
      %1435 = vmatmul.mubr.bf16.gmra.mrb[0].mxu0 %v1400
      %v1436 = vpop.f32.mrb[0].mxu0
      %v1437 = vadd.f32 0.0, %v1436
      %v1438 = vpop.f32.mrb[0].mxu0
      %v1439 = vpop.f32.mrb[0].mxu0
      %v1440 = vadd.f32 0.0, %v1439
      %v1441 = vpop.f32.mrb[0].mxu0
      %1442 = vdwg.mxu0
      %v1443 = vpack.c.bf16 %v1440, %v1437
      %s1444 = scalar_lea.vmem %s4, 56
      %v1445 = vld [vmem:[%s1444] sm:$0xf]
      %v1446 = vld [vmem:[%s1444 + $0x4] sm:$0xf]
      %v1449 = vunpack.c.l.b16 %v1445
      %v1450 = vunpack.c.l.b16 %v1446
      %v1451 = vpack.c.b16 %v1450, %v1449
      %v1454 = vsel %vm756, %v1443, 0
      %1456 = vmatprep.subr.bf16.mxu0 0
      %1457 = vmatpush1.bf16.msra.mxu0 %v1451
      %1458 = vmatprep.subr.bf16.mxu0 0
      %1459 = vmatpush1.bf16.msra.mxu0 0
      %1460 = vmatprep.subr.bf16.mxu0 0
      %1461 = vmatpush1.bf16.msra.mxu0 0
      %1462 = vmatprep.subr.bf16.mxu0 0
      %1463 = vmatpush1.bf16.msra.mxu0 0
      %1464 = vmatprep.subr.bf16.mxu0 0
      %1465 = vmatpush1.bf16.msra.mxu0 0
      %1466 = vmatprep.subr.bf16.mxu0 0
      %1467 = vmatpush1.bf16.msra.mxu0 0
      %1468 = vmatprep.subr.bf16.mxu0 0
      %1469 = vmatpush1.bf16.msra.mxu0 0
      %1470 = vmatprep.subr.bf16.mxu0 0
      %1471 = vmatpush1.bf16.msra.mxu0 0
      %1472 = vmatprep.subr.bf16.mxu0 0
      %1473 = vmatpush1.bf16.msra.mxu0 0
      %1474 = vmatprep.subr.bf16.mxu0 0
      %1475 = vmatpush1.bf16.msra.mxu0 0
      %1476 = vmatprep.subr.bf16.mxu0 0
      %1477 = vmatpush1.bf16.msra.mxu0 0
      %1478 = vmatprep.subr.bf16.mxu0 0
      %1479 = vmatpush1.bf16.msra.mxu0 0
      %1480 = vmatprep.subr.bf16.mxu0 0
      %1481 = vmatpush1.bf16.msra.mxu0 0
      %1482 = vmatprep.subr.bf16.mxu0 0
      %1483 = vmatpush1.bf16.msra.mxu0 0
      %1484 = vmatprep.subr.bf16.mxu0 0
      %1485 = vmatpush1.bf16.msra.mxu0 0
      %1486 = vmatprep.subr.bf16.mxu0 0
      %1487 = vmatpush1.bf16.msra.mxu0 0
      %1488 = vmatprep.mubr.bf16.mxu0 0
      %1489 = vmatmul.mubr.bf16.gmra.mrb[0].mxu0 %v1454
      %v1490 = vpop.f32.mrb[0].mxu0
      %v1491 = vadd.f32 0.0, %v1490
      %v1492 = vpop.f32.mrb[0].mxu0
      %v1493 = vpop.f32.mrb[0].mxu0
      %v1494 = vadd.f32 0.0, %v1493
      %v1495 = vpop.f32.mrb[0].mxu0
      %1496 = vdwg.mxu0
      %v1497 = vadd.f32 %v1389, %v1491
      %v1498 = vadd.f32 %v1390, %v1494
      %s1499 = scalar_lea.vmem %s3, 64
      %v1500 = vld [vmem:[%s1499] sm:$0xf]
      %v1501 = vld [vmem:[%s1499 + $0x4] sm:$0xf]
      %v1504 = vunpack.c.l.b16 %v1500
      %v1505 = vunpack.c.l.b16 %v1501
      %v1506 = vpack.c.b16 %v1505, %v1504
      %v1508 = vsel %vm646, %v1506, 0
      %1510 = vmatprep.subr.bf16.mxu0 0
      %1511 = vmatpush1.bf16.msra.mxu0 %v635
      %1512 = vmatprep.subr.bf16.mxu0 0
      %1513 = vmatpush1.bf16.msra.mxu0 %v636
      %1514 = vmatprep.subr.bf16.mxu0 0
      %1515 = vmatpush1.bf16.msra.mxu0 %v637
      %1516 = vmatprep.subr.bf16.mxu0 0
      %1517 = vmatpush1.bf16.msra.mxu0 %v638
      %1518 = vmatprep.subr.bf16.mxu0 0
      %1519 = vmatpush1.bf16.msra.mxu0 0
      %1520 = vmatprep.subr.bf16.mxu0 0
      %1521 = vmatpush1.bf16.msra.mxu0 0
      %1522 = vmatprep.subr.bf16.mxu0 0
      %1523 = vmatpush1.bf16.msra.mxu0 0
      %1524 = vmatprep.subr.bf16.mxu0 0
      %1525 = vmatpush1.bf16.msra.mxu0 0
      %1526 = vmatprep.subr.bf16.mxu0 0
      %1527 = vmatpush1.bf16.msra.mxu0 0
      %1528 = vmatprep.subr.bf16.mxu0 0
      %1529 = vmatpush1.bf16.msra.mxu0 0
      %1530 = vmatprep.subr.bf16.mxu0 0
      %1531 = vmatpush1.bf16.msra.mxu0 0
      %1532 = vmatprep.subr.bf16.mxu0 0
      %1533 = vmatpush1.bf16.msra.mxu0 0
      %1534 = vmatprep.subr.bf16.mxu0 0
      %1535 = vmatpush1.bf16.msra.mxu0 0
      %1536 = vmatprep.subr.bf16.mxu0 0
      %1537 = vmatpush1.bf16.msra.mxu0 0
      %1538 = vmatprep.subr.bf16.mxu0 0
      %1539 = vmatpush1.bf16.msra.mxu0 0
      %1540 = vmatprep.subr.bf16.mxu0 0
      %1541 = vmatpush1.bf16.msra.mxu0 0
      %1542 = vmatprep.mubr.bf16.mxu0 0
      %1543 = vmatmul.mubr.bf16.gmra.mrb[0].mxu0 %v1508
      %v1544 = vpop.f32.mrb[0].mxu0
      %v1545 = vadd.f32 0.0, %v1544
      %v1546 = vpop.f32.mrb[0].mxu0
      %v1547 = vpop.f32.mrb[0].mxu0
      %v1548 = vadd.f32 0.0, %v1547
      %v1549 = vpop.f32.mrb[0].mxu0
      %1550 = vdwg.mxu0
      %v1551 = vpack.c.bf16 %v1548, %v1545
      %s1552 = scalar_lea.vmem %s4, 64
      %v1553 = vld [vmem:[%s1552] sm:$0xf]
      %v1554 = vld [vmem:[%s1552 + $0x4] sm:$0xf]
      %v1557 = vunpack.c.l.b16 %v1553
      %v1558 = vunpack.c.l.b16 %v1554
      %v1559 = vpack.c.b16 %v1558, %v1557
      %v1562 = vsel %vm756, %v1551, 0
      %1564 = vmatprep.subr.bf16.mxu0 0
      %1565 = vmatpush1.bf16.msra.mxu0 %v1559
      %1566 = vmatprep.subr.bf16.mxu0 0
      %1567 = vmatpush1.bf16.msra.mxu0 0
      %1568 = vmatprep.subr.bf16.mxu0 0
      %1569 = vmatpush1.bf16.msra.mxu0 0
      %1570 = vmatprep.subr.bf16.mxu0 0
      %1571 = vmatpush1.bf16.msra.mxu0 0
      %1572 = vmatprep.subr.bf16.mxu0 0
      %1573 = vmatpush1.bf16.msra.mxu0 0
      %1574 = vmatprep.subr.bf16.mxu0 0
      %1575 = vmatpush1.bf16.msra.mxu0 0
      %1576 = vmatprep.subr.bf16.mxu0 0
      %1577 = vmatpush1.bf16.msra.mxu0 0
      %1578 = vmatprep.subr.bf16.mxu0 0
      %1579 = vmatpush1.bf16.msra.mxu0 0
      %1580 = vmatprep.subr.bf16.mxu0 0
      %1581 = vmatpush1.bf16.msra.mxu0 0
      %1582 = vmatprep.subr.bf16.mxu0 0
      %1583 = vmatpush1.bf16.msra.mxu0 0
      %1584 = vmatprep.subr.bf16.mxu0 0
      %1585 = vmatpush1.bf16.msra.mxu0 0
      %1586 = vmatprep.subr.bf16.mxu0 0
      %1587 = vmatpush1.bf16.msra.mxu0 0
      %1588 = vmatprep.subr.bf16.mxu0 0
      %1589 = vmatpush1.bf16.msra.mxu0 0
      %1590 = vmatprep.subr.bf16.mxu0 0
      %1591 = vmatpush1.bf16.msra.mxu0 0
      %1592 = vmatprep.subr.bf16.mxu0 0
      %1593 = vmatpush1.bf16.msra.mxu0 0
      %1594 = vmatprep.subr.bf16.mxu0 0
      %1595 = vmatpush1.bf16.msra.mxu0 0
      %1596 = vmatprep.mubr.bf16.mxu0 0
      %1597 = vmatmul.mubr.bf16.gmra.mrb[0].mxu0 %v1562
      %v1598 = vpop.f32.mrb[0].mxu0
      %v1599 = vadd.f32 0.0, %v1598
      %v1600 = vpop.f32.mrb[0].mxu0
      %v1601 = vpop.f32.mrb[0].mxu0
      %v1602 = vadd.f32 0.0, %v1601
      %v1603 = vpop.f32.mrb[0].mxu0
      %1604 = vdwg.mxu0
      %v1605 = vadd.f32 %v1497, %v1599
      %v1606 = vadd.f32 %v1498, %v1602
      %v1607 = vld [vmem:[%s5] sm:$0x1]
      %v1609 = vlaneseq
      %v1610 = vshrl.u32 %v1609, 7
      %v1611 = vsub.s32 0, %v1610
      %v1612 = vrot.slane %v1607, %v1611
      %v1614 = vadd.f32 %v1605, %v1612
      %v1615 = vadd.f32 %v1606, %v1612
      %v1616 = vmax.f32 %v1614, 0.0
      %v1617 = vmax.f32 %v1615, 0.0
      %vm1618 = vcmask 64512
      %1619 = vst.msk [vmem:[%s450] sm:$0xff] %vm1618, %v1616
      %1620 = vst.msk [vmem:[%s450 + $0x8] sm:$0xff] %vm1618, %v1617
      %v1621 = vpack.c.bf16 %v1617, %v1616
      %v1622 = vld [vmem:[%s6] sm:$0xf]
      %v1623 = vld [vmem:[%s6 + $0x4] sm:$0xf]
      %v1624 = vld [vmem:[%s6 + $0x8] sm:$0xf]
      %v1625 = vld [vmem:[%s6 + $0xc] sm:$0xf]
      %v1626 = vld [vmem:[%s6 + $0x10] sm:$0xf]
      %v1627 = vld [vmem:[%s6 + $0x14] sm:$0xf]
      %v1628 = vld [vmem:[%s6 + $0x18] sm:$0xf]
      %v1629 = vld [vmem:[%s6 + $0x1c] sm:$0xf]
      %v1638 = vunpack.c.l.b16 %v1622
      %v1639 = vunpack.c.l.b16 %v1623
      %v1640 = vunpack.c.l.b16 %v1624
      %v1641 = vunpack.c.l.b16 %v1625
      %v1642 = vunpack.c.l.b16 %v1626
      %v1643 = vunpack.c.l.b16 %v1627
      %v1644 = vunpack.c.l.b16 %v1628
      %v1645 = vunpack.c.l.b16 %v1629
      %v1646 = vpack.c.b16 %v1639, %v1638
      %v1647 = vpack.c.b16 %v1641, %v1640
      %v1648 = vpack.c.b16 %v1643, %v1642
      %v1649 = vpack.c.b16 %v1645, %v1644
      %v1651 = vsel %vm756, %v1646, 0
      %v1654 = vsel %vm756, %v1647, 0
      %v1657 = vsel %vm756, %v1648, 0
      %v1660 = vsel %vm756, %v1649, 0
      %1662 = vmatprep.subr.bf16.mxu0 0
      %1663 = vmatpush1.bf16.msra.mxu0 %v1621
      %1664 = vmatprep.subr.bf16.mxu0 0
      %1665 = vmatpush1.bf16.msra.mxu0 0
      %1666 = vmatprep.subr.bf16.mxu0 0
      %1667 = vmatpush1.bf16.msra.mxu0 0
      %1668 = vmatprep.subr.bf16.mxu0 0
      %1669 = vmatpush1.bf16.msra.mxu0 0
      %1670 = vmatprep.subr.bf16.mxu0 0
      %1671 = vmatpush1.bf16.msra.mxu0 0
      %1672 = vmatprep.subr.bf16.mxu0 0
      %1673 = vmatpush1.bf16.msra.mxu0 0
      %1674 = vmatprep.subr.bf16.mxu0 0
      %1675 = vmatpush1.bf16.msra.mxu0 0
      %1676 = vmatprep.subr.bf16.mxu0 0
      %1677 = vmatpush1.bf16.msra.mxu0 0
      %1678 = vmatprep.subr.bf16.mxu0 0
      %1679 = vmatpush1.bf16.msra.mxu0 0
      %1680 = vmatprep.subr.bf16.mxu0 0
      %1681 = vmatpush1.bf16.msra.mxu0 0
      %1682 = vmatprep.subr.bf16.mxu0 0
      %1683 = vmatpush1.bf16.msra.mxu0 0
      %1684 = vmatprep.subr.bf16.mxu0 0
      %1685 = vmatpush1.bf16.msra.mxu0 0
      %1686 = vmatprep.subr.bf16.mxu0 0
      %1687 = vmatpush1.bf16.msra.mxu0 0
      %1688 = vmatprep.subr.bf16.mxu0 0
      %1689 = vmatpush1.bf16.msra.mxu0 0
      %1690 = vmatprep.subr.bf16.mxu0 0
      %1691 = vmatpush1.bf16.msra.mxu0 0
      %1692 = vmatprep.subr.bf16.mxu0 0
      %1693 = vmatpush1.bf16.msra.mxu0 0
      %1694 = vmatprep.mubr.bf16.mxu0 0
      %1695 = vmatmul.mubr.bf16.gmra.mrb[0].mxu0 %v1651
      %v1696 = vpop.f32.mrb[0].mxu0
      %v1697 = vadd.f32 0.0, %v1696
      %v1698 = vpop.f32.mrb[0].mxu0
      %v1699 = vpop.f32.mrb[0].mxu0
      %v1700 = vadd.f32 0.0, %v1699
      %v1701 = vpop.f32.mrb[0].mxu0
      %1702 = vmatprep.mubr.bf16.mxu0 0
      %1703 = vmatmul.mubr.bf16.gmra.mrb[0].mxu0 %v1654
      %v1704 = vpop.f32.mrb[0].mxu0
      %v1705 = vadd.f32 0.0, %v1704
      %v1706 = vpop.f32.mrb[0].mxu0
      %v1707 = vpop.f32.mrb[0].mxu0
      %v1708 = vadd.f32 0.0, %v1707
      %v1709 = vpop.f32.mrb[0].mxu0
      %1710 = vmatprep.mubr.bf16.mxu0 0
      %1711 = vmatmul.mubr.bf16.gmra.mrb[0].mxu0 %v1657
      %v1712 = vpop.f32.mrb[0].mxu0
      %v1713 = vadd.f32 0.0, %v1712
      %v1714 = vpop.f32.mrb[0].mxu0
      %v1715 = vpop.f32.mrb[0].mxu0
      %v1716 = vadd.f32 0.0, %v1715
      %v1717 = vpop.f32.mrb[0].mxu0
      %1718 = vmatprep.mubr.bf16.mxu0 0
      %1719 = vmatmul.mubr.bf16.gmra.mrb[0].mxu0 %v1660
      %v1720 = vpop.f32.mrb[0].mxu0
      %v1721 = vadd.f32 0.0, %v1720
      %v1722 = vpop.f32.mrb[0].mxu0
      %v1723 = vpop.f32.mrb[0].mxu0
      %v1724 = vadd.f32 0.0, %v1723
      %v1725 = vpop.f32.mrb[0].mxu0
      %1726 = vdwg.mxu0
      %v1727 = vpack.c.bf16 %v1700, %v1697
      %v1728 = vpack.c.bf16 %v1708, %v1705
      %v1729 = vpack.c.bf16 %v1716, %v1713
      %v1730 = vpack.c.bf16 %v1724, %v1721
      %v1731 = vld [vmem:[%s7] sm:$0xf]
      %s1732 = scalar_lea.vmem %s6, 32
      %v1733 = vld [vmem:[%s1732] sm:$0xf]
      %v1734 = vld [vmem:[%s1732 + $0x4] sm:$0xf]
      %v1735 = vld [vmem:[%s1732 + $0x8] sm:$0xf]
      %v1736 = vld [vmem:[%s1732 + $0xc] sm:$0xf]
      %v1737 = vld [vmem:[%s1732 + $0x10] sm:$0xf]
      %v1738 = vld [vmem:[%s1732 + $0x14] sm:$0xf]
      %v1739 = vld [vmem:[%s1732 + $0x18] sm:$0xf]
      %v1740 = vld [vmem:[%s1732 + $0x1c] sm:$0xf]
      %v1749 = vunpack.c.l.b16 %v1733
      %v1750 = vunpack.c.l.b16 %v1734
      %v1751 = vunpack.c.l.b16 %v1735
      %v1752 = vunpack.c.l.b16 %v1736
      %v1753 = vunpack.c.l.b16 %v1737
      %v1754 = vunpack.c.l.b16 %v1738
      %v1755 = vunpack.c.l.b16 %v1739
      %v1756 = vunpack.c.l.b16 %v1740
      %v1757 = vpack.c.b16 %v1750, %v1749
      %v1758 = vpack.c.b16 %v1752, %v1751
      %v1759 = vpack.c.b16 %v1754, %v1753
      %v1760 = vpack.c.b16 %v1756, %v1755
      %v1762 = vsel %vm756, %v1757, 0
      %v1765 = vsel %vm756, %v1758, 0
      %v1768 = vsel %vm756, %v1759, 0
      %v1771 = vsel %vm756, %v1760, 0
      %1773 = vmatprep.subr.bf16.mxu0 0
      %1774 = vmatpush1.bf16.msra.mxu0 %v1621
      %1775 = vmatprep.subr.bf16.mxu0 0
      %1776 = vmatpush1.bf16.msra.mxu0 0
      %1777 = vmatprep.subr.bf16.mxu0 0
      %1778 = vmatpush1.bf16.msra.mxu0 0
      %1779 = vmatprep.subr.bf16.mxu0 0
      %1780 = vmatpush1.bf16.msra.mxu0 0
      %1781 = vmatprep.subr.bf16.mxu0 0
      %1782 = vmatpush1.bf16.msra.mxu0 0
      %1783 = vmatprep.subr.bf16.mxu0 0
      %1784 = vmatpush1.bf16.msra.mxu0 0
      %1785 = vmatprep.subr.bf16.mxu0 0
      %1786 = vmatpush1.bf16.msra.mxu0 0
      %1787 = vmatprep.subr.bf16.mxu0 0
      %1788 = vmatpush1.bf16.msra.mxu0 0
      %1789 = vmatprep.subr.bf16.mxu0 0
      %1790 = vmatpush1.bf16.msra.mxu0 0
      %1791 = vmatprep.subr.bf16.mxu0 0
      %1792 = vmatpush1.bf16.msra.mxu0 0
      %1793 = vmatprep.subr.bf16.mxu0 0
      %1794 = vmatpush1.bf16.msra.mxu0 0
      %1795 = vmatprep.subr.bf16.mxu0 0
      %1796 = vmatpush1.bf16.msra.mxu0 0
      %1797 = vmatprep.subr.bf16.mxu0 0
      %1798 = vmatpush1.bf16.msra.mxu0 0
      %1799 = vmatprep.subr.bf16.mxu0 0
      %1800 = vmatpush1.bf16.msra.mxu0 0
      %1801 = vmatprep.subr.bf16.mxu0 0
      %1802 = vmatpush1.bf16.msra.mxu0 0
      %1803 = vmatprep.subr.bf16.mxu0 0
      %1804 = vmatpush1.bf16.msra.mxu0 0
      %1805 = vmatprep.mubr.bf16.mxu0 0
      %1806 = vmatmul.mubr.bf16.gmra.mrb[0].mxu0 %v1762
      %v1807 = vpop.f32.mrb[0].mxu0
      %v1808 = vadd.f32 0.0, %v1807
      %v1809 = vpop.f32.mrb[0].mxu0
      %v1810 = vpop.f32.mrb[0].mxu0
      %v1811 = vadd.f32 0.0, %v1810
      %v1812 = vpop.f32.mrb[0].mxu0
      %1813 = vmatprep.mubr.bf16.mxu0 0
      %1814 = vmatmul.mubr.bf16.gmra.mrb[0].mxu0 %v1765
      %v1815 = vpop.f32.mrb[0].mxu0
      %v1816 = vadd.f32 0.0, %v1815
      %v1817 = vpop.f32.mrb[0].mxu0
      %v1818 = vpop.f32.mrb[0].mxu0
      %v1819 = vadd.f32 0.0, %v1818
      %v1820 = vpop.f32.mrb[0].mxu0
      %1821 = vmatprep.mubr.bf16.mxu0 0
      %1822 = vmatmul.mubr.bf16.gmra.mrb[0].mxu0 %v1768
      %v1823 = vpop.f32.mrb[0].mxu0
      %v1824 = vadd.f32 0.0, %v1823
      %v1825 = vpop.f32.mrb[0].mxu0
      %v1826 = vpop.f32.mrb[0].mxu0
      %v1827 = vadd.f32 0.0, %v1826
      %v1828 = vpop.f32.mrb[0].mxu0
      %1829 = vmatprep.mubr.bf16.mxu0 0
      %1830 = vmatmul.mubr.bf16.gmra.mrb[0].mxu0 %v1771
      %v1831 = vpop.f32.mrb[0].mxu0
      %v1832 = vadd.f32 0.0, %v1831
      %v1833 = vpop.f32.mrb[0].mxu0
      %v1834 = vpop.f32.mrb[0].mxu0
      %v1835 = vadd.f32 0.0, %v1834
      %v1836 = vpop.f32.mrb[0].mxu0
      %1837 = vdwg.mxu0
      %v1838 = vpack.c.bf16 %v1811, %v1808
      %v1839 = vpack.c.bf16 %v1819, %v1816
      %v1840 = vpack.c.bf16 %v1827, %v1824
      %v1841 = vpack.c.bf16 %v1835, %v1832
      %s1842 = scalar_lea.vmem %s7, 4
      %v1843 = vld [vmem:[%s1842] sm:$0xf]
      %v1845 = vsel %vm1618, %v1838, 0
      %v1848 = vsel %vm1618, %v1839, 0
      %v1851 = vsel %vm1618, %v1840, 0
      %v1854 = vsel %vm1618, %v1841, 0
      %vm1856 = vcmask 1043456
      %v1858 = vsel %vm1856, %v1843, 0
      %1860 = vmatprep.subr.bf16.mxu0 0
      %1861 = vmatpush1.bf16.msra.mxu0 %v1858
      %1862 = vmatprep.subr.bf16.mxu0 0
      %1863 = vmatpush1.bf16.msra.mxu0 0
      %1864 = vmatprep.subr.bf16.mxu0 0
      %1865 = vmatpush1.bf16.msra.mxu0 0
      %1866 = vmatprep.subr.bf16.mxu0 0
      %1867 = vmatpush1.bf16.msra.mxu0 0
      %1868 = vmatprep.subr.bf16.mxu0 0
      %1869 = vmatpush1.bf16.msra.mxu0 0
      %1870 = vmatprep.subr.bf16.mxu0 0
      %1871 = vmatpush1.bf16.msra.mxu0 0
      %1872 = vmatprep.subr.bf16.mxu0 0
      %1873 = vmatpush1.bf16.msra.mxu0 0
      %1874 = vmatprep.subr.bf16.mxu0 0
      %1875 = vmatpush1.bf16.msra.mxu0 0
      %1876 = vmatprep.subr.bf16.mxu0 0
      %1877 = vmatpush1.bf16.msra.mxu0 0
      %1878 = vmatprep.subr.bf16.mxu0 0
      %1879 = vmatpush1.bf16.msra.mxu0 0
      %1880 = vmatprep.subr.bf16.mxu0 0
      %1881 = vmatpush1.bf16.msra.mxu0 0
      %1882 = vmatprep.subr.bf16.mxu0 0
      %1883 = vmatpush1.bf16.msra.mxu0 0
      %1884 = vmatprep.subr.bf16.mxu0 0
      %1885 = vmatpush1.bf16.msra.mxu0 0
      %1886 = vmatprep.subr.bf16.mxu0 0
      %1887 = vmatpush1.bf16.msra.mxu0 0
      %1888 = vmatprep.subr.bf16.mxu0 0
      %1889 = vmatpush1.bf16.msra.mxu0 0
      %1890 = vmatprep.subr.bf16.mxu0 0
      %1891 = vmatpush1.bf16.msra.mxu0 0
      %1892 = vmatprep.mubr.bf16.mxu0 0
      %1893 = vmatmul.mubr.bf16.gmra.mrb[0].mxu0 %v1845
      %v1894 = vpop.f32.mrb[0].mxu0
      %v1895 = vadd.f32 0.0, %v1894
      %v1896 = vpop.f32.mrb[0].mxu0
      %v1897 = vpop.f32.mrb[0].mxu0
      %v1898 = vadd.f32 0.0, %v1897
      %v1899 = vpop.f32.mrb[0].mxu0
      %1900 = vmatprep.mubr.bf16.mxu0 0
      %1901 = vmatmul.mubr.bf16.gmra.mrb[0].mxu0 %v1848
      %v1902 = vpop.f32.mrb[0].mxu0
      %v1903 = vadd.f32 0.0, %v1902
      %v1904 = vpop.f32.mrb[0].mxu0
      %v1905 = vpop.f32.mrb[0].mxu0
      %v1906 = vadd.f32 0.0, %v1905
      %v1907 = vpop.f32.mrb[0].mxu0
      %1908 = vmatprep.mubr.bf16.mxu0 0
      %1909 = vmatmul.mubr.bf16.gmra.mrb[0].mxu0 %v1851
      %v1910 = vpop.f32.mrb[0].mxu0
      %v1911 = vadd.f32 0.0, %v1910
      %v1912 = vpop.f32.mrb[0].mxu0
      %v1913 = vpop.f32.mrb[0].mxu0
      %v1914 = vadd.f32 0.0, %v1913
      %v1915 = vpop.f32.mrb[0].mxu0
      %1916 = vmatprep.mubr.bf16.mxu0 0
      %1917 = vmatmul.mubr.bf16.gmra.mrb[0].mxu0 %v1854
      %v1918 = vpop.f32.mrb[0].mxu0
      %v1919 = vadd.f32 0.0, %v1918
      %v1920 = vpop.f32.mrb[0].mxu0
      %v1921 = vpop.f32.mrb[0].mxu0
      %v1922 = vadd.f32 0.0, %v1921
      %v1923 = vpop.f32.mrb[0].mxu0
      %1924 = vdwg.mxu0
      %v1926 = vsel %vm1618, %v1727, 0
      %v1929 = vsel %vm1618, %v1728, 0
      %v1932 = vsel %vm1618, %v1729, 0
      %v1935 = vsel %vm1618, %v1730, 0
      %v1938 = vsel %vm1856, %v1731, 0
      %1940 = vmatprep.subr.bf16.mxu0 0
      %1941 = vmatpush1.bf16.msra.mxu0 %v1938
      %1942 = vmatprep.subr.bf16.mxu0 0
      %1943 = vmatpush1.bf16.msra.mxu0 0
      %1944 = vmatprep.subr.bf16.mxu0 0
      %1945 = vmatpush1.bf16.msra.mxu0 0
      %1946 = vmatprep.subr.bf16.mxu0 0
      %1947 = vmatpush1.bf16.msra.mxu0 0
      %1948 = vmatprep.subr.bf16.mxu0 0
      %1949 = vmatpush1.bf16.msra.mxu0 0
      %1950 = vmatprep.subr.bf16.mxu0 0
      %1951 = vmatpush1.bf16.msra.mxu0 0
      %1952 = vmatprep.subr.bf16.mxu0 0
      %1953 = vmatpush1.bf16.msra.mxu0 0
      %1954 = vmatprep.subr.bf16.mxu0 0
      %1955 = vmatpush1.bf16.msra.mxu0 0
      %1956 = vmatprep.subr.bf16.mxu0 0
      %1957 = vmatpush1.bf16.msra.mxu0 0
      %1958 = vmatprep.subr.bf16.mxu0 0
      %1959 = vmatpush1.bf16.msra.mxu0 0
      %1960 = vmatprep.subr.bf16.mxu0 0
      %1961 = vmatpush1.bf16.msra.mxu0 0
      %1962 = vmatprep.subr.bf16.mxu0 0
      %1963 = vmatpush1.bf16.msra.mxu0 0
      %1964 = vmatprep.subr.bf16.mxu0 0
      %1965 = vmatpush1.bf16.msra.mxu0 0
      %1966 = vmatprep.subr.bf16.mxu0 0
      %1967 = vmatpush1.bf16.msra.mxu0 0
      %1968 = vmatprep.subr.bf16.mxu0 0
      %1969 = vmatpush1.bf16.msra.mxu0 0
      %1970 = vmatprep.subr.bf16.mxu0 0
      %1971 = vmatpush1.bf16.msra.mxu0 0
      %1972 = vmatprep.mubr.bf16.mxu0 0
      %1973 = vmatmul.mubr.bf16.gmra.mrb[0].mxu0 %v1926
      %v1974 = vpop.f32.mrb[0].mxu0
      %v1975 = vadd.f32 %v1895, %v1974
      %v1976 = vpop.f32.mrb[0].mxu0
      %v1977 = vpop.f32.mrb[0].mxu0
      %v1978 = vadd.f32 %v1898, %v1977
      %v1979 = vpop.f32.mrb[0].mxu0
      %1980 = vmatprep.mubr.bf16.mxu0 0
      %1981 = vmatmul.mubr.bf16.gmra.mrb[0].mxu0 %v1929
      %v1982 = vpop.f32.mrb[0].mxu0
      %v1983 = vadd.f32 %v1903, %v1982
      %v1984 = vpop.f32.mrb[0].mxu0
      %v1985 = vpop.f32.mrb[0].mxu0
      %v1986 = vadd.f32 %v1906, %v1985
      %v1987 = vpop.f32.mrb[0].mxu0
      %1988 = vmatprep.mubr.bf16.mxu0 0
      %1989 = vmatmul.mubr.bf16.gmra.mrb[0].mxu0 %v1932
      %v1990 = vpop.f32.mrb[0].mxu0
      %v1991 = vadd.f32 %v1911, %v1990
      %v1992 = vpop.f32.mrb[0].mxu0
      %v1993 = vpop.f32.mrb[0].mxu0
      %v1994 = vadd.f32 %v1914, %v1993
      %v1995 = vpop.f32.mrb[0].mxu0
      %1996 = vmatprep.mubr.bf16.mxu0 0
      %1997 = vmatmul.mubr.bf16.gmra.mrb[0].mxu0 %v1935
      %v1998 = vpop.f32.mrb[0].mxu0
      %v1999 = vadd.f32 %v1919, %v1998
      %v2000 = vpop.f32.mrb[0].mxu0
      %v2001 = vpop.f32.mrb[0].mxu0
      %v2002 = vadd.f32 %v1922, %v2001
      %v2003 = vpop.f32.mrb[0].mxu0
      %2004 = vdwg.mxu0
      %s2005 = scalar_lea.vmem %s6, 64
      %v2006 = vld [vmem:[%s2005] sm:$0xf]
      %v2007 = vld [vmem:[%s2005 + $0x4] sm:$0xf]
      %v2008 = vld [vmem:[%s2005 + $0x8] sm:$0xf]
      %v2009 = vld [vmem:[%s2005 + $0xc] sm:$0xf]
      %v2010 = vld [vmem:[%s2005 + $0x10] sm:$0xf]
      %v2011 = vld [vmem:[%s2005 + $0x14] sm:$0xf]
      %v2012 = vld [vmem:[%s2005 + $0x18] sm:$0xf]
      %v2013 = vld [vmem:[%s2005 + $0x1c] sm:$0xf]
      %v2022 = vunpack.c.l.b16 %v2006
      %v2023 = vunpack.c.l.b16 %v2007
      %v2024 = vunpack.c.l.b16 %v2008
      %v2025 = vunpack.c.l.b16 %v2009
      %v2026 = vunpack.c.l.b16 %v2010
      %v2027 = vunpack.c.l.b16 %v2011
      %v2028 = vunpack.c.l.b16 %v2012
      %v2029 = vunpack.c.l.b16 %v2013
      %v2030 = vpack.c.b16 %v2023, %v2022
      %v2031 = vpack.c.b16 %v2025, %v2024
      %v2032 = vpack.c.b16 %v2027, %v2026
      %v2033 = vpack.c.b16 %v2029, %v2028
      %v2035 = vsel %vm756, %v2030, 0
      %v2038 = vsel %vm756, %v2031, 0
      %v2041 = vsel %vm756, %v2032, 0
      %v2044 = vsel %vm756, %v2033, 0
      %2046 = vmatprep.subr.bf16.mxu0 0
      %2047 = vmatpush1.bf16.msra.mxu0 %v1621
      %2048 = vmatprep.subr.bf16.mxu0 0
      %2049 = vmatpush1.bf16.msra.mxu0 0
      %2050 = vmatprep.subr.bf16.mxu0 0
      %2051 = vmatpush1.bf16.msra.mxu0 0
      %2052 = vmatprep.subr.bf16.mxu0 0
      %2053 = vmatpush1.bf16.msra.mxu0 0
      %2054 = vmatprep.subr.bf16.mxu0 0
      %2055 = vmatpush1.bf16.msra.mxu0 0
      %2056 = vmatprep.subr.bf16.mxu0 0
      %2057 = vmatpush1.bf16.msra.mxu0 0
      %2058 = vmatprep.subr.bf16.mxu0 0
      %2059 = vmatpush1.bf16.msra.mxu0 0
      %2060 = vmatprep.subr.bf16.mxu0 0
      %2061 = vmatpush1.bf16.msra.mxu0 0
      %2062 = vmatprep.subr.bf16.mxu0 0
      %2063 = vmatpush1.bf16.msra.mxu0 0
      %2064 = vmatprep.subr.bf16.mxu0 0
      %2065 = vmatpush1.bf16.msra.mxu0 0
      %2066 = vmatprep.subr.bf16.mxu0 0
      %2067 = vmatpush1.bf16.msra.mxu0 0
      %2068 = vmatprep.subr.bf16.mxu0 0
      %2069 = vmatpush1.bf16.msra.mxu0 0
      %2070 = vmatprep.subr.bf16.mxu0 0
      %2071 = vmatpush1.bf16.msra.mxu0 0
      %2072 = vmatprep.subr.bf16.mxu0 0
      %2073 = vmatpush1.bf16.msra.mxu0 0
      %2074 = vmatprep.subr.bf16.mxu0 0
      %2075 = vmatpush1.bf16.msra.mxu0 0
      %2076 = vmatprep.subr.bf16.mxu0 0
      %2077 = vmatpush1.bf16.msra.mxu0 0
      %2078 = vmatprep.mubr.bf16.mxu0 0
      %2079 = vmatmul.mubr.bf16.gmra.mrb[0].mxu0 %v2035
      %v2080 = vpop.f32.mrb[0].mxu0
      %v2081 = vadd.f32 0.0, %v2080
      %v2082 = vpop.f32.mrb[0].mxu0
      %v2083 = vpop.f32.mrb[0].mxu0
      %v2084 = vadd.f32 0.0, %v2083
      %v2085 = vpop.f32.mrb[0].mxu0
      %2086 = vmatprep.mubr.bf16.mxu0 0
      %2087 = vmatmul.mubr.bf16.gmra.mrb[0].mxu0 %v2038
      %v2088 = vpop.f32.mrb[0].mxu0
      %v2089 = vadd.f32 0.0, %v2088
      %v2090 = vpop.f32.mrb[0].mxu0
      %v2091 = vpop.f32.mrb[0].mxu0
      %v2092 = vadd.f32 0.0, %v2091
      %v2093 = vpop.f32.mrb[0].mxu0
      %2094 = vmatprep.mubr.bf16.mxu0 0
      %2095 = vmatmul.mubr.bf16.gmra.mrb[0].mxu0 %v2041
      %v2096 = vpop.f32.mrb[0].mxu0
      %v2097 = vadd.f32 0.0, %v2096
      %v2098 = vpop.f32.mrb[0].mxu0
      %v2099 = vpop.f32.mrb[0].mxu0
      %v2100 = vadd.f32 0.0, %v2099
      %v2101 = vpop.f32.mrb[0].mxu0
      %2102 = vmatprep.mubr.bf16.mxu0 0
      %2103 = vmatmul.mubr.bf16.gmra.mrb[0].mxu0 %v2044
      %v2104 = vpop.f32.mrb[0].mxu0
      %v2105 = vadd.f32 0.0, %v2104
      %v2106 = vpop.f32.mrb[0].mxu0
      %v2107 = vpop.f32.mrb[0].mxu0
      %v2108 = vadd.f32 0.0, %v2107
      %v2109 = vpop.f32.mrb[0].mxu0
      %2110 = vdwg.mxu0
      %v2111 = vpack.c.bf16 %v2084, %v2081
      %v2112 = vpack.c.bf16 %v2092, %v2089
      %v2113 = vpack.c.bf16 %v2100, %v2097
      %v2114 = vpack.c.bf16 %v2108, %v2105
      %s2115 = scalar_lea.vmem %s7, 8
      %v2116 = vld [vmem:[%s2115] sm:$0xf]
      %v2118 = vsel %vm1618, %v2111, 0
      %v2121 = vsel %vm1618, %v2112, 0
      %v2124 = vsel %vm1618, %v2113, 0
      %v2127 = vsel %vm1618, %v2114, 0
      %v2130 = vsel %vm1856, %v2116, 0
      %2132 = vmatprep.subr.bf16.mxu0 0
      %2133 = vmatpush1.bf16.msra.mxu0 %v2130
      %2134 = vmatprep.subr.bf16.mxu0 0
      %2135 = vmatpush1.bf16.msra.mxu0 0
      %2136 = vmatprep.subr.bf16.mxu0 0
      %2137 = vmatpush1.bf16.msra.mxu0 0
      %2138 = vmatprep.subr.bf16.mxu0 0
      %2139 = vmatpush1.bf16.msra.mxu0 0
      %2140 = vmatprep.subr.bf16.mxu0 0
      %2141 = vmatpush1.bf16.msra.mxu0 0
      %2142 = vmatprep.subr.bf16.mxu0 0
      %2143 = vmatpush1.bf16.msra.mxu0 0
      %2144 = vmatprep.subr.bf16.mxu0 0
      %2145 = vmatpush1.bf16.msra.mxu0 0
      %2146 = vmatprep.subr.bf16.mxu0 0
      %2147 = vmatpush1.bf16.msra.mxu0 0
      %2148 = vmatprep.subr.bf16.mxu0 0
      %2149 = vmatpush1.bf16.msra.mxu0 0
      %2150 = vmatprep.subr.bf16.mxu0 0
      %2151 = vmatpush1.bf16.msra.mxu0 0
      %2152 = vmatprep.subr.bf16.mxu0 0
      %2153 = vmatpush1.bf16.msra.mxu0 0
      %2154 = vmatprep.subr.bf16.mxu0 0
      %2155 = vmatpush1.bf16.msra.mxu0 0
      %2156 = vmatprep.subr.bf16.mxu0 0
      %2157 = vmatpush1.bf16.msra.mxu0 0
      %2158 = vmatprep.subr.bf16.mxu0 0
      %2159 = vmatpush1.bf16.msra.mxu0 0
      %2160 = vmatprep.subr.bf16.mxu0 0
      %2161 = vmatpush1.bf16.msra.mxu0 0
      %2162 = vmatprep.subr.bf16.mxu0 0
      %2163 = vmatpush1.bf16.msra.mxu0 0
      %2164 = vmatprep.mubr.bf16.mxu0 0
      %2165 = vmatmul.mubr.bf16.gmra.mrb[0].mxu0 %v2118
      %v2166 = vpop.f32.mrb[0].mxu0
      %v2167 = vadd.f32 0.0, %v2166
      %v2168 = vpop.f32.mrb[0].mxu0
      %v2169 = vpop.f32.mrb[0].mxu0
      %v2170 = vadd.f32 0.0, %v2169
      %v2171 = vpop.f32.mrb[0].mxu0
      %2172 = vmatprep.mubr.bf16.mxu0 0
      %2173 = vmatmul.mubr.bf16.gmra.mrb[0].mxu0 %v2121
      %v2174 = vpop.f32.mrb[0].mxu0
      %v2175 = vadd.f32 0.0, %v2174
      %v2176 = vpop.f32.mrb[0].mxu0
      %v2177 = vpop.f32.mrb[0].mxu0
      %v2178 = vadd.f32 0.0, %v2177
      %v2179 = vpop.f32.mrb[0].mxu0
      %2180 = vmatprep.mubr.bf16.mxu0 0
      %2181 = vmatmul.mubr.bf16.gmra.mrb[0].mxu0 %v2124
      %v2182 = vpop.f32.mrb[0].mxu0
      %v2183 = vadd.f32 0.0, %v2182
      %v2184 = vpop.f32.mrb[0].mxu0
      %v2185 = vpop.f32.mrb[0].mxu0
      %v2186 = vadd.f32 0.0, %v2185
      %v2187 = vpop.f32.mrb[0].mxu0
      %2188 = vmatprep.mubr.bf16.mxu0 0
      %2189 = vmatmul.mubr.bf16.gmra.mrb[0].mxu0 %v2127
      %v2190 = vpop.f32.mrb[0].mxu0
      %v2191 = vadd.f32 0.0, %v2190
      %v2192 = vpop.f32.mrb[0].mxu0
      %v2193 = vpop.f32.mrb[0].mxu0
      %v2194 = vadd.f32 0.0, %v2193
      %v2195 = vpop.f32.mrb[0].mxu0
      %2196 = vdwg.mxu0
      %v2197 = vadd.f32 %v1975, %v2167
      %v2198 = vadd.f32 %v1978, %v2170
      %v2199 = vadd.f32 %v1983, %v2175
      %v2200 = vadd.f32 %v1986, %v2178
      %v2201 = vadd.f32 %v1991, %v2183
      %v2202 = vadd.f32 %v1994, %v2186
      %v2203 = vadd.f32 %v1999, %v2191
      %v2204 = vadd.f32 %v2002, %v2194
      %s2205 = scalar_lea.vmem %s6, 96
      %v2206 = vld [vmem:[%s2205] sm:$0xf]
      %v2207 = vld [vmem:[%s2205 + $0x4] sm:$0xf]
      %v2208 = vld [vmem:[%s2205 + $0x8] sm:$0xf]
      %v2209 = vld [vmem:[%s2205 + $0xc] sm:$0xf]
      %v2210 = vld [vmem:[%s2205 + $0x10] sm:$0xf]
      %v2211 = vld [vmem:[%s2205 + $0x14] sm:$0xf]
      %v2212 = vld [vmem:[%s2205 + $0x18] sm:$0xf]
      %v2213 = vld [vmem:[%s2205 + $0x1c] sm:$0xf]
      %v2222 = vunpack.c.l.b16 %v2206
      %v2223 = vunpack.c.l.b16 %v2207
      %v2224 = vunpack.c.l.b16 %v2208
      %v2225 = vunpack.c.l.b16 %v2209
      %v2226 = vunpack.c.l.b16 %v2210
      %v2227 = vunpack.c.l.b16 %v2211
      %v2228 = vunpack.c.l.b16 %v2212
      %v2229 = vunpack.c.l.b16 %v2213
      %v2230 = vpack.c.b16 %v2223, %v2222
      %v2231 = vpack.c.b16 %v2225, %v2224
      %v2232 = vpack.c.b16 %v2227, %v2226
      %v2233 = vpack.c.b16 %v2229, %v2228
      %v2235 = vsel %vm756, %v2230, 0
      %v2238 = vsel %vm756, %v2231, 0
      %v2241 = vsel %vm756, %v2232, 0
      %v2244 = vsel %vm756, %v2233, 0
      %2246 = vmatprep.subr.bf16.mxu0 0
      %2247 = vmatpush1.bf16.msra.mxu0 %v1621
      %2248 = vmatprep.subr.bf16.mxu0 0
      %2249 = vmatpush1.bf16.msra.mxu0 0
      %2250 = vmatprep.subr.bf16.mxu0 0
      %2251 = vmatpush1.bf16.msra.mxu0 0
      %2252 = vmatprep.subr.bf16.mxu0 0
      %2253 = vmatpush1.bf16.msra.mxu0 0
      %2254 = vmatprep.subr.bf16.mxu0 0
      %2255 = vmatpush1.bf16.msra.mxu0 0
      %2256 = vmatprep.subr.bf16.mxu0 0
      %2257 = vmatpush1.bf16.msra.mxu0 0
      %2258 = vmatprep.subr.bf16.mxu0 0
      %2259 = vmatpush1.bf16.msra.mxu0 0
      %2260 = vmatprep.subr.bf16.mxu0 0
      %2261 = vmatpush1.bf16.msra.mxu0 0
      %2262 = vmatprep.subr.bf16.mxu0 0
      %2263 = vmatpush1.bf16.msra.mxu0 0
      %2264 = vmatprep.subr.bf16.mxu0 0
      %2265 = vmatpush1.bf16.msra.mxu0 0
      %2266 = vmatprep.subr.bf16.mxu0 0
      %2267 = vmatpush1.bf16.msra.mxu0 0
      %2268 = vmatprep.subr.bf16.mxu0 0
      %2269 = vmatpush1.bf16.msra.mxu0 0
      %2270 = vmatprep.subr.bf16.mxu0 0
      %2271 = vmatpush1.bf16.msra.mxu0 0
      %2272 = vmatprep.subr.bf16.mxu0 0
      %2273 = vmatpush1.bf16.msra.mxu0 0
      %2274 = vmatprep.subr.bf16.mxu0 0
      %2275 = vmatpush1.bf16.msra.mxu0 0
      %2276 = vmatprep.subr.bf16.mxu0 0
      %2277 = vmatpush1.bf16.msra.mxu0 0
      %2278 = vmatprep.mubr.bf16.mxu0 0
      %2279 = vmatmul.mubr.bf16.gmra.mrb[0].mxu0 %v2235
      %v2280 = vpop.f32.mrb[0].mxu0
      %v2281 = vadd.f32 0.0, %v2280
      %v2282 = vpop.f32.mrb[0].mxu0
      %v2283 = vpop.f32.mrb[0].mxu0
      %v2284 = vadd.f32 0.0, %v2283
      %v2285 = vpop.f32.mrb[0].mxu0
      %2286 = vmatprep.mubr.bf16.mxu0 0
      %2287 = vmatmul.mubr.bf16.gmra.mrb[0].mxu0 %v2238
      %v2288 = vpop.f32.mrb[0].mxu0
      %v2289 = vadd.f32 0.0, %v2288
      %v2290 = vpop.f32.mrb[0].mxu0
      %v2291 = vpop.f32.mrb[0].mxu0
      %v2292 = vadd.f32 0.0, %v2291
      %v2293 = vpop.f32.mrb[0].mxu0
      %2294 = vmatprep.mubr.bf16.mxu0 0
      %2295 = vmatmul.mubr.bf16.gmra.mrb[0].mxu0 %v2241
      %v2296 = vpop.f32.mrb[0].mxu0
      %v2297 = vadd.f32 0.0, %v2296
      %v2298 = vpop.f32.mrb[0].mxu0
      %v2299 = vpop.f32.mrb[0].mxu0
      %v2300 = vadd.f32 0.0, %v2299
      %v2301 = vpop.f32.mrb[0].mxu0
      %2302 = vmatprep.mubr.bf16.mxu0 0
      %2303 = vmatmul.mubr.bf16.gmra.mrb[0].mxu0 %v2244
      %v2304 = vpop.f32.mrb[0].mxu0
      %v2305 = vadd.f32 0.0, %v2304
      %v2306 = vpop.f32.mrb[0].mxu0
      %v2307 = vpop.f32.mrb[0].mxu0
      %v2308 = vadd.f32 0.0, %v2307
      %v2309 = vpop.f32.mrb[0].mxu0
      %2310 = vdwg.mxu0
      %v2311 = vpack.c.bf16 %v2284, %v2281
      %v2312 = vpack.c.bf16 %v2292, %v2289
      %v2313 = vpack.c.bf16 %v2300, %v2297
      %v2314 = vpack.c.bf16 %v2308, %v2305
      %s2315 = scalar_lea.vmem %s7, 12
      %v2316 = vld [vmem:[%s2315] sm:$0xf]
      %v2318 = vsel %vm1618, %v2311, 0
      %v2321 = vsel %vm1618, %v2312, 0
      %v2324 = vsel %vm1618, %v2313, 0
      %v2327 = vsel %vm1618, %v2314, 0
      %v2330 = vsel %vm1856, %v2316, 0
      %2332 = vmatprep.subr.bf16.mxu0 0
      %2333 = vmatpush1.bf16.msra.mxu0 %v2330
      %2334 = vmatprep.subr.bf16.mxu0 0
      %2335 = vmatpush1.bf16.msra.mxu0 0
      %2336 = vmatprep.subr.bf16.mxu0 0
      %2337 = vmatpush1.bf16.msra.mxu0 0
      %2338 = vmatprep.subr.bf16.mxu0 0
      %2339 = vmatpush1.bf16.msra.mxu0 0
      %2340 = vmatprep.subr.bf16.mxu0 0
      %2341 = vmatpush1.bf16.msra.mxu0 0
      %2342 = vmatprep.subr.bf16.mxu0 0
      %2343 = vmatpush1.bf16.msra.mxu0 0
      %2344 = vmatprep.subr.bf16.mxu0 0
      %2345 = vmatpush1.bf16.msra.mxu0 0
      %2346 = vmatprep.subr.bf16.mxu0 0
      %2347 = vmatpush1.bf16.msra.mxu0 0
      %2348 = vmatprep.subr.bf16.mxu0 0
      %2349 = vmatpush1.bf16.msra.mxu0 0
      %2350 = vmatprep.subr.bf16.mxu0 0
      %2351 = vmatpush1.bf16.msra.mxu0 0
      %2352 = vmatprep.subr.bf16.mxu0 0
      %2353 = vmatpush1.bf16.msra.mxu0 0
      %2354 = vmatprep.subr.bf16.mxu0 0
      %2355 = vmatpush1.bf16.msra.mxu0 0
      %2356 = vmatprep.subr.bf16.mxu0 0
      %2357 = vmatpush1.bf16.msra.mxu0 0
      %2358 = vmatprep.subr.bf16.mxu0 0
      %2359 = vmatpush1.bf16.msra.mxu0 0
      %2360 = vmatprep.subr.bf16.mxu0 0
      %2361 = vmatpush1.bf16.msra.mxu0 0
      %2362 = vmatprep.subr.bf16.mxu0 0
      %2363 = vmatpush1.bf16.msra.mxu0 0
      %2364 = vmatprep.mubr.bf16.mxu0 0
      %2365 = vmatmul.mubr.bf16.gmra.mrb[0].mxu0 %v2318
      %v2366 = vpop.f32.mrb[0].mxu0
      %v2367 = vadd.f32 0.0, %v2366
      %v2368 = vpop.f32.mrb[0].mxu0
      %v2369 = vpop.f32.mrb[0].mxu0
      %v2370 = vadd.f32 0.0, %v2369
      %v2371 = vpop.f32.mrb[0].mxu0
      %2372 = vmatprep.mubr.bf16.mxu0 0
      %2373 = vmatmul.mubr.bf16.gmra.mrb[0].mxu0 %v2321
      %v2374 = vpop.f32.mrb[0].mxu0
      %v2375 = vadd.f32 0.0, %v2374
      %v2376 = vpop.f32.mrb[0].mxu0
      %v2377 = vpop.f32.mrb[0].mxu0
      %v2378 = vadd.f32 0.0, %v2377
      %v2379 = vpop.f32.mrb[0].mxu0
      %2380 = vmatprep.mubr.bf16.mxu0 0
      %2381 = vmatmul.mubr.bf16.gmra.mrb[0].mxu0 %v2324
      %v2382 = vpop.f32.mrb[0].mxu0
      %v2383 = vadd.f32 0.0, %v2382
      %v2384 = vpop.f32.mrb[0].mxu0
      %v2385 = vpop.f32.mrb[0].mxu0
      %v2386 = vadd.f32 0.0, %v2385
      %v2387 = vpop.f32.mrb[0].mxu0
      %2388 = vmatprep.mubr.bf16.mxu0 0
      %2389 = vmatmul.mubr.bf16.gmra.mrb[0].mxu0 %v2327
      %v2390 = vpop.f32.mrb[0].mxu0
      %v2391 = vadd.f32 0.0, %v2390
      %v2392 = vpop.f32.mrb[0].mxu0
      %v2393 = vpop.f32.mrb[0].mxu0
      %v2394 = vadd.f32 0.0, %v2393
      %v2395 = vpop.f32.mrb[0].mxu0
      %2396 = vdwg.mxu0
      %v2397 = vadd.f32 %v2197, %v2367
      %v2398 = vadd.f32 %v2198, %v2370
      %v2399 = vadd.f32 %v2199, %v2375
      %v2400 = vadd.f32 %v2200, %v2378
      %v2401 = vadd.f32 %v2201, %v2383
      %v2402 = vadd.f32 %v2202, %v2386
      %v2403 = vadd.f32 %v2203, %v2391
      %v2404 = vadd.f32 %v2204, %v2394
      %s2405 = scalar_lea.vmem %s6, 128
      %v2406 = vld [vmem:[%s2405] sm:$0xf]
      %v2407 = vld [vmem:[%s2405 + $0x4] sm:$0xf]
      %v2408 = vld [vmem:[%s2405 + $0x8] sm:$0xf]
      %v2409 = vld [vmem:[%s2405 + $0xc] sm:$0xf]
      %v2410 = vld [vmem:[%s2405 + $0x10] sm:$0xf]
      %v2411 = vld [vmem:[%s2405 + $0x14] sm:$0xf]
      %v2412 = vld [vmem:[%s2405 + $0x18] sm:$0xf]
      %v2413 = vld [vmem:[%s2405 + $0x1c] sm:$0xf]
      %v2422 = vunpack.c.l.b16 %v2406
      %v2423 = vunpack.c.l.b16 %v2407
      %v2424 = vunpack.c.l.b16 %v2408
      %v2425 = vunpack.c.l.b16 %v2409
      %v2426 = vunpack.c.l.b16 %v2410
      %v2427 = vunpack.c.l.b16 %v2411
      %v2428 = vunpack.c.l.b16 %v2412
      %v2429 = vunpack.c.l.b16 %v2413
      %v2430 = vpack.c.b16 %v2423, %v2422
      %v2431 = vpack.c.b16 %v2425, %v2424
      %v2432 = vpack.c.b16 %v2427, %v2426
      %v2433 = vpack.c.b16 %v2429, %v2428
      %v2435 = vsel %vm756, %v2430, 0
      %v2438 = vsel %vm756, %v2431, 0
      %v2441 = vsel %vm756, %v2432, 0
      %v2444 = vsel %vm756, %v2433, 0
      %2446 = vmatprep.subr.bf16.mxu0 0
      %2447 = vmatpush1.bf16.msra.mxu0 %v1621
      %2448 = vmatprep.subr.bf16.mxu0 0
      %2449 = vmatpush1.bf16.msra.mxu0 0
      %2450 = vmatprep.subr.bf16.mxu0 0
      %2451 = vmatpush1.bf16.msra.mxu0 0
      %2452 = vmatprep.subr.bf16.mxu0 0
      %2453 = vmatpush1.bf16.msra.mxu0 0
      %2454 = vmatprep.subr.bf16.mxu0 0
      %2455 = vmatpush1.bf16.msra.mxu0 0
      %2456 = vmatprep.subr.bf16.mxu0 0
      %2457 = vmatpush1.bf16.msra.mxu0 0
      %2458 = vmatprep.subr.bf16.mxu0 0
      %2459 = vmatpush1.bf16.msra.mxu0 0
      %2460 = vmatprep.subr.bf16.mxu0 0
      %2461 = vmatpush1.bf16.msra.mxu0 0
      %2462 = vmatprep.subr.bf16.mxu0 0
      %2463 = vmatpush1.bf16.msra.mxu0 0
      %2464 = vmatprep.subr.bf16.mxu0 0
      %2465 = vmatpush1.bf16.msra.mxu0 0
      %2466 = vmatprep.subr.bf16.mxu0 0
      %2467 = vmatpush1.bf16.msra.mxu0 0
      %2468 = vmatprep.subr.bf16.mxu0 0
      %2469 = vmatpush1.bf16.msra.mxu0 0
      %2470 = vmatprep.subr.bf16.mxu0 0
      %2471 = vmatpush1.bf16.msra.mxu0 0
      %2472 = vmatprep.subr.bf16.mxu0 0
      %2473 = vmatpush1.bf16.msra.mxu0 0
      %2474 = vmatprep.subr.bf16.mxu0 0
      %2475 = vmatpush1.bf16.msra.mxu0 0
      %2476 = vmatprep.subr.bf16.mxu0 0
      %2477 = vmatpush1.bf16.msra.mxu0 0
      %2478 = vmatprep.mubr.bf16.mxu0 0
      %2479 = vmatmul.mubr.bf16.gmra.mrb[0].mxu0 %v2435
      %v2480 = vpop.f32.mrb[0].mxu0
      %v2481 = vadd.f32 0.0, %v2480
      %v2482 = vpop.f32.mrb[0].mxu0
      %v2483 = vpop.f32.mrb[0].mxu0
      %v2484 = vadd.f32 0.0, %v2483
      %v2485 = vpop.f32.mrb[0].mxu0
      %2486 = vmatprep.mubr.bf16.mxu0 0
      %2487 = vmatmul.mubr.bf16.gmra.mrb[0].mxu0 %v2438
      %v2488 = vpop.f32.mrb[0].mxu0
      %v2489 = vadd.f32 0.0, %v2488
      %v2490 = vpop.f32.mrb[0].mxu0
      %v2491 = vpop.f32.mrb[0].mxu0
      %v2492 = vadd.f32 0.0, %v2491
      %v2493 = vpop.f32.mrb[0].mxu0
      %2494 = vmatprep.mubr.bf16.mxu0 0
      %2495 = vmatmul.mubr.bf16.gmra.mrb[0].mxu0 %v2441
      %v2496 = vpop.f32.mrb[0].mxu0
      %v2497 = vadd.f32 0.0, %v2496
      %v2498 = vpop.f32.mrb[0].mxu0
      %v2499 = vpop.f32.mrb[0].mxu0
      %v2500 = vadd.f32 0.0, %v2499
      %v2501 = vpop.f32.mrb[0].mxu0
      %2502 = vmatprep.mubr.bf16.mxu0 0
      %2503 = vmatmul.mubr.bf16.gmra.mrb[0].mxu0 %v2444
      %v2504 = vpop.f32.mrb[0].mxu0
      %v2505 = vadd.f32 0.0, %v2504
      %v2506 = vpop.f32.mrb[0].mxu0
      %v2507 = vpop.f32.mrb[0].mxu0
      %v2508 = vadd.f32 0.0, %v2507
      %v2509 = vpop.f32.mrb[0].mxu0
      %2510 = vdwg.mxu0
      %v2511 = vpack.c.bf16 %v2484, %v2481
      %v2512 = vpack.c.bf16 %v2492, %v2489
      %v2513 = vpack.c.bf16 %v2500, %v2497
      %v2514 = vpack.c.bf16 %v2508, %v2505
      %s2515 = scalar_lea.vmem %s7, 16
      %v2516 = vld [vmem:[%s2515] sm:$0xf]
      %v2518 = vsel %vm1618, %v2511, 0
      %v2521 = vsel %vm1618, %v2512, 0
      %v2524 = vsel %vm1618, %v2513, 0
      %v2527 = vsel %vm1618, %v2514, 0
      %v2530 = vsel %vm1856, %v2516, 0
      %2532 = vmatprep.subr.bf16.mxu0 0
      %2533 = vmatpush1.bf16.msra.mxu0 %v2530
      %2534 = vmatprep.subr.bf16.mxu0 0
      %2535 = vmatpush1.bf16.msra.mxu0 0
      %2536 = vmatprep.subr.bf16.mxu0 0
      %2537 = vmatpush1.bf16.msra.mxu0 0
      %2538 = vmatprep.subr.bf16.mxu0 0
      %2539 = vmatpush1.bf16.msra.mxu0 0
      %2540 = vmatprep.subr.bf16.mxu0 0
      %2541 = vmatpush1.bf16.msra.mxu0 0
      %2542 = vmatprep.subr.bf16.mxu0 0
      %2543 = vmatpush1.bf16.msra.mxu0 0
      %2544 = vmatprep.subr.bf16.mxu0 0
      %2545 = vmatpush1.bf16.msra.mxu0 0
      %2546 = vmatprep.subr.bf16.mxu0 0
      %2547 = vmatpush1.bf16.msra.mxu0 0
      %2548 = vmatprep.subr.bf16.mxu0 0
      %2549 = vmatpush1.bf16.msra.mxu0 0
      %2550 = vmatprep.subr.bf16.mxu0 0
      %2551 = vmatpush1.bf16.msra.mxu0 0
      %2552 = vmatprep.subr.bf16.mxu0 0
      %2553 = vmatpush1.bf16.msra.mxu0 0
      %2554 = vmatprep.subr.bf16.mxu0 0
      %2555 = vmatpush1.bf16.msra.mxu0 0
      %2556 = vmatprep.subr.bf16.mxu0 0
      %2557 = vmatpush1.bf16.msra.mxu0 0
      %2558 = vmatprep.subr.bf16.mxu0 0
      %2559 = vmatpush1.bf16.msra.mxu0 0
      %2560 = vmatprep.subr.bf16.mxu0 0
      %2561 = vmatpush1.bf16.msra.mxu0 0
      %2562 = vmatprep.subr.bf16.mxu0 0
      %2563 = vmatpush1.bf16.msra.mxu0 0
      %2564 = vmatprep.mubr.bf16.mxu0 0
      %2565 = vmatmul.mubr.bf16.gmra.mrb[0].mxu0 %v2518
      %v2566 = vpop.f32.mrb[0].mxu0
      %v2567 = vadd.f32 0.0, %v2566
      %v2568 = vpop.f32.mrb[0].mxu0
      %v2569 = vpop.f32.mrb[0].mxu0
      %v2570 = vadd.f32 0.0, %v2569
      %v2571 = vpop.f32.mrb[0].mxu0
      %2572 = vmatprep.mubr.bf16.mxu0 0
      %2573 = vmatmul.mubr.bf16.gmra.mrb[0].mxu0 %v2521
      %v2574 = vpop.f32.mrb[0].mxu0
      %v2575 = vadd.f32 0.0, %v2574
      %v2576 = vpop.f32.mrb[0].mxu0
      %v2577 = vpop.f32.mrb[0].mxu0
      %v2578 = vadd.f32 0.0, %v2577
      %v2579 = vpop.f32.mrb[0].mxu0
      %2580 = vmatprep.mubr.bf16.mxu0 0
      %2581 = vmatmul.mubr.bf16.gmra.mrb[0].mxu0 %v2524
      %v2582 = vpop.f32.mrb[0].mxu0
      %v2583 = vadd.f32 0.0, %v2582
      %v2584 = vpop.f32.mrb[0].mxu0
      %v2585 = vpop.f32.mrb[0].mxu0
      %v2586 = vadd.f32 0.0, %v2585
      %v2587 = vpop.f32.mrb[0].mxu0
      %2588 = vmatprep.mubr.bf16.mxu0 0
      %2589 = vmatmul.mubr.bf16.gmra.mrb[0].mxu0 %v2527
      %v2590 = vpop.f32.mrb[0].mxu0
      %v2591 = vadd.f32 0.0, %v2590
      %v2592 = vpop.f32.mrb[0].mxu0
      %v2593 = vpop.f32.mrb[0].mxu0
      %v2594 = vadd.f32 0.0, %v2593
      %v2595 = vpop.f32.mrb[0].mxu0
      %2596 = vdwg.mxu0
      %v2597 = vadd.f32 %v2397, %v2567
      %v2598 = vadd.f32 %v2398, %v2570
      %v2599 = vadd.f32 %v2399, %v2575
      %v2600 = vadd.f32 %v2400, %v2578
      %v2601 = vadd.f32 %v2401, %v2583
      %v2602 = vadd.f32 %v2402, %v2586
      %v2603 = vadd.f32 %v2403, %v2591
      %v2604 = vadd.f32 %v2404, %v2594
      %s2605 = scalar_lea.vmem %s6, 160
      %v2606 = vld [vmem:[%s2605] sm:$0xf]
      %v2607 = vld [vmem:[%s2605 + $0x4] sm:$0xf]
      %v2608 = vld [vmem:[%s2605 + $0x8] sm:$0xf]
      %v2609 = vld [vmem:[%s2605 + $0xc] sm:$0xf]
      %v2610 = vld [vmem:[%s2605 + $0x10] sm:$0xf]
      %v2611 = vld [vmem:[%s2605 + $0x14] sm:$0xf]
      %v2612 = vld [vmem:[%s2605 + $0x18] sm:$0xf]
      %v2613 = vld [vmem:[%s2605 + $0x1c] sm:$0xf]
      %v2622 = vunpack.c.l.b16 %v2606
      %v2623 = vunpack.c.l.b16 %v2607
      %v2624 = vunpack.c.l.b16 %v2608
      %v2625 = vunpack.c.l.b16 %v2609
      %v2626 = vunpack.c.l.b16 %v2610
      %v2627 = vunpack.c.l.b16 %v2611
      %v2628 = vunpack.c.l.b16 %v2612
      %v2629 = vunpack.c.l.b16 %v2613
      %v2630 = vpack.c.b16 %v2623, %v2622
      %v2631 = vpack.c.b16 %v2625, %v2624
      %v2632 = vpack.c.b16 %v2627, %v2626
      %v2633 = vpack.c.b16 %v2629, %v2628
      %v2635 = vsel %vm756, %v2630, 0
      %v2638 = vsel %vm756, %v2631, 0
      %v2641 = vsel %vm756, %v2632, 0
      %v2644 = vsel %vm756, %v2633, 0
      %2646 = vmatprep.subr.bf16.mxu0 0
      %2647 = vmatpush1.bf16.msra.mxu0 %v1621
      %2648 = vmatprep.subr.bf16.mxu0 0
      %2649 = vmatpush1.bf16.msra.mxu0 0
      %2650 = vmatprep.subr.bf16.mxu0 0
      %2651 = vmatpush1.bf16.msra.mxu0 0
      %2652 = vmatprep.subr.bf16.mxu0 0
      %2653 = vmatpush1.bf16.msra.mxu0 0
      %2654 = vmatprep.subr.bf16.mxu0 0
      %2655 = vmatpush1.bf16.msra.mxu0 0
      %2656 = vmatprep.subr.bf16.mxu0 0
      %2657 = vmatpush1.bf16.msra.mxu0 0
      %2658 = vmatprep.subr.bf16.mxu0 0
      %2659 = vmatpush1.bf16.msra.mxu0 0
      %2660 = vmatprep.subr.bf16.mxu0 0
      %2661 = vmatpush1.bf16.msra.mxu0 0
      %2662 = vmatprep.subr.bf16.mxu0 0
      %2663 = vmatpush1.bf16.msra.mxu0 0
      %2664 = vmatprep.subr.bf16.mxu0 0
      %2665 = vmatpush1.bf16.msra.mxu0 0
      %2666 = vmatprep.subr.bf16.mxu0 0
      %2667 = vmatpush1.bf16.msra.mxu0 0
      %2668 = vmatprep.subr.bf16.mxu0 0
      %2669 = vmatpush1.bf16.msra.mxu0 0
      %2670 = vmatprep.subr.bf16.mxu0 0
      %2671 = vmatpush1.bf16.msra.mxu0 0
      %2672 = vmatprep.subr.bf16.mxu0 0
      %2673 = vmatpush1.bf16.msra.mxu0 0
      %2674 = vmatprep.subr.bf16.mxu0 0
      %2675 = vmatpush1.bf16.msra.mxu0 0
      %2676 = vmatprep.subr.bf16.mxu0 0
      %2677 = vmatpush1.bf16.msra.mxu0 0
      %2678 = vmatprep.mubr.bf16.mxu0 0
      %2679 = vmatmul.mubr.bf16.gmra.mrb[0].mxu0 %v2635
      %v2680 = vpop.f32.mrb[0].mxu0
      %v2681 = vadd.f32 0.0, %v2680
      %v2682 = vpop.f32.mrb[0].mxu0
      %v2683 = vpop.f32.mrb[0].mxu0
      %v2684 = vadd.f32 0.0, %v2683
      %v2685 = vpop.f32.mrb[0].mxu0
      %2686 = vmatprep.mubr.bf16.mxu0 0
      %2687 = vmatmul.mubr.bf16.gmra.mrb[0].mxu0 %v2638
      %v2688 = vpop.f32.mrb[0].mxu0
      %v2689 = vadd.f32 0.0, %v2688
      %v2690 = vpop.f32.mrb[0].mxu0
      %v2691 = vpop.f32.mrb[0].mxu0
      %v2692 = vadd.f32 0.0, %v2691
      %v2693 = vpop.f32.mrb[0].mxu0
      %2694 = vmatprep.mubr.bf16.mxu0 0
      %2695 = vmatmul.mubr.bf16.gmra.mrb[0].mxu0 %v2641
      %v2696 = vpop.f32.mrb[0].mxu0
      %v2697 = vadd.f32 0.0, %v2696
      %v2698 = vpop.f32.mrb[0].mxu0
      %v2699 = vpop.f32.mrb[0].mxu0
      %v2700 = vadd.f32 0.0, %v2699
      %v2701 = vpop.f32.mrb[0].mxu0
      %2702 = vmatprep.mubr.bf16.mxu0 0
      %2703 = vmatmul.mubr.bf16.gmra.mrb[0].mxu0 %v2644
      %v2704 = vpop.f32.mrb[0].mxu0
      %v2705 = vadd.f32 0.0, %v2704
      %v2706 = vpop.f32.mrb[0].mxu0
      %v2707 = vpop.f32.mrb[0].mxu0
      %v2708 = vadd.f32 0.0, %v2707
      %v2709 = vpop.f32.mrb[0].mxu0
      %2710 = vdwg.mxu0
      %v2711 = vpack.c.bf16 %v2684, %v2681
      %v2712 = vpack.c.bf16 %v2692, %v2689
      %v2713 = vpack.c.bf16 %v2700, %v2697
      %v2714 = vpack.c.bf16 %v2708, %v2705
      %s2715 = scalar_lea.vmem %s7, 20
      %v2716 = vld [vmem:[%s2715] sm:$0xf]
      %v2718 = vsel %vm1618, %v2711, 0
      %v2721 = vsel %vm1618, %v2712, 0
      %v2724 = vsel %vm1618, %v2713, 0
      %v2727 = vsel %vm1618, %v2714, 0
      %v2730 = vsel %vm1856, %v2716, 0
      %2732 = vmatprep.subr.bf16.mxu0 0
      %2733 = vmatpush1.bf16.msra.mxu0 %v2730
      %2734 = vmatprep.subr.bf16.mxu0 0
      %2735 = vmatpush1.bf16.msra.mxu0 0
      %2736 = vmatprep.subr.bf16.mxu0 0
      %2737 = vmatpush1.bf16.msra.mxu0 0
      %2738 = vmatprep.subr.bf16.mxu0 0
      %2739 = vmatpush1.bf16.msra.mxu0 0
      %2740 = vmatprep.subr.bf16.mxu0 0
      %2741 = vmatpush1.bf16.msra.mxu0 0
      %2742 = vmatprep.subr.bf16.mxu0 0
      %2743 = vmatpush1.bf16.msra.mxu0 0
      %2744 = vmatprep.subr.bf16.mxu0 0
      %2745 = vmatpush1.bf16.msra.mxu0 0
      %2746 = vmatprep.subr.bf16.mxu0 0
      %2747 = vmatpush1.bf16.msra.mxu0 0
      %2748 = vmatprep.subr.bf16.mxu0 0
      %2749 = vmatpush1.bf16.msra.mxu0 0
      %2750 = vmatprep.subr.bf16.mxu0 0
      %2751 = vmatpush1.bf16.msra.mxu0 0
      %2752 = vmatprep.subr.bf16.mxu0 0
      %2753 = vmatpush1.bf16.msra.mxu0 0
      %2754 = vmatprep.subr.bf16.mxu0 0
      %2755 = vmatpush1.bf16.msra.mxu0 0
      %2756 = vmatprep.subr.bf16.mxu0 0
      %2757 = vmatpush1.bf16.msra.mxu0 0
      %2758 = vmatprep.subr.bf16.mxu0 0
      %2759 = vmatpush1.bf16.msra.mxu0 0
      %2760 = vmatprep.subr.bf16.mxu0 0
      %2761 = vmatpush1.bf16.msra.mxu0 0
      %2762 = vmatprep.subr.bf16.mxu0 0
      %2763 = vmatpush1.bf16.msra.mxu0 0
      %2764 = vmatprep.mubr.bf16.mxu0 0
      %2765 = vmatmul.mubr.bf16.gmra.mrb[0].mxu0 %v2718
      %v2766 = vpop.f32.mrb[0].mxu0
      %v2767 = vadd.f32 0.0, %v2766
      %v2768 = vpop.f32.mrb[0].mxu0
      %v2769 = vpop.f32.mrb[0].mxu0
      %v2770 = vadd.f32 0.0, %v2769
      %v2771 = vpop.f32.mrb[0].mxu0
      %2772 = vmatprep.mubr.bf16.mxu0 0
      %2773 = vmatmul.mubr.bf16.gmra.mrb[0].mxu0 %v2721
      %v2774 = vpop.f32.mrb[0].mxu0
      %v2775 = vadd.f32 0.0, %v2774
      %v2776 = vpop.f32.mrb[0].mxu0
      %v2777 = vpop.f32.mrb[0].mxu0
      %v2778 = vadd.f32 0.0, %v2777
      %v2779 = vpop.f32.mrb[0].mxu0
      %2780 = vmatprep.mubr.bf16.mxu0 0
      %2781 = vmatmul.mubr.bf16.gmra.mrb[0].mxu0 %v2724
      %v2782 = vpop.f32.mrb[0].mxu0
      %v2783 = vadd.f32 0.0, %v2782
      %v2784 = vpop.f32.mrb[0].mxu0
      %v2785 = vpop.f32.mrb[0].mxu0
      %v2786 = vadd.f32 0.0, %v2785
      %v2787 = vpop.f32.mrb[0].mxu0
      %2788 = vmatprep.mubr.bf16.mxu0 0
      %2789 = vmatmul.mubr.bf16.gmra.mrb[0].mxu0 %v2727
      %v2790 = vpop.f32.mrb[0].mxu0
      %v2791 = vadd.f32 0.0, %v2790
      %v2792 = vpop.f32.mrb[0].mxu0
      %v2793 = vpop.f32.mrb[0].mxu0
      %v2794 = vadd.f32 0.0, %v2793
      %v2795 = vpop.f32.mrb[0].mxu0
      %2796 = vdwg.mxu0
      %v2797 = vadd.f32 %v2597, %v2767
      %v2798 = vadd.f32 %v2598, %v2770
      %v2799 = vadd.f32 %v2599, %v2775
      %v2800 = vadd.f32 %v2600, %v2778
      %v2801 = vadd.f32 %v2601, %v2783
      %v2802 = vadd.f32 %v2602, %v2786
      %v2803 = vadd.f32 %v2603, %v2791
      %v2804 = vadd.f32 %v2604, %v2794
      %s2805 = scalar_lea.vmem %s6, 192
      %v2806 = vld [vmem:[%s2805] sm:$0xf]
      %v2807 = vld [vmem:[%s2805 + $0x4] sm:$0xf]
      %v2808 = vld [vmem:[%s2805 + $0x8] sm:$0xf]
      %v2809 = vld [vmem:[%s2805 + $0xc] sm:$0xf]
      %v2810 = vld [vmem:[%s2805 + $0x10] sm:$0xf]
      %v2811 = vld [vmem:[%s2805 + $0x14] sm:$0xf]
      %v2812 = vld [vmem:[%s2805 + $0x18] sm:$0xf]
      %v2813 = vld [vmem:[%s2805 + $0x1c] sm:$0xf]
      %v2822 = vunpack.c.l.b16 %v2806
      %v2823 = vunpack.c.l.b16 %v2807
      %v2824 = vunpack.c.l.b16 %v2808
      %v2825 = vunpack.c.l.b16 %v2809
      %v2826 = vunpack.c.l.b16 %v2810
      %v2827 = vunpack.c.l.b16 %v2811
      %v2828 = vunpack.c.l.b16 %v2812
      %v2829 = vunpack.c.l.b16 %v2813
      %v2830 = vpack.c.b16 %v2823, %v2822
      %v2831 = vpack.c.b16 %v2825, %v2824
      %v2832 = vpack.c.b16 %v2827, %v2826
      %v2833 = vpack.c.b16 %v2829, %v2828
      %v2835 = vsel %vm756, %v2830, 0
      %v2838 = vsel %vm756, %v2831, 0
      %v2841 = vsel %vm756, %v2832, 0
      %v2844 = vsel %vm756, %v2833, 0
      %2846 = vmatprep.subr.bf16.mxu0 0
      %2847 = vmatpush1.bf16.msra.mxu0 %v1621
      %2848 = vmatprep.subr.bf16.mxu0 0
      %2849 = vmatpush1.bf16.msra.mxu0 0
      %2850 = vmatprep.subr.bf16.mxu0 0
      %2851 = vmatpush1.bf16.msra.mxu0 0
      %2852 = vmatprep.subr.bf16.mxu0 0
      %2853 = vmatpush1.bf16.msra.mxu0 0
      %2854 = vmatprep.subr.bf16.mxu0 0
      %2855 = vmatpush1.bf16.msra.mxu0 0
      %2856 = vmatprep.subr.bf16.mxu0 0
      %2857 = vmatpush1.bf16.msra.mxu0 0
      %2858 = vmatprep.subr.bf16.mxu0 0
      %2859 = vmatpush1.bf16.msra.mxu0 0
      %2860 = vmatprep.subr.bf16.mxu0 0
      %2861 = vmatpush1.bf16.msra.mxu0 0
      %2862 = vmatprep.subr.bf16.mxu0 0
      %2863 = vmatpush1.bf16.msra.mxu0 0
      %2864 = vmatprep.subr.bf16.mxu0 0
      %2865 = vmatpush1.bf16.msra.mxu0 0
      %2866 = vmatprep.subr.bf16.mxu0 0
      %2867 = vmatpush1.bf16.msra.mxu0 0
      %2868 = vmatprep.subr.bf16.mxu0 0
      %2869 = vmatpush1.bf16.msra.mxu0 0
      %2870 = vmatprep.subr.bf16.mxu0 0
      %2871 = vmatpush1.bf16.msra.mxu0 0
      %2872 = vmatprep.subr.bf16.mxu0 0
      %2873 = vmatpush1.bf16.msra.mxu0 0
      %2874 = vmatprep.subr.bf16.mxu0 0
      %2875 = vmatpush1.bf16.msra.mxu0 0
      %2876 = vmatprep.subr.bf16.mxu0 0
      %2877 = vmatpush1.bf16.msra.mxu0 0
      %2878 = vmatprep.mubr.bf16.mxu0 0
      %2879 = vmatmul.mubr.bf16.gmra.mrb[0].mxu0 %v2835
      %v2880 = vpop.f32.mrb[0].mxu0
      %v2881 = vadd.f32 0.0, %v2880
      %v2882 = vpop.f32.mrb[0].mxu0
      %v2883 = vpop.f32.mrb[0].mxu0
      %v2884 = vadd.f32 0.0, %v2883
      %v2885 = vpop.f32.mrb[0].mxu0
      %2886 = vmatprep.mubr.bf16.mxu0 0
      %2887 = vmatmul.mubr.bf16.gmra.mrb[0].mxu0 %v2838
      %v2888 = vpop.f32.mrb[0].mxu0
      %v2889 = vadd.f32 0.0, %v2888
      %v2890 = vpop.f32.mrb[0].mxu0
      %v2891 = vpop.f32.mrb[0].mxu0
      %v2892 = vadd.f32 0.0, %v2891
      %v2893 = vpop.f32.mrb[0].mxu0
      %2894 = vmatprep.mubr.bf16.mxu0 0
      %2895 = vmatmul.mubr.bf16.gmra.mrb[0].mxu0 %v2841
      %v2896 = vpop.f32.mrb[0].mxu0
      %v2897 = vadd.f32 0.0, %v2896
      %v2898 = vpop.f32.mrb[0].mxu0
      %v2899 = vpop.f32.mrb[0].mxu0
      %v2900 = vadd.f32 0.0, %v2899
      %v2901 = vpop.f32.mrb[0].mxu0
      %2902 = vmatprep.mubr.bf16.mxu0 0
      %2903 = vmatmul.mubr.bf16.gmra.mrb[0].mxu0 %v2844
      %v2904 = vpop.f32.mrb[0].mxu0
      %v2905 = vadd.f32 0.0, %v2904
      %v2906 = vpop.f32.mrb[0].mxu0
      %v2907 = vpop.f32.mrb[0].mxu0
      %v2908 = vadd.f32 0.0, %v2907
      %v2909 = vpop.f32.mrb[0].mxu0
      %2910 = vdwg.mxu0
      %v2911 = vpack.c.bf16 %v2884, %v2881
      %v2912 = vpack.c.bf16 %v2892, %v2889
      %v2913 = vpack.c.bf16 %v2900, %v2897
      %v2914 = vpack.c.bf16 %v2908, %v2905
      %s2915 = scalar_lea.vmem %s7, 24
      %v2916 = vld [vmem:[%s2915] sm:$0xf]
      %v2918 = vsel %vm1618, %v2911, 0
      %v2921 = vsel %vm1618, %v2912, 0
      %v2924 = vsel %vm1618, %v2913, 0
      %v2927 = vsel %vm1618, %v2914, 0
      %v2930 = vsel %vm1856, %v2916, 0
      %2932 = vmatprep.subr.bf16.mxu0 0
      %2933 = vmatpush1.bf16.msra.mxu0 %v2930
      %2934 = vmatprep.subr.bf16.mxu0 0
      %2935 = vmatpush1.bf16.msra.mxu0 0
      %2936 = vmatprep.subr.bf16.mxu0 0
      %2937 = vmatpush1.bf16.msra.mxu0 0
      %2938 = vmatprep.subr.bf16.mxu0 0
      %2939 = vmatpush1.bf16.msra.mxu0 0
      %2940 = vmatprep.subr.bf16.mxu0 0
      %2941 = vmatpush1.bf16.msra.mxu0 0
      %2942 = vmatprep.subr.bf16.mxu0 0
      %2943 = vmatpush1.bf16.msra.mxu0 0
      %2944 = vmatprep.subr.bf16.mxu0 0
      %2945 = vmatpush1.bf16.msra.mxu0 0
      %2946 = vmatprep.subr.bf16.mxu0 0
      %2947 = vmatpush1.bf16.msra.mxu0 0
      %2948 = vmatprep.subr.bf16.mxu0 0
      %2949 = vmatpush1.bf16.msra.mxu0 0
      %2950 = vmatprep.subr.bf16.mxu0 0
      %2951 = vmatpush1.bf16.msra.mxu0 0
      %2952 = vmatprep.subr.bf16.mxu0 0
      %2953 = vmatpush1.bf16.msra.mxu0 0
      %2954 = vmatprep.subr.bf16.mxu0 0
      %2955 = vmatpush1.bf16.msra.mxu0 0
      %2956 = vmatprep.subr.bf16.mxu0 0
      %2957 = vmatpush1.bf16.msra.mxu0 0
      %2958 = vmatprep.subr.bf16.mxu0 0
      %2959 = vmatpush1.bf16.msra.mxu0 0
      %2960 = vmatprep.subr.bf16.mxu0 0
      %2961 = vmatpush1.bf16.msra.mxu0 0
      %2962 = vmatprep.subr.bf16.mxu0 0
      %2963 = vmatpush1.bf16.msra.mxu0 0
      %2964 = vmatprep.mubr.bf16.mxu0 0
      %2965 = vmatmul.mubr.bf16.gmra.mrb[0].mxu0 %v2918
      %v2966 = vpop.f32.mrb[0].mxu0
      %v2967 = vadd.f32 0.0, %v2966
      %v2968 = vpop.f32.mrb[0].mxu0
      %v2969 = vpop.f32.mrb[0].mxu0
      %v2970 = vadd.f32 0.0, %v2969
      %v2971 = vpop.f32.mrb[0].mxu0
      %2972 = vmatprep.mubr.bf16.mxu0 0
      %2973 = vmatmul.mubr.bf16.gmra.mrb[0].mxu0 %v2921
      %v2974 = vpop.f32.mrb[0].mxu0
      %v2975 = vadd.f32 0.0, %v2974
      %v2976 = vpop.f32.mrb[0].mxu0
      %v2977 = vpop.f32.mrb[0].mxu0
      %v2978 = vadd.f32 0.0, %v2977
      %v2979 = vpop.f32.mrb[0].mxu0
      %2980 = vmatprep.mubr.bf16.mxu0 0
      %2981 = vmatmul.mubr.bf16.gmra.mrb[0].mxu0 %v2924
      %v2982 = vpop.f32.mrb[0].mxu0
      %v2983 = vadd.f32 0.0, %v2982
      %v2984 = vpop.f32.mrb[0].mxu0
      %v2985 = vpop.f32.mrb[0].mxu0
      %v2986 = vadd.f32 0.0, %v2985
      %v2987 = vpop.f32.mrb[0].mxu0
      %2988 = vmatprep.mubr.bf16.mxu0 0
      %2989 = vmatmul.mubr.bf16.gmra.mrb[0].mxu0 %v2927
      %v2990 = vpop.f32.mrb[0].mxu0
      %v2991 = vadd.f32 0.0, %v2990
      %v2992 = vpop.f32.mrb[0].mxu0
      %v2993 = vpop.f32.mrb[0].mxu0
      %v2994 = vadd.f32 0.0, %v2993
      %v2995 = vpop.f32.mrb[0].mxu0
      %2996 = vdwg.mxu0
      %v2997 = vadd.f32 %v2797, %v2967
      %v2998 = vadd.f32 %v2798, %v2970
      %v2999 = vadd.f32 %v2799, %v2975
      %v3000 = vadd.f32 %v2800, %v2978
      %v3001 = vadd.f32 %v2801, %v2983
      %v3002 = vadd.f32 %v2802, %v2986
      %v3003 = vadd.f32 %v2803, %v2991
      %v3004 = vadd.f32 %v2804, %v2994
      %s3005 = scalar_lea.vmem %s6, 224
      %v3006 = vld [vmem:[%s3005] sm:$0xf]
      %v3007 = vld [vmem:[%s3005 + $0x4] sm:$0xf]
      %v3008 = vld [vmem:[%s3005 + $0x8] sm:$0xf]
      %v3009 = vld [vmem:[%s3005 + $0xc] sm:$0xf]
      %v3010 = vld [vmem:[%s3005 + $0x10] sm:$0xf]
      %v3011 = vld [vmem:[%s3005 + $0x14] sm:$0xf]
      %v3012 = vld [vmem:[%s3005 + $0x18] sm:$0xf]
      %v3013 = vld [vmem:[%s3005 + $0x1c] sm:$0xf]
      %v3022 = vunpack.c.l.b16 %v3006
      %v3023 = vunpack.c.l.b16 %v3007
      %v3024 = vunpack.c.l.b16 %v3008
      %v3025 = vunpack.c.l.b16 %v3009
      %v3026 = vunpack.c.l.b16 %v3010
      %v3027 = vunpack.c.l.b16 %v3011
      %v3028 = vunpack.c.l.b16 %v3012
      %v3029 = vunpack.c.l.b16 %v3013
      %v3030 = vpack.c.b16 %v3023, %v3022
      %v3031 = vpack.c.b16 %v3025, %v3024
      %v3032 = vpack.c.b16 %v3027, %v3026
      %v3033 = vpack.c.b16 %v3029, %v3028
      %v3035 = vsel %vm756, %v3030, 0
      %v3038 = vsel %vm756, %v3031, 0
      %v3041 = vsel %vm756, %v3032, 0
      %v3044 = vsel %vm756, %v3033, 0
      %3046 = vmatprep.subr.bf16.mxu0 0
      %3047 = vmatpush1.bf16.msra.mxu0 %v1621
      %3048 = vmatprep.subr.bf16.mxu0 0
      %3049 = vmatpush1.bf16.msra.mxu0 0
      %3050 = vmatprep.subr.bf16.mxu0 0
      %3051 = vmatpush1.bf16.msra.mxu0 0
      %3052 = vmatprep.subr.bf16.mxu0 0
      %3053 = vmatpush1.bf16.msra.mxu0 0
      %3054 = vmatprep.subr.bf16.mxu0 0
      %3055 = vmatpush1.bf16.msra.mxu0 0
      %3056 = vmatprep.subr.bf16.mxu0 0
      %3057 = vmatpush1.bf16.msra.mxu0 0
      %3058 = vmatprep.subr.bf16.mxu0 0
      %3059 = vmatpush1.bf16.msra.mxu0 0
      %3060 = vmatprep.subr.bf16.mxu0 0
      %3061 = vmatpush1.bf16.msra.mxu0 0
      %3062 = vmatprep.subr.bf16.mxu0 0
      %3063 = vmatpush1.bf16.msra.mxu0 0
      %3064 = vmatprep.subr.bf16.mxu0 0
      %3065 = vmatpush1.bf16.msra.mxu0 0
      %3066 = vmatprep.subr.bf16.mxu0 0
      %3067 = vmatpush1.bf16.msra.mxu0 0
      %3068 = vmatprep.subr.bf16.mxu0 0
      %3069 = vmatpush1.bf16.msra.mxu0 0
      %3070 = vmatprep.subr.bf16.mxu0 0
      %3071 = vmatpush1.bf16.msra.mxu0 0
      %3072 = vmatprep.subr.bf16.mxu0 0
      %3073 = vmatpush1.bf16.msra.mxu0 0
      %3074 = vmatprep.subr.bf16.mxu0 0
      %3075 = vmatpush1.bf16.msra.mxu0 0
      %3076 = vmatprep.subr.bf16.mxu0 0
      %3077 = vmatpush1.bf16.msra.mxu0 0
      %3078 = vmatprep.mubr.bf16.mxu0 0
      %3079 = vmatmul.mubr.bf16.gmra.mrb[0].mxu0 %v3035
      %v3080 = vpop.f32.mrb[0].mxu0
      %v3081 = vadd.f32 0.0, %v3080
      %v3082 = vpop.f32.mrb[0].mxu0
      %v3083 = vpop.f32.mrb[0].mxu0
      %v3084 = vadd.f32 0.0, %v3083
      %v3085 = vpop.f32.mrb[0].mxu0
      %3086 = vmatprep.mubr.bf16.mxu0 0
      %3087 = vmatmul.mubr.bf16.gmra.mrb[0].mxu0 %v3038
      %v3088 = vpop.f32.mrb[0].mxu0
      %v3089 = vadd.f32 0.0, %v3088
      %v3090 = vpop.f32.mrb[0].mxu0
      %v3091 = vpop.f32.mrb[0].mxu0
      %v3092 = vadd.f32 0.0, %v3091
      %v3093 = vpop.f32.mrb[0].mxu0
      %3094 = vmatprep.mubr.bf16.mxu0 0
      %3095 = vmatmul.mubr.bf16.gmra.mrb[0].mxu0 %v3041
      %v3096 = vpop.f32.mrb[0].mxu0
      %v3097 = vadd.f32 0.0, %v3096
      %v3098 = vpop.f32.mrb[0].mxu0
      %v3099 = vpop.f32.mrb[0].mxu0
      %v3100 = vadd.f32 0.0, %v3099
      %v3101 = vpop.f32.mrb[0].mxu0
      %3102 = vmatprep.mubr.bf16.mxu0 0
      %3103 = vmatmul.mubr.bf16.gmra.mrb[0].mxu0 %v3044
      %v3104 = vpop.f32.mrb[0].mxu0
      %v3105 = vadd.f32 0.0, %v3104
      %v3106 = vpop.f32.mrb[0].mxu0
      %v3107 = vpop.f32.mrb[0].mxu0
      %v3108 = vadd.f32 0.0, %v3107
      %v3109 = vpop.f32.mrb[0].mxu0
      %3110 = vdwg.mxu0
      %v3111 = vpack.c.bf16 %v3084, %v3081
      %v3112 = vpack.c.bf16 %v3092, %v3089
      %v3113 = vpack.c.bf16 %v3100, %v3097
      %v3114 = vpack.c.bf16 %v3108, %v3105
      %s3115 = scalar_lea.vmem %s7, 28
      %v3116 = vld [vmem:[%s3115] sm:$0xf]
      %v3118 = vsel %vm1618, %v3111, 0
      %v3121 = vsel %vm1618, %v3112, 0
      %v3124 = vsel %vm1618, %v3113, 0
      %v3127 = vsel %vm1618, %v3114, 0
      %v3130 = vsel %vm1856, %v3116, 0
      %3132 = vmatprep.subr.bf16.mxu0 0
      %3133 = vmatpush1.bf16.msra.mxu0 %v3130
      %3134 = vmatprep.subr.bf16.mxu0 0
      %3135 = vmatpush1.bf16.msra.mxu0 0
      %3136 = vmatprep.subr.bf16.mxu0 0
      %3137 = vmatpush1.bf16.msra.mxu0 0
      %3138 = vmatprep.subr.bf16.mxu0 0
      %3139 = vmatpush1.bf16.msra.mxu0 0
      %3140 = vmatprep.subr.bf16.mxu0 0
      %3141 = vmatpush1.bf16.msra.mxu0 0
      %3142 = vmatprep.subr.bf16.mxu0 0
      %3143 = vmatpush1.bf16.msra.mxu0 0
      %3144 = vmatprep.subr.bf16.mxu0 0
      %3145 = vmatpush1.bf16.msra.mxu0 0
      %3146 = vmatprep.subr.bf16.mxu0 0
      %3147 = vmatpush1.bf16.msra.mxu0 0
      %3148 = vmatprep.subr.bf16.mxu0 0
      %3149 = vmatpush1.bf16.msra.mxu0 0
      %3150 = vmatprep.subr.bf16.mxu0 0
      %3151 = vmatpush1.bf16.msra.mxu0 0
      %3152 = vmatprep.subr.bf16.mxu0 0
      %3153 = vmatpush1.bf16.msra.mxu0 0
      %3154 = vmatprep.subr.bf16.mxu0 0
      %3155 = vmatpush1.bf16.msra.mxu0 0
      %3156 = vmatprep.subr.bf16.mxu0 0
      %3157 = vmatpush1.bf16.msra.mxu0 0
      %3158 = vmatprep.subr.bf16.mxu0 0
      %3159 = vmatpush1.bf16.msra.mxu0 0
      %3160 = vmatprep.subr.bf16.mxu0 0
      %3161 = vmatpush1.bf16.msra.mxu0 0
      %3162 = vmatprep.subr.bf16.mxu0 0
      %3163 = vmatpush1.bf16.msra.mxu0 0
      %3164 = vmatprep.mubr.bf16.mxu0 0
      %3165 = vmatmul.mubr.bf16.gmra.mrb[0].mxu0 %v3118
      %v3166 = vpop.f32.mrb[0].mxu0
      %v3167 = vadd.f32 0.0, %v3166
      %v3168 = vpop.f32.mrb[0].mxu0
      %v3169 = vpop.f32.mrb[0].mxu0
      %v3170 = vadd.f32 0.0, %v3169
      %v3171 = vpop.f32.mrb[0].mxu0
      %3172 = vmatprep.mubr.bf16.mxu0 0
      %3173 = vmatmul.mubr.bf16.gmra.mrb[0].mxu0 %v3121
      %v3174 = vpop.f32.mrb[0].mxu0
      %v3175 = vadd.f32 0.0, %v3174
      %v3176 = vpop.f32.mrb[0].mxu0
      %v3177 = vpop.f32.mrb[0].mxu0
      %v3178 = vadd.f32 0.0, %v3177
      %v3179 = vpop.f32.mrb[0].mxu0
      %3180 = vmatprep.mubr.bf16.mxu0 0
      %3181 = vmatmul.mubr.bf16.gmra.mrb[0].mxu0 %v3124
      %v3182 = vpop.f32.mrb[0].mxu0
      %v3183 = vadd.f32 0.0, %v3182
      %v3184 = vpop.f32.mrb[0].mxu0
      %v3185 = vpop.f32.mrb[0].mxu0
      %v3186 = vadd.f32 0.0, %v3185
      %v3187 = vpop.f32.mrb[0].mxu0
      %3188 = vmatprep.mubr.bf16.mxu0 0
      %3189 = vmatmul.mubr.bf16.gmra.mrb[0].mxu0 %v3127
      %v3190 = vpop.f32.mrb[0].mxu0
      %v3191 = vadd.f32 0.0, %v3190
      %v3192 = vpop.f32.mrb[0].mxu0
      %v3193 = vpop.f32.mrb[0].mxu0
      %v3194 = vadd.f32 0.0, %v3193
      %v3195 = vpop.f32.mrb[0].mxu0
      %3196 = vdwg.mxu0
      %v3197 = vadd.f32 %v2997, %v3167
      %v3198 = vadd.f32 %v2998, %v3170
      %v3199 = vadd.f32 %v2999, %v3175
      %v3200 = vadd.f32 %v3000, %v3178
      %v3201 = vadd.f32 %v3001, %v3183
      %v3202 = vadd.f32 %v3002, %v3186
      %v3203 = vadd.f32 %v3003, %v3191
      %v3204 = vadd.f32 %v3004, %v3194
      %s3205 = scalar_lea.vmem %s6, 256
      %v3206 = vld [vmem:[%s3205] sm:$0xf]
      %v3207 = vld [vmem:[%s3205 + $0x4] sm:$0xf]
      %v3208 = vld [vmem:[%s3205 + $0x8] sm:$0xf]
      %v3209 = vld [vmem:[%s3205 + $0xc] sm:$0xf]
      %v3210 = vld [vmem:[%s3205 + $0x10] sm:$0xf]
      %v3211 = vld [vmem:[%s3205 + $0x14] sm:$0xf]
      %v3212 = vld [vmem:[%s3205 + $0x18] sm:$0xf]
      %v3213 = vld [vmem:[%s3205 + $0x1c] sm:$0xf]
      %v3222 = vunpack.c.l.b16 %v3206
      %v3223 = vunpack.c.l.b16 %v3207
      %v3224 = vunpack.c.l.b16 %v3208
      %v3225 = vunpack.c.l.b16 %v3209
      %v3226 = vunpack.c.l.b16 %v3210
      %v3227 = vunpack.c.l.b16 %v3211
      %v3228 = vunpack.c.l.b16 %v3212
      %v3229 = vunpack.c.l.b16 %v3213
      %v3230 = vpack.c.b16 %v3223, %v3222
      %v3231 = vpack.c.b16 %v3225, %v3224
      %v3232 = vpack.c.b16 %v3227, %v3226
      %v3233 = vpack.c.b16 %v3229, %v3228
      %v3235 = vsel %vm756, %v3230, 0
      %v3238 = vsel %vm756, %v3231, 0
      %v3241 = vsel %vm756, %v3232, 0
      %v3244 = vsel %vm756, %v3233, 0
      %3246 = vmatprep.subr.bf16.mxu0 0
      %3247 = vmatpush1.bf16.msra.mxu0 %v1621
      %3248 = vmatprep.subr.bf16.mxu0 0
      %3249 = vmatpush1.bf16.msra.mxu0 0
      %3250 = vmatprep.subr.bf16.mxu0 0
      %3251 = vmatpush1.bf16.msra.mxu0 0
      %3252 = vmatprep.subr.bf16.mxu0 0
      %3253 = vmatpush1.bf16.msra.mxu0 0
      %3254 = vmatprep.subr.bf16.mxu0 0
      %3255 = vmatpush1.bf16.msra.mxu0 0
      %3256 = vmatprep.subr.bf16.mxu0 0
      %3257 = vmatpush1.bf16.msra.mxu0 0
      %3258 = vmatprep.subr.bf16.mxu0 0
      %3259 = vmatpush1.bf16.msra.mxu0 0
      %3260 = vmatprep.subr.bf16.mxu0 0
      %3261 = vmatpush1.bf16.msra.mxu0 0
      %3262 = vmatprep.subr.bf16.mxu0 0
      %3263 = vmatpush1.bf16.msra.mxu0 0
      %3264 = vmatprep.subr.bf16.mxu0 0
      %3265 = vmatpush1.bf16.msra.mxu0 0
      %3266 = vmatprep.subr.bf16.mxu0 0
      %3267 = vmatpush1.bf16.msra.mxu0 0
      %3268 = vmatprep.subr.bf16.mxu0 0
      %3269 = vmatpush1.bf16.msra.mxu0 0
      %3270 = vmatprep.subr.bf16.mxu0 0
      %3271 = vmatpush1.bf16.msra.mxu0 0
      %3272 = vmatprep.subr.bf16.mxu0 0
      %3273 = vmatpush1.bf16.msra.mxu0 0
      %3274 = vmatprep.subr.bf16.mxu0 0
      %3275 = vmatpush1.bf16.msra.mxu0 0
      %3276 = vmatprep.subr.bf16.mxu0 0
      %3277 = vmatpush1.bf16.msra.mxu0 0
      %3278 = vmatprep.mubr.bf16.mxu0 0
      %3279 = vmatmul.mubr.bf16.gmra.mrb[0].mxu0 %v3235
      %v3280 = vpop.f32.mrb[0].mxu0
      %v3281 = vadd.f32 0.0, %v3280
      %v3282 = vpop.f32.mrb[0].mxu0
      %v3283 = vpop.f32.mrb[0].mxu0
      %v3284 = vadd.f32 0.0, %v3283
      %v3285 = vpop.f32.mrb[0].mxu0
      %3286 = vmatprep.mubr.bf16.mxu0 0
      %3287 = vmatmul.mubr.bf16.gmra.mrb[0].mxu0 %v3238
      %v3288 = vpop.f32.mrb[0].mxu0
      %v3289 = vadd.f32 0.0, %v3288
      %v3290 = vpop.f32.mrb[0].mxu0
      %v3291 = vpop.f32.mrb[0].mxu0
      %v3292 = vadd.f32 0.0, %v3291
      %v3293 = vpop.f32.mrb[0].mxu0
      %3294 = vmatprep.mubr.bf16.mxu0 0
      %3295 = vmatmul.mubr.bf16.gmra.mrb[0].mxu0 %v3241
      %v3296 = vpop.f32.mrb[0].mxu0
      %v3297 = vadd.f32 0.0, %v3296
      %v3298 = vpop.f32.mrb[0].mxu0
      %v3299 = vpop.f32.mrb[0].mxu0
      %v3300 = vadd.f32 0.0, %v3299
      %v3301 = vpop.f32.mrb[0].mxu0
      %3302 = vmatprep.mubr.bf16.mxu0 0
      %3303 = vmatmul.mubr.bf16.gmra.mrb[0].mxu0 %v3244
      %v3304 = vpop.f32.mrb[0].mxu0
      %v3305 = vadd.f32 0.0, %v3304
      %v3306 = vpop.f32.mrb[0].mxu0
      %v3307 = vpop.f32.mrb[0].mxu0
      %v3308 = vadd.f32 0.0, %v3307
      %v3309 = vpop.f32.mrb[0].mxu0
      %3310 = vdwg.mxu0
      %v3311 = vpack.c.bf16 %v3284, %v3281
      %v3312 = vpack.c.bf16 %v3292, %v3289
      %v3313 = vpack.c.bf16 %v3300, %v3297
      %v3314 = vpack.c.bf16 %v3308, %v3305
      %s3315 = scalar_lea.vmem %s7, 32
      %v3316 = vld [vmem:[%s3315] sm:$0xf]
      %v3318 = vsel %vm1618, %v3311, 0
      %v3321 = vsel %vm1618, %v3312, 0
      %v3324 = vsel %vm1618, %v3313, 0
      %v3327 = vsel %vm1618, %v3314, 0
      %v3330 = vsel %vm1856, %v3316, 0
      %3332 = vmatprep.subr.bf16.mxu0 0
      %3333 = vmatpush1.bf16.msra.mxu0 %v3330
      %3334 = vmatprep.subr.bf16.mxu0 0
      %3335 = vmatpush1.bf16.msra.mxu0 0
      %3336 = vmatprep.subr.bf16.mxu0 0
      %3337 = vmatpush1.bf16.msra.mxu0 0
      %3338 = vmatprep.subr.bf16.mxu0 0
      %3339 = vmatpush1.bf16.msra.mxu0 0
      %3340 = vmatprep.subr.bf16.mxu0 0
      %3341 = vmatpush1.bf16.msra.mxu0 0
      %3342 = vmatprep.subr.bf16.mxu0 0
      %3343 = vmatpush1.bf16.msra.mxu0 0
      %3344 = vmatprep.subr.bf16.mxu0 0
      %3345 = vmatpush1.bf16.msra.mxu0 0
      %3346 = vmatprep.subr.bf16.mxu0 0
      %3347 = vmatpush1.bf16.msra.mxu0 0
      %3348 = vmatprep.subr.bf16.mxu0 0
      %3349 = vmatpush1.bf16.msra.mxu0 0
      %3350 = vmatprep.subr.bf16.mxu0 0
      %3351 = vmatpush1.bf16.msra.mxu0 0
      %3352 = vmatprep.subr.bf16.mxu0 0
      %3353 = vmatpush1.bf16.msra.mxu0 0
      %3354 = vmatprep.subr.bf16.mxu0 0
      %3355 = vmatpush1.bf16.msra.mxu0 0
      %3356 = vmatprep.subr.bf16.mxu0 0
      %3357 = vmatpush1.bf16.msra.mxu0 0
      %3358 = vmatprep.subr.bf16.mxu0 0
      %3359 = vmatpush1.bf16.msra.mxu0 0
      %3360 = vmatprep.subr.bf16.mxu0 0
      %3361 = vmatpush1.bf16.msra.mxu0 0
      %3362 = vmatprep.subr.bf16.mxu0 0
      %3363 = vmatpush1.bf16.msra.mxu0 0
      %3364 = vmatprep.mubr.bf16.mxu0 0
      %3365 = vmatmul.mubr.bf16.gmra.mrb[0].mxu0 %v3318
      %v3366 = vpop.f32.mrb[0].mxu0
      %v3367 = vadd.f32 0.0, %v3366
      %v3368 = vpop.f32.mrb[0].mxu0
      %v3369 = vpop.f32.mrb[0].mxu0
      %v3370 = vadd.f32 0.0, %v3369
      %v3371 = vpop.f32.mrb[0].mxu0
      %3372 = vmatprep.mubr.bf16.mxu0 0
      %3373 = vmatmul.mubr.bf16.gmra.mrb[0].mxu0 %v3321
      %v3374 = vpop.f32.mrb[0].mxu0
      %v3375 = vadd.f32 0.0, %v3374
      %v3376 = vpop.f32.mrb[0].mxu0
      %v3377 = vpop.f32.mrb[0].mxu0
      %v3378 = vadd.f32 0.0, %v3377
      %v3379 = vpop.f32.mrb[0].mxu0
      %3380 = vmatprep.mubr.bf16.mxu0 0
      %3381 = vmatmul.mubr.bf16.gmra.mrb[0].mxu0 %v3324
      %v3382 = vpop.f32.mrb[0].mxu0
      %v3383 = vadd.f32 0.0, %v3382
      %v3384 = vpop.f32.mrb[0].mxu0
      %v3385 = vpop.f32.mrb[0].mxu0
      %v3386 = vadd.f32 0.0, %v3385
      %v3387 = vpop.f32.mrb[0].mxu0
      %3388 = vmatprep.mubr.bf16.mxu0 0
      %3389 = vmatmul.mubr.bf16.gmra.mrb[0].mxu0 %v3327
      %v3390 = vpop.f32.mrb[0].mxu0
      %v3391 = vadd.f32 0.0, %v3390
      %v3392 = vpop.f32.mrb[0].mxu0
      %v3393 = vpop.f32.mrb[0].mxu0
      %v3394 = vadd.f32 0.0, %v3393
      %v3395 = vpop.f32.mrb[0].mxu0
      %3396 = vdwg.mxu0
      %v3397 = vadd.f32 %v3197, %v3367
      %v3398 = vadd.f32 %v3198, %v3370
      %v3399 = vadd.f32 %v3199, %v3375
      %v3400 = vadd.f32 %v3200, %v3378
      %v3401 = vadd.f32 %v3201, %v3383
      %v3402 = vadd.f32 %v3202, %v3386
      %v3403 = vadd.f32 %v3203, %v3391
      %v3404 = vadd.f32 %v3204, %v3394
      %v3405 = vld [vmem:[%s8] sm:$0x1]
      %v3407 = vlaneseq
      %v3408 = vshrl.u32 %v3407, 7
      %v3409 = vsub.s32 0, %v3408
      %v3410 = vrot.slane %v3405, %v3409
      %v3412 = vadd.f32 %v3397, %v3410
      %v3413 = vadd.f32 %v3398, %v3410
      %v3414 = vadd.f32 %v3399, %v3410
      %v3415 = vadd.f32 %v3400, %v3410
      %v3416 = vadd.f32 %v3401, %v3410
      %v3417 = vadd.f32 %v3402, %v3410
      %v3418 = vadd.f32 %v3403, %v3410
      %v3419 = vadd.f32 %v3404, %v3410
      %v3420 = vmax.f32 %v3412, 0.0
      %v3421 = vmax.f32 %v3413, 0.0
      %v3422 = vmax.f32 %v3414, 0.0
      %v3423 = vmax.f32 %v3415, 0.0
      %v3424 = vmax.f32 %v3416, 0.0
      %v3425 = vmax.f32 %v3417, 0.0
      %v3426 = vmax.f32 %v3418, 0.0
      %v3427 = vmax.f32 %v3419, 0.0
      %v3428 = vpack.c.bf16 %v3421, %v3420
      %v3429 = vpack.c.bf16 %v3423, %v3422
      %v3430 = vpack.c.bf16 %v3425, %v3424
      %v3431 = vpack.c.bf16 %v3427, %v3426
      %v3432 = vld [vmem:[%s9] sm:$0xf]
      %v3433 = vld [vmem:[%s9 + $0x4] sm:$0xf]
      %v3434 = vld [vmem:[%s9 + $0x8] sm:$0xf]
      %v3435 = vld [vmem:[%s9 + $0xc] sm:$0xf]
      %v3436 = vld [vmem:[%s9 + $0x10] sm:$0xf]
      %v3437 = vld [vmem:[%s9 + $0x14] sm:$0xf]
      %v3438 = vld [vmem:[%s9 + $0x18] sm:$0xf]
      %v3439 = vld [vmem:[%s9 + $0x1c] sm:$0xf]
      %v3448 = vunpack.c.l.b16 %v3432
      %v3449 = vunpack.c.l.b16 %v3433
      %v3450 = vunpack.c.l.b16 %v3434
      %v3451 = vunpack.c.l.b16 %v3435
      %v3452 = vunpack.c.l.b16 %v3436
      %v3453 = vunpack.c.l.b16 %v3437
      %v3454 = vunpack.c.l.b16 %v3438
      %v3455 = vunpack.c.l.b16 %v3439
      %v3456 = vpack.c.b16 %v3449, %v3448
      %v3457 = vpack.c.b16 %v3451, %v3450
      %v3458 = vpack.c.b16 %v3453, %v3452
      %v3459 = vpack.c.b16 %v3455, %v3454
      %v3461 = vsel %vm646, %v3456, 0
      %v3464 = vsel %vm646, %v3457, 0
      %v3467 = vsel %vm646, %v3458, 0
      %v3470 = vsel %vm646, %v3459, 0
      %3472 = vmatprep.subr.bf16.mxu0 0
      %3473 = vmatpush1.bf16.msra.mxu0 %v3428
      %3474 = vmatprep.subr.bf16.mxu0 0
      %3475 = vmatpush1.bf16.msra.mxu0 %v3429
      %3476 = vmatprep.subr.bf16.mxu0 0
      %3477 = vmatpush1.bf16.msra.mxu0 %v3430
      %3478 = vmatprep.subr.bf16.mxu0 0
      %3479 = vmatpush1.bf16.msra.mxu0 %v3431
      %3480 = vmatprep.subr.bf16.mxu0 0
      %3481 = vmatpush1.bf16.msra.mxu0 0
      %3482 = vmatprep.subr.bf16.mxu0 0
      %3483 = vmatpush1.bf16.msra.mxu0 0
      %3484 = vmatprep.subr.bf16.mxu0 0
      %3485 = vmatpush1.bf16.msra.mxu0 0
      %3486 = vmatprep.subr.bf16.mxu0 0
      %3487 = vmatpush1.bf16.msra.mxu0 0
      %3488 = vmatprep.subr.bf16.mxu0 0
      %3489 = vmatpush1.bf16.msra.mxu0 0
      %3490 = vmatprep.subr.bf16.mxu0 0
      %3491 = vmatpush1.bf16.msra.mxu0 0
      %3492 = vmatprep.subr.bf16.mxu0 0
      %3493 = vmatpush1.bf16.msra.mxu0 0
      %3494 = vmatprep.subr.bf16.mxu0 0
      %3495 = vmatpush1.bf16.msra.mxu0 0
      %3496 = vmatprep.subr.bf16.mxu0 0
      %3497 = vmatpush1.bf16.msra.mxu0 0
      %3498 = vmatprep.subr.bf16.mxu0 0
      %3499 = vmatpush1.bf16.msra.mxu0 0
      %3500 = vmatprep.subr.bf16.mxu0 0
      %3501 = vmatpush1.bf16.msra.mxu0 0
      %3502 = vmatprep.subr.bf16.mxu0 0
      %3503 = vmatpush1.bf16.msra.mxu0 0
      %3504 = vmatprep.mubr.bf16.mxu0 0
      %3505 = vmatmul.mubr.bf16.gmra.mrb[0].mxu0 %v3461
      %v3506 = vpop.f32.mrb[0].mxu0
      %v3507 = vadd.f32 0.0, %v3506
      %v3508 = vpop.f32.mrb[0].mxu0
      %v3509 = vpop.f32.mrb[0].mxu0
      %v3510 = vadd.f32 0.0, %v3509
      %v3511 = vpop.f32.mrb[0].mxu0
      %3512 = vmatprep.mubr.bf16.mxu0 0
      %3513 = vmatmul.mubr.bf16.gmra.mrb[0].mxu0 %v3464
      %v3514 = vpop.f32.mrb[0].mxu0
      %v3515 = vadd.f32 0.0, %v3514
      %v3516 = vpop.f32.mrb[0].mxu0
      %v3517 = vpop.f32.mrb[0].mxu0
      %v3518 = vadd.f32 0.0, %v3517
      %v3519 = vpop.f32.mrb[0].mxu0
      %3520 = vmatprep.mubr.bf16.mxu0 0
      %3521 = vmatmul.mubr.bf16.gmra.mrb[0].mxu0 %v3467
      %v3522 = vpop.f32.mrb[0].mxu0
      %v3523 = vadd.f32 0.0, %v3522
      %v3524 = vpop.f32.mrb[0].mxu0
      %v3525 = vpop.f32.mrb[0].mxu0
      %v3526 = vadd.f32 0.0, %v3525
      %v3527 = vpop.f32.mrb[0].mxu0
      %3528 = vmatprep.mubr.bf16.mxu0 0
      %3529 = vmatmul.mubr.bf16.gmra.mrb[0].mxu0 %v3470
      %v3530 = vpop.f32.mrb[0].mxu0
      %v3531 = vadd.f32 0.0, %v3530
      %v3532 = vpop.f32.mrb[0].mxu0
      %v3533 = vpop.f32.mrb[0].mxu0
      %v3534 = vadd.f32 0.0, %v3533
      %v3535 = vpop.f32.mrb[0].mxu0
      %3536 = vdwg.mxu0
      %v3537 = vpack.c.bf16 %v3510, %v3507
      %v3538 = vpack.c.bf16 %v3518, %v3515
      %v3539 = vpack.c.bf16 %v3526, %v3523
      %v3540 = vpack.c.bf16 %v3534, %v3531
      %v3541 = vld [vmem:[%s10] sm:$0xf]
      %v3542 = vld [vmem:[%s10 + $0x4] sm:$0xf]
      %s3543 = scalar_lea.vmem %s9, 32
      %v3544 = vld [vmem:[%s3543] sm:$0xf]
      %v3545 = vld [vmem:[%s3543 + $0x4] sm:$0xf]
      %v3546 = vld [vmem:[%s3543 + $0x8] sm:$0xf]
      %v3547 = vld [vmem:[%s3543 + $0xc] sm:$0xf]
      %v3548 = vld [vmem:[%s3543 + $0x10] sm:$0xf]
      %v3549 = vld [vmem:[%s3543 + $0x14] sm:$0xf]
      %v3550 = vld [vmem:[%s3543 + $0x18] sm:$0xf]
      %v3551 = vld [vmem:[%s3543 + $0x1c] sm:$0xf]
      %v3560 = vunpack.c.l.b16 %v3544
      %v3561 = vunpack.c.l.b16 %v3545
      %v3562 = vunpack.c.l.b16 %v3546
      %v3563 = vunpack.c.l.b16 %v3547
      %v3564 = vunpack.c.l.b16 %v3548
      %v3565 = vunpack.c.l.b16 %v3549
      %v3566 = vunpack.c.l.b16 %v3550
      %v3567 = vunpack.c.l.b16 %v3551
      %v3568 = vpack.c.b16 %v3561, %v3560
      %v3569 = vpack.c.b16 %v3563, %v3562
      %v3570 = vpack.c.b16 %v3565, %v3564
      %v3571 = vpack.c.b16 %v3567, %v3566
      %v3573 = vsel %vm646, %v3568, 0
      %v3576 = vsel %vm646, %v3569, 0
      %v3579 = vsel %vm646, %v3570, 0
      %v3582 = vsel %vm646, %v3571, 0
      %3584 = vmatprep.subr.bf16.mxu0 0
      %3585 = vmatpush1.bf16.msra.mxu0 %v3428
      %3586 = vmatprep.subr.bf16.mxu0 0
      %3587 = vmatpush1.bf16.msra.mxu0 %v3429
      %3588 = vmatprep.subr.bf16.mxu0 0
      %3589 = vmatpush1.bf16.msra.mxu0 %v3430
      %3590 = vmatprep.subr.bf16.mxu0 0
      %3591 = vmatpush1.bf16.msra.mxu0 %v3431
      %3592 = vmatprep.subr.bf16.mxu0 0
      %3593 = vmatpush1.bf16.msra.mxu0 0
      %3594 = vmatprep.subr.bf16.mxu0 0
      %3595 = vmatpush1.bf16.msra.mxu0 0
      %3596 = vmatprep.subr.bf16.mxu0 0
      %3597 = vmatpush1.bf16.msra.mxu0 0
      %3598 = vmatprep.subr.bf16.mxu0 0
      %3599 = vmatpush1.bf16.msra.mxu0 0
      %3600 = vmatprep.subr.bf16.mxu0 0
      %3601 = vmatpush1.bf16.msra.mxu0 0
      %3602 = vmatprep.subr.bf16.mxu0 0
      %3603 = vmatpush1.bf16.msra.mxu0 0
      %3604 = vmatprep.subr.bf16.mxu0 0
      %3605 = vmatpush1.bf16.msra.mxu0 0
      %3606 = vmatprep.subr.bf16.mxu0 0
      %3607 = vmatpush1.bf16.msra.mxu0 0
      %3608 = vmatprep.subr.bf16.mxu0 0
      %3609 = vmatpush1.bf16.msra.mxu0 0
      %3610 = vmatprep.subr.bf16.mxu0 0
      %3611 = vmatpush1.bf16.msra.mxu0 0
      %3612 = vmatprep.subr.bf16.mxu0 0
      %3613 = vmatpush1.bf16.msra.mxu0 0
      %3614 = vmatprep.subr.bf16.mxu0 0
      %3615 = vmatpush1.bf16.msra.mxu0 0
      %3616 = vmatprep.mubr.bf16.mxu0 0
      %3617 = vmatmul.mubr.bf16.gmra.mrb[0].mxu0 %v3573
      %v3618 = vpop.f32.mrb[0].mxu0
      %v3619 = vadd.f32 0.0, %v3618
      %v3620 = vpop.f32.mrb[0].mxu0
      %v3621 = vpop.f32.mrb[0].mxu0
      %v3622 = vadd.f32 0.0, %v3621
      %v3623 = vpop.f32.mrb[0].mxu0
      %3624 = vmatprep.mubr.bf16.mxu0 0
      %3625 = vmatmul.mubr.bf16.gmra.mrb[0].mxu0 %v3576
      %v3626 = vpop.f32.mrb[0].mxu0
      %v3627 = vadd.f32 0.0, %v3626
      %v3628 = vpop.f32.mrb[0].mxu0
      %v3629 = vpop.f32.mrb[0].mxu0
      %v3630 = vadd.f32 0.0, %v3629
      %v3631 = vpop.f32.mrb[0].mxu0
      %3632 = vmatprep.mubr.bf16.mxu0 0
      %3633 = vmatmul.mubr.bf16.gmra.mrb[0].mxu0 %v3579
      %v3634 = vpop.f32.mrb[0].mxu0
      %v3635 = vadd.f32 0.0, %v3634
      %v3636 = vpop.f32.mrb[0].mxu0
      %v3637 = vpop.f32.mrb[0].mxu0
      %v3638 = vadd.f32 0.0, %v3637
      %v3639 = vpop.f32.mrb[0].mxu0
      %3640 = vmatprep.mubr.bf16.mxu0 0
      %3641 = vmatmul.mubr.bf16.gmra.mrb[0].mxu0 %v3582
      %v3642 = vpop.f32.mrb[0].mxu0
      %v3643 = vadd.f32 0.0, %v3642
      %v3644 = vpop.f32.mrb[0].mxu0
      %v3645 = vpop.f32.mrb[0].mxu0
      %v3646 = vadd.f32 0.0, %v3645
      %v3647 = vpop.f32.mrb[0].mxu0
      %3648 = vdwg.mxu0
      %v3649 = vpack.c.bf16 %v3622, %v3619
      %v3650 = vpack.c.bf16 %v3630, %v3627
      %v3651 = vpack.c.bf16 %v3638, %v3635
      %v3652 = vpack.c.bf16 %v3646, %v3643
      %s3653 = scalar_lea.vmem %s10, 8
      %v3654 = vld [vmem:[%s3653] sm:$0xf]
      %v3655 = vld [vmem:[%s3653 + $0x4] sm:$0xf]
      %v3658 = vunpack.c.l.b16 %v3654
      %v3659 = vunpack.c.l.b16 %v3655
      %v3660 = vpack.c.b16 %v3659, %v3658
      %v3663 = vsel %vm756, %v3649, 0
      %v3666 = vsel %vm756, %v3650, 0
      %v3669 = vsel %vm756, %v3651, 0
      %v3672 = vsel %vm756, %v3652, 0
      %3674 = vmatprep.subr.bf16.mxu0 0
      %3675 = vmatpush1.bf16.msra.mxu0 %v3660
      %3676 = vmatprep.subr.bf16.mxu0 0
      %3677 = vmatpush1.bf16.msra.mxu0 0
      %3678 = vmatprep.subr.bf16.mxu0 0
      %3679 = vmatpush1.bf16.msra.mxu0 0
      %3680 = vmatprep.subr.bf16.mxu0 0
      %3681 = vmatpush1.bf16.msra.mxu0 0
      %3682 = vmatprep.subr.bf16.mxu0 0
      %3683 = vmatpush1.bf16.msra.mxu0 0
      %3684 = vmatprep.subr.bf16.mxu0 0
      %3685 = vmatpush1.bf16.msra.mxu0 0
      %3686 = vmatprep.subr.bf16.mxu0 0
      %3687 = vmatpush1.bf16.msra.mxu0 0
      %3688 = vmatprep.subr.bf16.mxu0 0
      %3689 = vmatpush1.bf16.msra.mxu0 0
      %3690 = vmatprep.subr.bf16.mxu0 0
      %3691 = vmatpush1.bf16.msra.mxu0 0
      %3692 = vmatprep.subr.bf16.mxu0 0
      %3693 = vmatpush1.bf16.msra.mxu0 0
      %3694 = vmatprep.subr.bf16.mxu0 0
      %3695 = vmatpush1.bf16.msra.mxu0 0
      %3696 = vmatprep.subr.bf16.mxu0 0
      %3697 = vmatpush1.bf16.msra.mxu0 0
      %3698 = vmatprep.subr.bf16.mxu0 0
      %3699 = vmatpush1.bf16.msra.mxu0 0
      %3700 = vmatprep.subr.bf16.mxu0 0
      %3701 = vmatpush1.bf16.msra.mxu0 0
      %3702 = vmatprep.subr.bf16.mxu0 0
      %3703 = vmatpush1.bf16.msra.mxu0 0
      %3704 = vmatprep.subr.bf16.mxu0 0
      %3705 = vmatpush1.bf16.msra.mxu0 0
      %3706 = vmatprep.mubr.bf16.mxu0 0
      %3707 = vmatmul.mubr.bf16.gmra.mrb[0].mxu0 %v3663
      %v3708 = vpop.f32.mrb[0].mxu0
      %v3709 = vadd.f32 0.0, %v3708
      %v3710 = vpop.f32.mrb[0].mxu0
      %v3711 = vpop.f32.mrb[0].mxu0
      %v3712 = vadd.f32 0.0, %v3711
      %v3713 = vpop.f32.mrb[0].mxu0
      %3714 = vmatprep.mubr.bf16.mxu0 0
      %3715 = vmatmul.mubr.bf16.gmra.mrb[0].mxu0 %v3666
      %v3716 = vpop.f32.mrb[0].mxu0
      %v3717 = vadd.f32 0.0, %v3716
      %v3718 = vpop.f32.mrb[0].mxu0
      %v3719 = vpop.f32.mrb[0].mxu0
      %v3720 = vadd.f32 0.0, %v3719
      %v3721 = vpop.f32.mrb[0].mxu0
      %3722 = vmatprep.mubr.bf16.mxu0 0
      %3723 = vmatmul.mubr.bf16.gmra.mrb[0].mxu0 %v3669
      %v3724 = vpop.f32.mrb[0].mxu0
      %v3725 = vadd.f32 0.0, %v3724
      %v3726 = vpop.f32.mrb[0].mxu0
      %v3727 = vpop.f32.mrb[0].mxu0
      %v3728 = vadd.f32 0.0, %v3727
      %v3729 = vpop.f32.mrb[0].mxu0
      %3730 = vmatprep.mubr.bf16.mxu0 0
      %3731 = vmatmul.mubr.bf16.gmra.mrb[0].mxu0 %v3672
      %v3732 = vpop.f32.mrb[0].mxu0
      %v3733 = vadd.f32 0.0, %v3732
      %v3734 = vpop.f32.mrb[0].mxu0
      %v3735 = vpop.f32.mrb[0].mxu0
      %v3736 = vadd.f32 0.0, %v3735
      %v3737 = vpop.f32.mrb[0].mxu0
      %3738 = vdwg.mxu0
      %v3741 = vunpack.c.l.b16 %v3541
      %v3742 = vunpack.c.l.b16 %v3542
      %v3743 = vpack.c.b16 %v3742, %v3741
      %v3746 = vsel %vm756, %v3537, 0
      %v3749 = vsel %vm756, %v3538, 0
      %v3752 = vsel %vm756, %v3539, 0
      %v3755 = vsel %vm756, %v3540, 0
      %3757 = vmatprep.subr.bf16.mxu0 0
      %3758 = vmatpush1.bf16.msra.mxu0 %v3743
      %3759 = vmatprep.subr.bf16.mxu0 0
      %3760 = vmatpush1.bf16.msra.mxu0 0
      %3761 = vmatprep.subr.bf16.mxu0 0
      %3762 = vmatpush1.bf16.msra.mxu0 0
      %3763 = vmatprep.subr.bf16.mxu0 0
      %3764 = vmatpush1.bf16.msra.mxu0 0
      %3765 = vmatprep.subr.bf16.mxu0 0
      %3766 = vmatpush1.bf16.msra.mxu0 0
      %3767 = vmatprep.subr.bf16.mxu0 0
      %3768 = vmatpush1.bf16.msra.mxu0 0
      %3769 = vmatprep.subr.bf16.mxu0 0
      %3770 = vmatpush1.bf16.msra.mxu0 0
      %3771 = vmatprep.subr.bf16.mxu0 0
      %3772 = vmatpush1.bf16.msra.mxu0 0
      %3773 = vmatprep.subr.bf16.mxu0 0
      %3774 = vmatpush1.bf16.msra.mxu0 0
      %3775 = vmatprep.subr.bf16.mxu0 0
      %3776 = vmatpush1.bf16.msra.mxu0 0
      %3777 = vmatprep.subr.bf16.mxu0 0
      %3778 = vmatpush1.bf16.msra.mxu0 0
      %3779 = vmatprep.subr.bf16.mxu0 0
      %3780 = vmatpush1.bf16.msra.mxu0 0
      %3781 = vmatprep.subr.bf16.mxu0 0
      %3782 = vmatpush1.bf16.msra.mxu0 0
      %3783 = vmatprep.subr.bf16.mxu0 0
      %3784 = vmatpush1.bf16.msra.mxu0 0
      %3785 = vmatprep.subr.bf16.mxu0 0
      %3786 = vmatpush1.bf16.msra.mxu0 0
      %3787 = vmatprep.subr.bf16.mxu0 0
      %3788 = vmatpush1.bf16.msra.mxu0 0
      %3789 = vmatprep.mubr.bf16.mxu0 0
      %3790 = vmatmul.mubr.bf16.gmra.mrb[0].mxu0 %v3746
      %v3791 = vpop.f32.mrb[0].mxu0
      %v3792 = vadd.f32 %v3709, %v3791
      %v3793 = vpop.f32.mrb[0].mxu0
      %v3794 = vpop.f32.mrb[0].mxu0
      %v3795 = vadd.f32 %v3712, %v3794
      %v3796 = vpop.f32.mrb[0].mxu0
      %3797 = vmatprep.mubr.bf16.mxu0 0
      %3798 = vmatmul.mubr.bf16.gmra.mrb[0].mxu0 %v3749
      %v3799 = vpop.f32.mrb[0].mxu0
      %v3800 = vadd.f32 %v3717, %v3799
      %v3801 = vpop.f32.mrb[0].mxu0
      %v3802 = vpop.f32.mrb[0].mxu0
      %v3803 = vadd.f32 %v3720, %v3802
      %v3804 = vpop.f32.mrb[0].mxu0
      %3805 = vmatprep.mubr.bf16.mxu0 0
      %3806 = vmatmul.mubr.bf16.gmra.mrb[0].mxu0 %v3752
      %v3807 = vpop.f32.mrb[0].mxu0
      %v3808 = vadd.f32 %v3725, %v3807
      %v3809 = vpop.f32.mrb[0].mxu0
      %v3810 = vpop.f32.mrb[0].mxu0
      %v3811 = vadd.f32 %v3728, %v3810
      %v3812 = vpop.f32.mrb[0].mxu0
      %3813 = vmatprep.mubr.bf16.mxu0 0
      %3814 = vmatmul.mubr.bf16.gmra.mrb[0].mxu0 %v3755
      %v3815 = vpop.f32.mrb[0].mxu0
      %v3816 = vadd.f32 %v3733, %v3815
      %v3817 = vpop.f32.mrb[0].mxu0
      %v3818 = vpop.f32.mrb[0].mxu0
      %v3819 = vadd.f32 %v3736, %v3818
      %v3820 = vpop.f32.mrb[0].mxu0
      %3821 = vdwg.mxu0
      %s3822 = scalar_lea.vmem %s9, 64
      %v3823 = vld [vmem:[%s3822] sm:$0xf]
      %v3824 = vld [vmem:[%s3822 + $0x4] sm:$0xf]
      %v3825 = vld [vmem:[%s3822 + $0x8] sm:$0xf]
      %v3826 = vld [vmem:[%s3822 + $0xc] sm:$0xf]
      %v3827 = vld [vmem:[%s3822 + $0x10] sm:$0xf]
      %v3828 = vld [vmem:[%s3822 + $0x14] sm:$0xf]
      %v3829 = vld [vmem:[%s3822 + $0x18] sm:$0xf]
      %v3830 = vld [vmem:[%s3822 + $0x1c] sm:$0xf]
      %v3839 = vunpack.c.l.b16 %v3823
      %v3840 = vunpack.c.l.b16 %v3824
      %v3841 = vunpack.c.l.b16 %v3825
      %v3842 = vunpack.c.l.b16 %v3826
      %v3843 = vunpack.c.l.b16 %v3827
      %v3844 = vunpack.c.l.b16 %v3828
      %v3845 = vunpack.c.l.b16 %v3829
      %v3846 = vunpack.c.l.b16 %v3830
      %v3847 = vpack.c.b16 %v3840, %v3839
      %v3848 = vpack.c.b16 %v3842, %v3841
      %v3849 = vpack.c.b16 %v3844, %v3843
      %v3850 = vpack.c.b16 %v3846, %v3845
      %v3852 = vsel %vm646, %v3847, 0
      %v3855 = vsel %vm646, %v3848, 0
      %v3858 = vsel %vm646, %v3849, 0
      %v3861 = vsel %vm646, %v3850, 0
      %3863 = vmatprep.subr.bf16.mxu0 0
      %3864 = vmatpush1.bf16.msra.mxu0 %v3428
      %3865 = vmatprep.subr.bf16.mxu0 0
      %3866 = vmatpush1.bf16.msra.mxu0 %v3429
      %3867 = vmatprep.subr.bf16.mxu0 0
      %3868 = vmatpush1.bf16.msra.mxu0 %v3430
      %3869 = vmatprep.subr.bf16.mxu0 0
      %3870 = vmatpush1.bf16.msra.mxu0 %v3431
      %3871 = vmatprep.subr.bf16.mxu0 0
      %3872 = vmatpush1.bf16.msra.mxu0 0
      %3873 = vmatprep.subr.bf16.mxu0 0
      %3874 = vmatpush1.bf16.msra.mxu0 0
      %3875 = vmatprep.subr.bf16.mxu0 0
      %3876 = vmatpush1.bf16.msra.mxu0 0
      %3877 = vmatprep.subr.bf16.mxu0 0
      %3878 = vmatpush1.bf16.msra.mxu0 0
      %3879 = vmatprep.subr.bf16.mxu0 0
      %3880 = vmatpush1.bf16.msra.mxu0 0
      %3881 = vmatprep.subr.bf16.mxu0 0
      %3882 = vmatpush1.bf16.msra.mxu0 0
      %3883 = vmatprep.subr.bf16.mxu0 0
      %3884 = vmatpush1.bf16.msra.mxu0 0
      %3885 = vmatprep.subr.bf16.mxu0 0
      %3886 = vmatpush1.bf16.msra.mxu0 0
      %3887 = vmatprep.subr.bf16.mxu0 0
      %3888 = vmatpush1.bf16.msra.mxu0 0
      %3889 = vmatprep.subr.bf16.mxu0 0
      %3890 = vmatpush1.bf16.msra.mxu0 0
      %3891 = vmatprep.subr.bf16.mxu0 0
      %3892 = vmatpush1.bf16.msra.mxu0 0
      %3893 = vmatprep.subr.bf16.mxu0 0
      %3894 = vmatpush1.bf16.msra.mxu0 0
      %3895 = vmatprep.mubr.bf16.mxu0 0
      %3896 = vmatmul.mubr.bf16.gmra.mrb[0].mxu0 %v3852
      %v3897 = vpop.f32.mrb[0].mxu0
      %v3898 = vadd.f32 0.0, %v3897
      %v3899 = vpop.f32.mrb[0].mxu0
      %v3900 = vpop.f32.mrb[0].mxu0
      %v3901 = vadd.f32 0.0, %v3900
      %v3902 = vpop.f32.mrb[0].mxu0
      %3903 = vmatprep.mubr.bf16.mxu0 0
      %3904 = vmatmul.mubr.bf16.gmra.mrb[0].mxu0 %v3855
      %v3905 = vpop.f32.mrb[0].mxu0
      %v3906 = vadd.f32 0.0, %v3905
      %v3907 = vpop.f32.mrb[0].mxu0
      %v3908 = vpop.f32.mrb[0].mxu0
      %v3909 = vadd.f32 0.0, %v3908
      %v3910 = vpop.f32.mrb[0].mxu0
      %3911 = vmatprep.mubr.bf16.mxu0 0
      %3912 = vmatmul.mubr.bf16.gmra.mrb[0].mxu0 %v3858
      %v3913 = vpop.f32.mrb[0].mxu0
      %v3914 = vadd.f32 0.0, %v3913
      %v3915 = vpop.f32.mrb[0].mxu0
      %v3916 = vpop.f32.mrb[0].mxu0
      %v3917 = vadd.f32 0.0, %v3916
      %v3918 = vpop.f32.mrb[0].mxu0
      %3919 = vmatprep.mubr.bf16.mxu0 0
      %3920 = vmatmul.mubr.bf16.gmra.mrb[0].mxu0 %v3861
      %v3921 = vpop.f32.mrb[0].mxu0
      %v3922 = vadd.f32 0.0, %v3921
      %v3923 = vpop.f32.mrb[0].mxu0
      %v3924 = vpop.f32.mrb[0].mxu0
      %v3925 = vadd.f32 0.0, %v3924
      %v3926 = vpop.f32.mrb[0].mxu0
      %3927 = vdwg.mxu0
      %v3928 = vpack.c.bf16 %v3901, %v3898
      %v3929 = vpack.c.bf16 %v3909, %v3906
      %v3930 = vpack.c.bf16 %v3917, %v3914
      %v3931 = vpack.c.bf16 %v3925, %v3922
      %s3932 = scalar_lea.vmem %s10, 16
      %v3933 = vld [vmem:[%s3932] sm:$0xf]
      %v3934 = vld [vmem:[%s3932 + $0x4] sm:$0xf]
      %v3937 = vunpack.c.l.b16 %v3933
      %v3938 = vunpack.c.l.b16 %v3934
      %v3939 = vpack.c.b16 %v3938, %v3937
      %v3942 = vsel %vm756, %v3928, 0
      %v3945 = vsel %vm756, %v3929, 0
      %v3948 = vsel %vm756, %v3930, 0
      %v3951 = vsel %vm756, %v3931, 0
      %3953 = vmatprep.subr.bf16.mxu0 0
      %3954 = vmatpush1.bf16.msra.mxu0 %v3939
      %3955 = vmatprep.subr.bf16.mxu0 0
      %3956 = vmatpush1.bf16.msra.mxu0 0
      %3957 = vmatprep.subr.bf16.mxu0 0
      %3958 = vmatpush1.bf16.msra.mxu0 0
      %3959 = vmatprep.subr.bf16.mxu0 0
      %3960 = vmatpush1.bf16.msra.mxu0 0
      %3961 = vmatprep.subr.bf16.mxu0 0
      %3962 = vmatpush1.bf16.msra.mxu0 0
      %3963 = vmatprep.subr.bf16.mxu0 0
      %3964 = vmatpush1.bf16.msra.mxu0 0
      %3965 = vmatprep.subr.bf16.mxu0 0
      %3966 = vmatpush1.bf16.msra.mxu0 0
      %3967 = vmatprep.subr.bf16.mxu0 0
      %3968 = vmatpush1.bf16.msra.mxu0 0
      %3969 = vmatprep.subr.bf16.mxu0 0
      %3970 = vmatpush1.bf16.msra.mxu0 0
      %3971 = vmatprep.subr.bf16.mxu0 0
      %3972 = vmatpush1.bf16.msra.mxu0 0
      %3973 = vmatprep.subr.bf16.mxu0 0
      %3974 = vmatpush1.bf16.msra.mxu0 0
      %3975 = vmatprep.subr.bf16.mxu0 0
      %3976 = vmatpush1.bf16.msra.mxu0 0
      %3977 = vmatprep.subr.bf16.mxu0 0
      %3978 = vmatpush1.bf16.msra.mxu0 0
      %3979 = vmatprep.subr.bf16.mxu0 0
      %3980 = vmatpush1.bf16.msra.mxu0 0
      %3981 = vmatprep.subr.bf16.mxu0 0
      %3982 = vmatpush1.bf16.msra.mxu0 0
      %3983 = vmatprep.subr.bf16.mxu0 0
      %3984 = vmatpush1.bf16.msra.mxu0 0
      %3985 = vmatprep.mubr.bf16.mxu0 0
      %3986 = vmatmul.mubr.bf16.gmra.mrb[0].mxu0 %v3942
      %v3987 = vpop.f32.mrb[0].mxu0
      %v3988 = vadd.f32 0.0, %v3987
      %v3989 = vpop.f32.mrb[0].mxu0
      %v3990 = vpop.f32.mrb[0].mxu0
      %v3991 = vadd.f32 0.0, %v3990
      %v3992 = vpop.f32.mrb[0].mxu0
      %3993 = vmatprep.mubr.bf16.mxu0 0
      %3994 = vmatmul.mubr.bf16.gmra.mrb[0].mxu0 %v3945
      %v3995 = vpop.f32.mrb[0].mxu0
      %v3996 = vadd.f32 0.0, %v3995
      %v3997 = vpop.f32.mrb[0].mxu0
      %v3998 = vpop.f32.mrb[0].mxu0
      %v3999 = vadd.f32 0.0, %v3998
      %v4000 = vpop.f32.mrb[0].mxu0
      %4001 = vmatprep.mubr.bf16.mxu0 0
      %4002 = vmatmul.mubr.bf16.gmra.mrb[0].mxu0 %v3948
      %v4003 = vpop.f32.mrb[0].mxu0
      %v4004 = vadd.f32 0.0, %v4003
      %v4005 = vpop.f32.mrb[0].mxu0
      %v4006 = vpop.f32.mrb[0].mxu0
      %v4007 = vadd.f32 0.0, %v4006
      %v4008 = vpop.f32.mrb[0].mxu0
      %4009 = vmatprep.mubr.bf16.mxu0 0
      %4010 = vmatmul.mubr.bf16.gmra.mrb[0].mxu0 %v3951
      %v4011 = vpop.f32.mrb[0].mxu0
      %v4012 = vadd.f32 0.0, %v4011
      %v4013 = vpop.f32.mrb[0].mxu0
      %v4014 = vpop.f32.mrb[0].mxu0
      %v4015 = vadd.f32 0.0, %v4014
      %v4016 = vpop.f32.mrb[0].mxu0
      %4017 = vdwg.mxu0
      %v4018 = vadd.f32 %v3792, %v3988
      %v4019 = vadd.f32 %v3795, %v3991
      %v4020 = vadd.f32 %v3800, %v3996
      %v4021 = vadd.f32 %v3803, %v3999
      %v4022 = vadd.f32 %v3808, %v4004
      %v4023 = vadd.f32 %v3811, %v4007
      %v4024 = vadd.f32 %v3816, %v4012
      %v4025 = vadd.f32 %v3819, %v4015
      %s4026 = scalar_lea.vmem %s9, 96
      %v4027 = vld [vmem:[%s4026] sm:$0xf]
      %v4028 = vld [vmem:[%s4026 + $0x4] sm:$0xf]
      %v4029 = vld [vmem:[%s4026 + $0x8] sm:$0xf]
      %v4030 = vld [vmem:[%s4026 + $0xc] sm:$0xf]
      %v4031 = vld [vmem:[%s4026 + $0x10] sm:$0xf]
      %v4032 = vld [vmem:[%s4026 + $0x14] sm:$0xf]
      %v4033 = vld [vmem:[%s4026 + $0x18] sm:$0xf]
      %v4034 = vld [vmem:[%s4026 + $0x1c] sm:$0xf]
      %v4043 = vunpack.c.l.b16 %v4027
      %v4044 = vunpack.c.l.b16 %v4028
      %v4045 = vunpack.c.l.b16 %v4029
      %v4046 = vunpack.c.l.b16 %v4030
      %v4047 = vunpack.c.l.b16 %v4031
      %v4048 = vunpack.c.l.b16 %v4032
      %v4049 = vunpack.c.l.b16 %v4033
      %v4050 = vunpack.c.l.b16 %v4034
      %v4051 = vpack.c.b16 %v4044, %v4043
      %v4052 = vpack.c.b16 %v4046, %v4045
      %v4053 = vpack.c.b16 %v4048, %v4047
      %v4054 = vpack.c.b16 %v4050, %v4049
      %v4056 = vsel %vm646, %v4051, 0
      %v4059 = vsel %vm646, %v4052, 0
      %v4062 = vsel %vm646, %v4053, 0
      %v4065 = vsel %vm646, %v4054, 0
      %4067 = vmatprep.subr.bf16.mxu0 0
      %4068 = vmatpush1.bf16.msra.mxu0 %v3428
      %4069 = vmatprep.subr.bf16.mxu0 0
      %4070 = vmatpush1.bf16.msra.mxu0 %v3429
      %4071 = vmatprep.subr.bf16.mxu0 0
      %4072 = vmatpush1.bf16.msra.mxu0 %v3430
      %4073 = vmatprep.subr.bf16.mxu0 0
      %4074 = vmatpush1.bf16.msra.mxu0 %v3431
      %4075 = vmatprep.subr.bf16.mxu0 0
      %4076 = vmatpush1.bf16.msra.mxu0 0
      %4077 = vmatprep.subr.bf16.mxu0 0
      %4078 = vmatpush1.bf16.msra.mxu0 0
      %4079 = vmatprep.subr.bf16.mxu0 0
      %4080 = vmatpush1.bf16.msra.mxu0 0
      %4081 = vmatprep.subr.bf16.mxu0 0
      %4082 = vmatpush1.bf16.msra.mxu0 0
      %4083 = vmatprep.subr.bf16.mxu0 0
      %4084 = vmatpush1.bf16.msra.mxu0 0
      %4085 = vmatprep.subr.bf16.mxu0 0
      %4086 = vmatpush1.bf16.msra.mxu0 0
      %4087 = vmatprep.subr.bf16.mxu0 0
      %4088 = vmatpush1.bf16.msra.mxu0 0
      %4089 = vmatprep.subr.bf16.mxu0 0
      %4090 = vmatpush1.bf16.msra.mxu0 0
      %4091 = vmatprep.subr.bf16.mxu0 0
      %4092 = vmatpush1.bf16.msra.mxu0 0
      %4093 = vmatprep.subr.bf16.mxu0 0
      %4094 = vmatpush1.bf16.msra.mxu0 0
      %4095 = vmatprep.subr.bf16.mxu0 0
      %4096 = vmatpush1.bf16.msra.mxu0 0
      %4097 = vmatprep.subr.bf16.mxu0 0
      %4098 = vmatpush1.bf16.msra.mxu0 0
      %4099 = vmatprep.mubr.bf16.mxu0 0
      %4100 = vmatmul.mubr.bf16.gmra.mrb[0].mxu0 %v4056
      %v4101 = vpop.f32.mrb[0].mxu0
      %v4102 = vadd.f32 0.0, %v4101
      %v4103 = vpop.f32.mrb[0].mxu0
      %v4104 = vpop.f32.mrb[0].mxu0
      %v4105 = vadd.f32 0.0, %v4104
      %v4106 = vpop.f32.mrb[0].mxu0
      %4107 = vmatprep.mubr.bf16.mxu0 0
      %4108 = vmatmul.mubr.bf16.gmra.mrb[0].mxu0 %v4059
      %v4109 = vpop.f32.mrb[0].mxu0
      %v4110 = vadd.f32 0.0, %v4109
      %v4111 = vpop.f32.mrb[0].mxu0
      %v4112 = vpop.f32.mrb[0].mxu0
      %v4113 = vadd.f32 0.0, %v4112
      %v4114 = vpop.f32.mrb[0].mxu0
      %4115 = vmatprep.mubr.bf16.mxu0 0
      %4116 = vmatmul.mubr.bf16.gmra.mrb[0].mxu0 %v4062
      %v4117 = vpop.f32.mrb[0].mxu0
      %v4118 = vadd.f32 0.0, %v4117
      %v4119 = vpop.f32.mrb[0].mxu0
      %v4120 = vpop.f32.mrb[0].mxu0
      %v4121 = vadd.f32 0.0, %v4120
      %v4122 = vpop.f32.mrb[0].mxu0
      %4123 = vmatprep.mubr.bf16.mxu0 0
      %4124 = vmatmul.mubr.bf16.gmra.mrb[0].mxu0 %v4065
      %v4125 = vpop.f32.mrb[0].mxu0
      %v4126 = vadd.f32 0.0, %v4125
      %v4127 = vpop.f32.mrb[0].mxu0
      %v4128 = vpop.f32.mrb[0].mxu0
      %v4129 = vadd.f32 0.0, %v4128
      %v4130 = vpop.f32.mrb[0].mxu0
      %4131 = vdwg.mxu0
      %v4132 = vpack.c.bf16 %v4105, %v4102
      %v4133 = vpack.c.bf16 %v4113, %v4110
      %v4134 = vpack.c.bf16 %v4121, %v4118
      %v4135 = vpack.c.bf16 %v4129, %v4126
      %s4136 = scalar_lea.vmem %s10, 24
      %v4137 = vld [vmem:[%s4136] sm:$0xf]
      %v4138 = vld [vmem:[%s4136 + $0x4] sm:$0xf]
      %v4141 = vunpack.c.l.b16 %v4137
      %v4142 = vunpack.c.l.b16 %v4138
      %v4143 = vpack.c.b16 %v4142, %v4141
      %v4146 = vsel %vm756, %v4132, 0
      %v4149 = vsel %vm756, %v4133, 0
      %v4152 = vsel %vm756, %v4134, 0
      %v4155 = vsel %vm756, %v4135, 0
      %4157 = vmatprep.subr.bf16.mxu0 0
      %4158 = vmatpush1.bf16.msra.mxu0 %v4143
      %4159 = vmatprep.subr.bf16.mxu0 0
      %4160 = vmatpush1.bf16.msra.mxu0 0
      %4161 = vmatprep.subr.bf16.mxu0 0
      %4162 = vmatpush1.bf16.msra.mxu0 0
      %4163 = vmatprep.subr.bf16.mxu0 0
      %4164 = vmatpush1.bf16.msra.mxu0 0
      %4165 = vmatprep.subr.bf16.mxu0 0
      %4166 = vmatpush1.bf16.msra.mxu0 0
      %4167 = vmatprep.subr.bf16.mxu0 0
      %4168 = vmatpush1.bf16.msra.mxu0 0
      %4169 = vmatprep.subr.bf16.mxu0 0
      %4170 = vmatpush1.bf16.msra.mxu0 0
      %4171 = vmatprep.subr.bf16.mxu0 0
      %4172 = vmatpush1.bf16.msra.mxu0 0
      %4173 = vmatprep.subr.bf16.mxu0 0
      %4174 = vmatpush1.bf16.msra.mxu0 0
      %4175 = vmatprep.subr.bf16.mxu0 0
      %4176 = vmatpush1.bf16.msra.mxu0 0
      %4177 = vmatprep.subr.bf16.mxu0 0
      %4178 = vmatpush1.bf16.msra.mxu0 0
      %4179 = vmatprep.subr.bf16.mxu0 0
      %4180 = vmatpush1.bf16.msra.mxu0 0
      %4181 = vmatprep.subr.bf16.mxu0 0
      %4182 = vmatpush1.bf16.msra.mxu0 0
      %4183 = vmatprep.subr.bf16.mxu0 0
      %4184 = vmatpush1.bf16.msra.mxu0 0
      %4185 = vmatprep.subr.bf16.mxu0 0
      %4186 = vmatpush1.bf16.msra.mxu0 0
      %4187 = vmatprep.subr.bf16.mxu0 0
      %4188 = vmatpush1.bf16.msra.mxu0 0
      %4189 = vmatprep.mubr.bf16.mxu0 0
      %4190 = vmatmul.mubr.bf16.gmra.mrb[0].mxu0 %v4146
      %v4191 = vpop.f32.mrb[0].mxu0
      %v4192 = vadd.f32 0.0, %v4191
      %v4193 = vpop.f32.mrb[0].mxu0
      %v4194 = vpop.f32.mrb[0].mxu0
      %v4195 = vadd.f32 0.0, %v4194
      %v4196 = vpop.f32.mrb[0].mxu0
      %4197 = vmatprep.mubr.bf16.mxu0 0
      %4198 = vmatmul.mubr.bf16.gmra.mrb[0].mxu0 %v4149
      %v4199 = vpop.f32.mrb[0].mxu0
      %v4200 = vadd.f32 0.0, %v4199
      %v4201 = vpop.f32.mrb[0].mxu0
      %v4202 = vpop.f32.mrb[0].mxu0
      %v4203 = vadd.f32 0.0, %v4202
      %v4204 = vpop.f32.mrb[0].mxu0
      %4205 = vmatprep.mubr.bf16.mxu0 0
      %4206 = vmatmul.mubr.bf16.gmra.mrb[0].mxu0 %v4152
      %v4207 = vpop.f32.mrb[0].mxu0
      %v4208 = vadd.f32 0.0, %v4207
      %v4209 = vpop.f32.mrb[0].mxu0
      %v4210 = vpop.f32.mrb[0].mxu0
      %v4211 = vadd.f32 0.0, %v4210
      %v4212 = vpop.f32.mrb[0].mxu0
      %4213 = vmatprep.mubr.bf16.mxu0 0
      %4214 = vmatmul.mubr.bf16.gmra.mrb[0].mxu0 %v4155
      %v4215 = vpop.f32.mrb[0].mxu0
      %v4216 = vadd.f32 0.0, %v4215
      %v4217 = vpop.f32.mrb[0].mxu0
      %v4218 = vpop.f32.mrb[0].mxu0
      %v4219 = vadd.f32 0.0, %v4218
      %v4220 = vpop.f32.mrb[0].mxu0
      %4221 = vdwg.mxu0
      %v4222 = vadd.f32 %v4018, %v4192
      %v4223 = vadd.f32 %v4019, %v4195
      %v4224 = vadd.f32 %v4020, %v4200
      %v4225 = vadd.f32 %v4021, %v4203
      %v4226 = vadd.f32 %v4022, %v4208
      %v4227 = vadd.f32 %v4023, %v4211
      %v4228 = vadd.f32 %v4024, %v4216
      %v4229 = vadd.f32 %v4025, %v4219
      %v4230 = vld [vmem:[%s11] sm:$0x1]
      %v4232 = vlaneseq
      %v4233 = vshrl.u32 %v4232, 7
      %v4234 = vsub.s32 0, %v4233
      %v4235 = vrot.slane %v4230, %v4234
      %v4237 = vadd.f32 %v4222, %v4235
      %v4238 = vadd.f32 %v4223, %v4235
      %v4239 = vadd.f32 %v4224, %v4235
      %v4240 = vadd.f32 %v4225, %v4235
      %v4241 = vadd.f32 %v4226, %v4235
      %v4242 = vadd.f32 %v4227, %v4235
      %v4243 = vadd.f32 %v4228, %v4235
      %v4244 = vadd.f32 %v4229, %v4235
      %v4245 = vmul.f32 %v4237, 0.5
      %v4246 = vmul.f32 %v4238, 0.5
      %v4247 = vmul.f32 %v4239, 0.5
      %v4248 = vmul.f32 %v4240, 0.5
      %v4249 = vmul.f32 %v4241, 0.5
      %v4250 = vmul.f32 %v4242, 0.5
      %v4251 = vmul.f32 %v4243, 0.5
      %v4252 = vmul.f32 %v4244, 0.5
      %v4253 = vtanh.pop %v4245
      %v4254 = vtanh.pop %v4246
      %v4255 = vtanh.pop %v4247
      %v4256 = vtanh.pop %v4248
      %v4257 = vtanh.pop %v4249
      %v4258 = vtanh.pop %v4250
      %v4259 = vtanh.pop %v4251
      %v4260 = vtanh.pop %v4252
      %v4261 = vadd.f32 %v4253, 1.0
      %v4262 = vadd.f32 %v4254, 1.0
      %v4263 = vadd.f32 %v4255, 1.0
      %v4264 = vadd.f32 %v4256, 1.0
      %v4265 = vadd.f32 %v4257, 1.0
      %v4266 = vadd.f32 %v4258, 1.0
      %v4267 = vadd.f32 %v4259, 1.0
      %v4268 = vadd.f32 %v4260, 1.0
      %v4269 = vmul.f32 %v4261, 0.5
      %v4270 = vmul.f32 %v4262, 0.5
      %v4271 = vmul.f32 %v4263, 0.5
      %v4272 = vmul.f32 %v4264, 0.5
      %v4273 = vmul.f32 %v4265, 0.5
      %v4274 = vmul.f32 %v4266, 0.5
      %v4275 = vmul.f32 %v4267, 0.5
      %v4276 = vmul.f32 %v4268, 0.5
      %4277 = vst.msk [vmem:[%s456] sm:$0xff] %vm756, %v4269
      %4278 = vst.msk [vmem:[%s456 + $0x8] sm:$0xff] %vm756, %v4270
      %4279 = vst.msk [vmem:[%s456 + $0x10] sm:$0xff] %vm756, %v4271
      %4280 = vst.msk [vmem:[%s456 + $0x18] sm:$0xff] %vm756, %v4272
      %4281 = vst.msk [vmem:[%s456 + $0x20] sm:$0xff] %vm756, %v4273
      %4282 = vst.msk [vmem:[%s456 + $0x28] sm:$0xff] %vm756, %v4274
      %4283 = vst.msk [vmem:[%s456 + $0x30] sm:$0xff] %vm756, %v4275
      %4284 = vst.msk [vmem:[%s456 + $0x38] sm:$0xff] %vm756, %v4276
      %s4285 = smul.u32 2, %s25
      %p4286 = scmp.lt.s32.totalorder %s4285, 3
      %s4287 = scalar_select %p4286, %s4285, 3
      %s4288 = smul.addr %s4287, 8
      %s4289 = scalar_lea.vmem %s12, %s4288
      %s4290 = smul.u32 8, %s25
      %p4291 = scmp.lt.s32.totalorder %s4290, 15
      %s4292 = scalar_select %p4291, %s4290, 15
      %s4293 = smul.addr %s4292, 8
      %s4294 = scalar_lea.vmem %s13, %s4293
      // Predicated region
      $region69: #{static_autoencoder_forward.1} parent=67 // pred_check
        %p4295 = pneg %p300
      $region70: #{static_autoencoder_forward.1} parent=67 // pred_check_branch
        %4297 = sbr.rel (%p4295) target = $region72
      $region71: #{static_autoencoder_forward.1} parent=67 // pred_region
        %s4298 = smul.u32 2, %s25
      $region72: #{static_autoencoder_forward.1} parent=67 // pred_fallthru
        _
      // Predicated region
      $region73: #{static_autoencoder_forward.1} parent=67 // pred_check
        %p4299 = pneg %p326
      $region74: #{static_autoencoder_forward.1} parent=67 // pred_check_branch
        %4301 = sbr.rel (%p4299) target = $region76
      $region75: #{static_autoencoder_forward.1} parent=67 // pred_region
        %s4302 = smul.u32 8, %s25
      $region76: #{static_autoencoder_forward.1} parent=67 // pred_fallthru
        _
    $region68: #{static_autoencoder_forward.1} parent=5 // pred_fallthru
      _
    %p4303 = scmp.le.s32.totalorder 2, %s20
    // Predicated region
    $region77: #{static_autoencoder_forward.1} parent=5 // pred_check
      %p4304 = pneg %p4303
    $region78: #{static_autoencoder_forward.1} parent=5 // pred_check_branch
      %4306 = sbr.rel (%p4304) target = $region80
    $region79: #{static_autoencoder_forward.1} parent=5 // pred_region
      %s4307 = ssub.s32 %s20, 2
      // Predicated region
      $region81: #{static_autoencoder_forward.1} parent=79 // pred_check
        %p4308 = pneg %p306
      $region82: #{static_autoencoder_forward.1} parent=79 // pred_check_branch
        %4310 = sbr.rel (%p4308) target = $region84
      $region83: #{static_autoencoder_forward.1} parent=79 // pred_region
        %s4311 = smul.u32 2, %s26
        %p4312 = scmp.lt.s32.totalorder %s4311, 3
        %s4313 = scalar_select %p4312, %s4311, 3
        %s4314 = smul.addr %s4313, 8
        %s4315 = scalar_lea.vmem %s12, %s4314
      $region84: #{static_autoencoder_forward.1} parent=79 // pred_fallthru
        _
      // Predicated region
      $region85: #{static_autoencoder_forward.1} parent=79 // pred_check
        %p4316 = pneg %p332
      $region86: #{static_autoencoder_forward.1} parent=79 // pred_check_branch
        %4318 = sbr.rel (%p4316) target = $region88
      $region87: #{static_autoencoder_forward.1} parent=79 // pred_region
        %s4319 = smul.u32 8, %s26
        %p4320 = scmp.lt.s32.totalorder %s4319, 15
        %s4321 = scalar_select %p4320, %s4319, 15
        %s4322 = smul.addr %s4321, 8
        %s4323 = scalar_lea.vmem %s13, %s4322
      $region88: #{static_autoencoder_forward.1} parent=79 // pred_fallthru
        _
    $region80: #{static_autoencoder_forward.1} parent=5 // pred_fallthru
      _
  $region6: #{static_autoencoder_forward.1} parent=0 // loop_footer
    %s24 = sadd.s32 1, %s20
  $region7: #{static_autoencoder_forward.1} parent=0 // loop_footer_branch
    %19 = sbr.rel target = $region3
  $region8: #{static_autoencoder_forward.1} parent=0 // loop_exit
    _

</llo_original>
